<compile_context>
chip_gen: v7x
topology: tpu7x:2x2x1
jax: 0.10.0
libtpu: 0.0.40
codegen_flags: <defaults>
</compile_context>

<pallas_src>
import jax
import jax.numpy as jnp
import numpy as np
from jax import lax
from jax.experimental import pallas as pl
from jax.experimental.pallas import tpu as pltpu


def se_res_block_kernel(x_ref,
                        w1_ref, b1_ref, w2_ref, b2_ref,
                        fc1_ref, bfc1_ref, fc2_ref, bfc2_ref,
                        o_ref, col_ref):
    """One batch block (block_b images) per grid step.

    x_ref/o_ref : (Bb, H, W, C) f32 VMEM tiles (NHWC, channels on lanes).
    wK_ref      : (9*C, C) bf16  im2col conv weights, row = (3*dy + dx)*C + cin,
                  BN scale pre-folded.  bK_ref: (1, C) f32 folded BN bias.
    fc1/fc2     : (C, Cmid) / (Cmid, C) bf16, BN1d scale pre-folded; bfc* f32 bias.
    col_ref     : (Bb, H, W, 9*C) f32 scratch - im2col buffer.
    """
    Bb, H, W, C = x_ref.shape
    M = Bb * H * W

    # ---- zero only the im2col border slots that are never overwritten -------
    # (the interior is fully rewritten by every conv call; done once per step so
    # it is safe regardless of grid-step ordering / megacore sharding)
    zrow = jnp.zeros((Bb, 1, W, 3 * C), jnp.float32)
    col_ref[:, 0:1, :, 0:3 * C] = zrow            # taps with dy == 0 (oy = -1)
    col_ref[:, H - 1:H, :, 6 * C:9 * C] = zrow    # taps with dy == 2 (oy = +1)
    zcol = jnp.zeros((Bb, H, 1, C), jnp.float32)
    for t in (0, 3, 6):                           # taps with dx == 0 (ox = -1)
        col_ref[:, :, 0:1, t * C:(t + 1) * C] = zcol
    for t in (2, 5, 8):                           # taps with dx == 2 (ox = +1)
        col_ref[:, :, W - 1:W, t * C:(t + 1) * C] = zcol

    def shift_slices(offset, n):
        # col[..., i, ...] = src[..., i + offset, ...]  ->  (dst_slice, src_slice)
        if offset < 0:
            return slice(1, n), slice(0, n - 1)
        if offset > 0:
            return slice(0, n - 1), slice(1, n)
        return slice(0, n), slice(0, n)

    def conv3x3_bn_relu(x_bhwc, w_ref, b_ref):
        # Scatter the 9 shifted taps into the im2col buffer.  Channel (lane)
        # blocks are aligned; only dx != 1 taps need a sublane-offset store.
        for dy in range(3):
            yd, ys = shift_slices(dy - 1, H)
            for dx in range(3):
                xd, xs = shift_slices(dx - 1, W)
                t = 3 * dy + dx
                col_ref[:, yd, xd, t * C:(t + 1) * C] = x_bhwc[:, ys, xs, :]
        # One big MXU matmul per conv: (M, 9C) x (9C, C), bf16 in / f32 acc.
        lhs = col_ref[...].reshape(M, 9 * C).astype(jnp.bfloat16)
        acc = jnp.dot(lhs, w_ref[...], preferred_element_type=jnp.float32)
        return jnp.maximum(acc + b_ref[...], 0.0)        # folded BN bias + ReLU

    x = x_ref[...]
    y = conv3x3_bn_relu(x, w1_ref, b1_ref)                       # (M, C)
    y = conv3x3_bn_relu(y.reshape(Bb, H, W, C), w2_ref, b2_ref)  # (M, C) = identity

    # ---- SE branch, batched over the Bb images of this step -----------------
    y3 = y.reshape(Bb, H * W, C)
    gap = jnp.mean(y3, axis=1)                                   # (Bb, C)
    h = jnp.dot(gap.astype(jnp.bfloat16), fc1_ref[...],
                preferred_element_type=jnp.float32) + bfc1_ref[...]
    h = jnp.maximum(h, 0.0)                                      # (Bb, Cmid)
    s = jnp.dot(h.astype(jnp.bfloat16), fc2_ref[...],
                preferred_element_type=jnp.float32) + bfc2_ref[...]
    s = 1.0 / (1.0 + jnp.exp(-s))                                # sigmoid, (Bb, C)

    # gate, add identity (= residual output, per the PyTorch module), final ReLU
    out = jnp.maximum(y3 * s[:, None, :] + y3, 0.0)
    o_ref[...] = out.reshape(Bb, H, W, C).astype(o_ref.dtype)


def se_res_block(x_nchw, folded_params):
    """SEResBlock forward.  NCHW in / NCHW out (PyTorch convention)."""
    w1, b1, w2, b2, fc1, bfc1, fc2, bfc2 = folded_params
    B, C, H, W = x_nchw.shape
    Cmid = fc1.shape[1]

    # Batch block per grid step: big matmul M, but keep >= 2 grid steps so both
    # v7x TensorCores get work ("parallel" megacore axis).
    block_b = 1
    for cand in (8, 4, 2, 1):
        if B % cand == 0 and (B // cand >= 2 or cand == 1):
            block_b = cand
            break

    x = jnp.transpose(x_nchw, (0, 2, 3, 1))     # NCHW -> NHWC (channels on lanes)

    def full(shape):
        zeros = (0,) * len(shape)
        return pl.BlockSpec(shape, lambda b: zeros)

    out = pl.pallas_call(
        se_res_block_kernel,
        out_shape=jax.ShapeDtypeStruct((B, H, W, C), x.dtype),
        grid_spec=pltpu.PrefetchScalarGridSpec(
            num_scalar_prefetch=0,
            grid=(B // block_b,),
            in_specs=[
                pl.BlockSpec((block_b, H, W, C), lambda b: (b, 0, 0, 0)),
                full((9 * C, C)), full((1, C)),
                full((9 * C, C)), full((1, C)),
                full((C, Cmid)), full((1, Cmid)),
                full((Cmid, C)), full((1, C)),
            ],
            out_specs=pl.BlockSpec((block_b, H, W, C), lambda b: (b, 0, 0, 0)),
            scratch_shapes=[
                pltpu.VMEM((block_b, H, W, 9 * C), jnp.float32),  # im2col buffer
            ],
        ),
        compiler_params=pltpu.CompilerParams(
            dimension_semantics=("parallel",)),
    )(x, w1, b1, w2, b2, fc1, bfc1, fc2, bfc2)
    return jnp.transpose(out, (0, 3, 1, 2))     # NHWC -> NCHW


def reference(x_nchw, folded_params):
    """Pure-JAX reference mirroring the kernel's inference numerics
    (folded BN, bf16 MXU matmuls with f32 accumulation)."""
    w1, b1, w2, b2, fc1, bfc1, fc2, bfc2 = folded_params
    x = jnp.transpose(x_nchw, (0, 2, 3, 1)).astype(jnp.float32)
    C = x.shape[-1]

    def conv_bn_relu(x, w_flat, b):
        w_hwio = w_flat.reshape(3, 3, C, C)     # row = (3*kh + kw)*C + cin
        y = lax.conv_general_dilated(
            x.astype(jnp.bfloat16), w_hwio, (1, 1), 'SAME',
            dimension_numbers=('NHWC', 'HWIO', 'NHWC'),
            preferred_element_type=jnp.float32)
        return jnp.maximum(y + b, 0.0)

    y = conv_bn_relu(x, w1, b1)
    y = conv_bn_relu(y, w2, b2)                                        # identity
    gap = jnp.mean(y, axis=(1, 2))                                     # (B, C)
    h = jnp.dot(gap.astype(jnp.bfloat16), fc1,
                preferred_element_type=jnp.float32) + bfc1
    h = jnp.maximum(h, 0.0)
    s = jnp.dot(h.astype(jnp.bfloat16), fc2,
                preferred_element_type=jnp.float32) + bfc2
    s = 1.0 / (1.0 + jnp.exp(-s))                                      # (B, C)
    out = jnp.maximum(y * s[:, None, None, :] + y, 0.0)
    return jnp.transpose(out, (0, 3, 1, 2)).astype(x_nchw.dtype)


def init_params(key, C, reduction=16):
    """Random eval-mode parameters.  Conv weights as (9, Cin, Cout) taps with
    tap = 3*kh + kw (i.e. W_pt[cout, cin, kh, kw] -> w[3*kh+kw, cin, cout]);
    BatchNorm is represented by its folded per-channel scale/bias."""
    Cmid = C // reduction
    ks = jax.random.split(key, 12)
    n = lambda k, shp, sc: sc * jax.random.normal(k, shp, jnp.float32)
    w1 = n(ks[0], (9, C, C), 0.05)
    s1 = 1.0 + n(ks[1], (1, C), 0.1); b1 = n(ks[2], (1, C), 0.1)
    w2 = n(ks[3], (9, C, C), 0.05)
    s2 = 1.0 + n(ks[4], (1, C), 0.1); b2 = n(ks[5], (1, C), 0.1)
    fc1 = n(ks[6], (C, Cmid), 0.2)
    sfc1 = 1.0 + n(ks[7], (1, Cmid), 0.1); bfc1 = n(ks[8], (1, Cmid), 0.1)
    fc2 = n(ks[9], (Cmid, C), 0.2)
    sfc2 = 1.0 + n(ks[10], (1, C), 0.1); bfc2 = n(ks[11], (1, C), 0.1)
    return (w1, s1, b1, w2, s2, b2, fc1, sfc1, bfc1, fc2, sfc2, bfc2)


def fold_params(params):
    """Fold BN scales into the weights (inference) and pre-format for the kernel:
       conv (9, Cin, Cout)*scale[Cout] -> (9*Cin, Cout) bf16; bias stays f32.
       fc   (Cin, Cout)*scale[Cout]    -> bf16;               bias stays f32."""
    w1, s1, b1, w2, s2, b2, fc1, sfc1, bfc1, fc2, sfc2, bfc2 = params
    C = w1.shape[1]
    w1f = (w1 * s1[None]).reshape(9 * C, C).astype(jnp.bfloat16)
    w2f = (w2 * s2[None]).reshape(9 * C, C).astype(jnp.bfloat16)
    fc1f = (fc1 * sfc1).astype(jnp.bfloat16)
    fc2f = (fc2 * sfc2).astype(jnp.bfloat16)
    return (w1f, b1, w2f, b2, fc1f, bfc1, fc2f, bfc2)


if __name__ == "__main__":
    # C=128 keeps the channel (lane) axis dense; reduction=16 -> Cmid=8.
    B, C, H, W = 8, 128, 8, 8
    key = jax.random.PRNGKey(0)
    kx, kp = jax.random.split(key)
    x = jax.random.normal(kx, (B, C, H, W), jnp.float32)     # PyTorch NCHW input
    params = init_params(kp, C, reduction=16)
    folded = fold_params(params)

    fwd = jax.jit(se_res_block)
    out = jax.block_until_ready(fwd(x, folded))

    ref = jax.block_until_ready(reference(x, folded))
    np.testing.assert_allclose(np.asarray(out), np.asarray(ref),
                               rtol=5e-3, atol=5e-3)
    print("KERNEL_OK")
</pallas_src>

<mosaic_0001>
module attributes {stable_mosaic.version = 11 : i64} {
  func.func @se_res_block_kernel(%arg0: i32, %arg1: memref<4x8x8x128xf32, #tpu.memory_space<vmem>>, %arg2: memref<1152x128xbf16, #tpu.memory_space<vmem>>, %arg3: memref<1x128xf32, #tpu.memory_space<vmem>>, %arg4: memref<1152x128xbf16, #tpu.memory_space<vmem>>, %arg5: memref<1x128xf32, #tpu.memory_space<vmem>>, %arg6: memref<128x8xbf16, #tpu.memory_space<vmem>>, %arg7: memref<1x8xf32, #tpu.memory_space<vmem>>, %arg8: memref<8x128xbf16, #tpu.memory_space<vmem>>, %arg9: memref<1x128xf32, #tpu.memory_space<vmem>>, %arg10: memref<4x8x8x128xf32, #tpu.memory_space<vmem>>, %arg11: memref<4x8x8x1152xf32, #tpu.memory_space<vmem>>) attributes {dimension_semantics = [#tpu.dimension_semantics<parallel>], iteration_bounds = array<i64: 2>, scalar_prefetch = 0 : i64, scratch_operands = 1 : i64, tpu.core_type = #tpu.core_type<tc>, window_params = [{transform_indices = @transform_0, window_bounds = array<i64: 4, 8, 8, 128>}, {pipeline_mode = #tpu.pipeline_mode<synchronous>, transform_indices = @transform_1, window_bounds = array<i64: 1152, 128>}, {pipeline_mode = #tpu.pipeline_mode<synchronous>, transform_indices = @transform_2, window_bounds = array<i64: 1, 128>}, {pipeline_mode = #tpu.pipeline_mode<synchronous>, transform_indices = @transform_3, window_bounds = array<i64: 1152, 128>}, {pipeline_mode = #tpu.pipeline_mode<synchronous>, transform_indices = @transform_4, window_bounds = array<i64: 1, 128>}, {pipeline_mode = #tpu.pipeline_mode<synchronous>, transform_indices = @transform_5, window_bounds = array<i64: 128, 8>}, {pipeline_mode = #tpu.pipeline_mode<synchronous>, transform_indices = @transform_6, window_bounds = array<i64: 1, 8>}, {pipeline_mode = #tpu.pipeline_mode<synchronous>, transform_indices = @transform_7, window_bounds = array<i64: 8, 128>}, {pipeline_mode = #tpu.pipeline_mode<synchronous>, transform_indices = @transform_8, window_bounds = array<i64: 1, 128>}, {transform_indices = @transform_9, window_bounds = array<i64: 4, 8, 8, 128>}]} {
    %cst = arith.constant 0.000000e+00 : f32
    %0 = vector.broadcast %cst : f32 to vector<4x1x8x384xf32>
    %c0 = arith.constant 0 : index
    %c0_0 = arith.constant 0 : index
    %c0_1 = arith.constant 0 : index
    %c0_2 = arith.constant 0 : index
    %1 = vector.load %arg11[%c0, %c0_0, %c0_1, %c0_2] : memref<4x8x8x1152xf32, #tpu.memory_space<vmem>>, vector<4x1x8x384xf32>
    tpu.vector_store %arg11[%c0, %c0_0, %c0_1, %c0_2], %0 {strides = array<i32>} : memref<4x8x8x1152xf32, #tpu.memory_space<vmem>>, vector<4x1x8x384xf32>,
    %c0_3 = arith.constant 0 : index
    %c7 = arith.constant 7 : index
    %c0_4 = arith.constant 0 : index
    %c768 = arith.constant 768 : index
    %2 = vector.load %arg11[%c0_3, %c7, %c0_4, %c768] : memref<4x8x8x1152xf32, #tpu.memory_space<vmem>>, vector<4x1x8x384xf32>
    tpu.vector_store %arg11[%c0_3, %c7, %c0_4, %c768], %0 {strides = array<i32>} : memref<4x8x8x1152xf32, #tpu.memory_space<vmem>>, vector<4x1x8x384xf32>,
    %cst_5 = arith.constant 0.000000e+00 : f32
    %3 = vector.broadcast %cst_5 : f32 to vector<4x8x1x128xf32>
    %c0_6 = arith.constant 0 : index
    %c0_7 = arith.constant 0 : index
    %c0_8 = arith.constant 0 : index
    %c0_9 = arith.constant 0 : index
    %4 = vector.load %arg11[%c0_6, %c0_7, %c0_8, %c0_9] : memref<4x8x8x1152xf32, #tpu.memory_space<vmem>>, vector<4x8x1x128xf32>
    tpu.vector_store %arg11[%c0_6, %c0_7, %c0_8, %c0_9], %3 {strides = array<i32>} : memref<4x8x8x1152xf32, #tpu.memory_space<vmem>>, vector<4x8x1x128xf32>,
    %c0_10 = arith.constant 0 : index
    %c0_11 = arith.constant 0 : index
    %c0_12 = arith.constant 0 : index
    %c384 = arith.constant 384 : index
    %5 = vector.load %arg11[%c0_10, %c0_11, %c0_12, %c384] : memref<4x8x8x1152xf32, #tpu.memory_space<vmem>>, vector<4x8x1x128xf32>
    tpu.vector_store %arg11[%c0_10, %c0_11, %c0_12, %c384], %3 {strides = array<i32>} : memref<4x8x8x1152xf32, #tpu.memory_space<vmem>>, vector<4x8x1x128xf32>,
    %c0_13 = arith.constant 0 : index
    %c0_14 = arith.constant 0 : index
    %c0_15 = arith.constant 0 : index
    %c768_16 = arith.constant 768 : index
    %6 = vector.load %arg11[%c0_13, %c0_14, %c0_15, %c768_16] : memref<4x8x8x1152xf32, #tpu.memory_space<vmem>>, vector<4x8x1x128xf32>
    tpu.vector_store %arg11[%c0_13, %c0_14, %c0_15, %c768_16], %3 {strides = array<i32>} : memref<4x8x8x1152xf32, #tpu.memory_space<vmem>>, vector<4x8x1x128xf32>,
    %c0_17 = arith.constant 0 : index
    %c0_18 = arith.constant 0 : index
    %c7_19 = arith.constant 7 : index
    %c256 = arith.constant 256 : index
    %7 = vector.load %arg11[%c0_17, %c0_18, %c7_19, %c256] : memref<4x8x8x1152xf32, #tpu.memory_space<vmem>>, vector<4x8x1x128xf32>
    tpu.vector_store %arg11[%c0_17, %c0_18, %c7_19, %c256], %3 {strides = array<i32>} : memref<4x8x8x1152xf32, #tpu.memory_space<vmem>>, vector<4x8x1x128xf32>,
    %c0_20 = arith.constant 0 : index
    %c0_21 = arith.constant 0 : index
    %c7_22 = arith.constant 7 : index
    %c640 = arith.constant 640 : index
    %8 = vector.load %arg11[%c0_20, %c0_21, %c7_22, %c640] : memref<4x8x8x1152xf32, #tpu.memory_space<vmem>>, vector<4x8x1x128xf32>
    tpu.vector_store %arg11[%c0_20, %c0_21, %c7_22, %c640], %3 {strides = array<i32>} : memref<4x8x8x1152xf32, #tpu.memory_space<vmem>>, vector<4x8x1x128xf32>,
    %c0_23 = arith.constant 0 : index
    %c0_24 = arith.constant 0 : index
    %c7_25 = arith.constant 7 : index
    %c1024 = arith.constant 1024 : index
    %9 = vector.load %arg11[%c0_23, %c0_24, %c7_25, %c1024] : memref<4x8x8x1152xf32, #tpu.memory_space<vmem>>, vector<4x8x1x128xf32>
    tpu.vector_store %arg11[%c0_23, %c0_24, %c7_25, %c1024], %3 {strides = array<i32>} : memref<4x8x8x1152xf32, #tpu.memory_space<vmem>>, vector<4x8x1x128xf32>,
    %c0_26 = arith.constant 0 : index
    %c0_27 = arith.constant 0 : index
    %c0_28 = arith.constant 0 : index
    %c0_29 = arith.constant 0 : index
    %10 = vector.load %arg1[%c0_26, %c0_27, %c0_28, %c0_29] : memref<4x8x8x128xf32, #tpu.memory_space<vmem>>, vector<4x8x8x128xf32>
    %11 = vector.extract_strided_slice %10 {offsets = [0, 0, 0, 0], sizes = [4, 7, 7, 128], strides = [1, 1, 1, 1]} : vector<4x8x8x128xf32> to vector<4x7x7x128xf32>
    %c0_30 = arith.constant 0 : index
    %c1 = arith.constant 1 : index
    %c1_31 = arith.constant 1 : index
    %c0_32 = arith.constant 0 : index
    %12 = vector.load %arg11[%c0_30, %c1, %c1_31, %c0_32] : memref<4x8x8x1152xf32, #tpu.memory_space<vmem>>, vector<4x7x7x128xf32>
    tpu.vector_store %arg11[%c0_30, %c1, %c1_31, %c0_32], %11 {strides = array<i32>} : memref<4x8x8x1152xf32, #tpu.memory_space<vmem>>, vector<4x7x7x128xf32>,
    %13 = vector.extract_strided_slice %10 {offsets = [0, 0, 0, 0], sizes = [4, 7, 8, 128], strides = [1, 1, 1, 1]} : vector<4x8x8x128xf32> to vector<4x7x8x128xf32>
    %c0_33 = arith.constant 0 : index
    %c1_34 = arith.constant 1 : index
    %c0_35 = arith.constant 0 : index
    %c128 = arith.constant 128 : index
    %14 = vector.load %arg11[%c0_33, %c1_34, %c0_35, %c128] : memref<4x8x8x1152xf32, #tpu.memory_space<vmem>>, vector<4x7x8x128xf32>
    tpu.vector_store %arg11[%c0_33, %c1_34, %c0_35, %c128], %13 {strides = array<i32>} : memref<4x8x8x1152xf32, #tpu.memory_space<vmem>>, vector<4x7x8x128xf32>,
    %15 = vector.extract_strided_slice %10 {offsets = [0, 0, 1, 0], sizes = [4, 7, 7, 128], strides = [1, 1, 1, 1]} : vector<4x8x8x128xf32> to vector<4x7x7x128xf32>
    %c0_36 = arith.constant 0 : index
    %c1_37 = arith.constant 1 : index
    %c0_38 = arith.constant 0 : index
    %c256_39 = arith.constant 256 : index
    %16 = vector.load %arg11[%c0_36, %c1_37, %c0_38, %c256_39] : memref<4x8x8x1152xf32, #tpu.memory_space<vmem>>, vector<4x7x7x128xf32>
    tpu.vector_store %arg11[%c0_36, %c1_37, %c0_38, %c256_39], %15 {strides = array<i32>} : memref<4x8x8x1152xf32, #tpu.memory_space<vmem>>, vector<4x7x7x128xf32>,
    %17 = vector.extract_strided_slice %10 {offsets = [0, 0, 0, 0], sizes = [4, 8, 7, 128], strides = [1, 1, 1, 1]} : vector<4x8x8x128xf32> to vector<4x8x7x128xf32>
    %c0_40 = arith.constant 0 : index
    %c0_41 = arith.constant 0 : index
    %c1_42 = arith.constant 1 : index
    %c384_43 = arith.constant 384 : index
    %18 = vector.load %arg11[%c0_40, %c0_41, %c1_42, %c384_43] : memref<4x8x8x1152xf32, #tpu.memory_space<vmem>>, vector<4x8x7x128xf32>
    tpu.vector_store %arg11[%c0_40, %c0_41, %c1_42, %c384_43], %17 {strides = array<i32>} : memref<4x8x8x1152xf32, #tpu.memory_space<vmem>>, vector<4x8x7x128xf32>,
    %c0_44 = arith.constant 0 : index
    %c0_45 = arith.constant 0 : index
    %c0_46 = arith.constant 0 : index
    %c512 = arith.constant 512 : index
    %19 = vector.load %arg11[%c0_44, %c0_45, %c0_46, %c512] : memref<4x8x8x1152xf32, #tpu.memory_space<vmem>>, vector<4x8x8x128xf32>
    tpu.vector_store %arg11[%c0_44, %c0_45, %c0_46, %c512], %10 {strides = array<i32>} : memref<4x8x8x1152xf32, #tpu.memory_space<vmem>>, vector<4x8x8x128xf32>,
    %20 = vector.extract_strided_slice %10 {offsets = [0, 0, 1, 0], sizes = [4, 8, 7, 128], strides = [1, 1, 1, 1]} : vector<4x8x8x128xf32> to vector<4x8x7x128xf32>
    %c0_47 = arith.constant 0 : index
    %c0_48 = arith.constant 0 : index
    %c0_49 = arith.constant 0 : index
    %c640_50 = arith.constant 640 : index
    %21 = vector.load %arg11[%c0_47, %c0_48, %c0_49, %c640_50] : memref<4x8x8x1152xf32, #tpu.memory_space<vmem>>, vector<4x8x7x128xf32>
    tpu.vector_store %arg11[%c0_47, %c0_48, %c0_49, %c640_50], %20 {strides = array<i32>} : memref<4x8x8x1152xf32, #tpu.memory_space<vmem>>, vector<4x8x7x128xf32>,
    %22 = vector.extract_strided_slice %10 {offsets = [0, 1, 0, 0], sizes = [4, 7, 7, 128], strides = [1, 1, 1, 1]} : vector<4x8x8x128xf32> to vector<4x7x7x128xf32>
    %c0_51 = arith.constant 0 : index
    %c0_52 = arith.constant 0 : index
    %c1_53 = arith.constant 1 : index
    %c768_54 = arith.constant 768 : index
    %23 = vector.load %arg11[%c0_51, %c0_52, %c1_53, %c768_54] : memref<4x8x8x1152xf32, #tpu.memory_space<vmem>>, vector<4x7x7x128xf32>
    tpu.vector_store %arg11[%c0_51, %c0_52, %c1_53, %c768_54], %22 {strides = array<i32>} : memref<4x8x8x1152xf32, #tpu.memory_space<vmem>>, vector<4x7x7x128xf32>,
    %24 = vector.extract_strided_slice %10 {offsets = [0, 1, 0, 0], sizes = [4, 7, 8, 128], strides = [1, 1, 1, 1]} : vector<4x8x8x128xf32> to vector<4x7x8x128xf32>
    %c0_55 = arith.constant 0 : index
    %c0_56 = arith.constant 0 : index
    %c0_57 = arith.constant 0 : index
    %c896 = arith.constant 896 : index
    %25 = vector.load %arg11[%c0_55, %c0_56, %c0_57, %c896] : memref<4x8x8x1152xf32, #tpu.memory_space<vmem>>, vector<4x7x8x128xf32>
    tpu.vector_store %arg11[%c0_55, %c0_56, %c0_57, %c896], %24 {strides = array<i32>} : memref<4x8x8x1152xf32, #tpu.memory_space<vmem>>, vector<4x7x8x128xf32>,
    %26 = vector.extract_strided_slice %10 {offsets = [0, 1, 1, 0], sizes = [4, 7, 7, 128], strides = [1, 1, 1, 1]} : vector<4x8x8x128xf32> to vector<4x7x7x128xf32>
    %c0_58 = arith.constant 0 : index
    %c0_59 = arith.constant 0 : index
    %c0_60 = arith.constant 0 : index
    %c1024_61 = arith.constant 1024 : index
    %27 = vector.load %arg11[%c0_58, %c0_59, %c0_60, %c1024_61] : memref<4x8x8x1152xf32, #tpu.memory_space<vmem>>, vector<4x7x7x128xf32>
    tpu.vector_store %arg11[%c0_58, %c0_59, %c0_60, %c1024_61], %26 {strides = array<i32>} : memref<4x8x8x1152xf32, #tpu.memory_space<vmem>>, vector<4x7x7x128xf32>,
    %c0_62 = arith.constant 0 : index
    %c0_63 = arith.constant 0 : index
    %c0_64 = arith.constant 0 : index
    %c0_65 = arith.constant 0 : index
    %28 = vector.load %arg11[%c0_62, %c0_63, %c0_64, %c0_65] : memref<4x8x8x1152xf32, #tpu.memory_space<vmem>>, vector<4x8x8x1152xf32>
    %29 = vector.shape_cast %28 : vector<4x8x8x1152xf32> to vector<256x1152xf32>
    %30 = arith.truncf %29 : vector<256x1152xf32> to vector<256x1152xbf16>
    %c0_66 = arith.constant 0 : index
    %c0_67 = arith.constant 0 : index
    %31 = vector.load %arg2[%c0_66, %c0_67] : memref<1152x128xbf16, #tpu.memory_space<vmem>>, vector<1152x128xbf16>
    %cst_68 = arith.constant dense<0.000000e+00> : vector<256x128xf32>
    %32 = tpu.matmul %30, %31, %cst_68 {dimension_numbers = #tpu.dot_dimension_numbers<[1], [0], [0], [1], [0, 0, 1, 1], [], []>} : vector<256x1152xbf16>, vector<1152x128xbf16>, vector<256x128xf32> -> vector<256x128xf32>
    %c0_69 = arith.constant 0 : index
    %c0_70 = arith.constant 0 : index
    %33 = vector.load %arg3[%c0_69, %c0_70] : memref<1x128xf32, #tpu.memory_space<vmem>>, vector<1x128xf32>
    %34 = vector.broadcast %33 : vector<1x128xf32> to vector<256x128xf32>
    %35 = arith.addf %32, %34 : vector<256x128xf32>
    %cst_71 = arith.constant 0.000000e+00 : f32
    %36 = vector.broadcast %cst_71 : f32 to vector<256x128xf32>
    %37 = arith.maximumf %35, %36 : vector<256x128xf32>
    %38 = vector.shape_cast %37 : vector<256x128xf32> to vector<4x8x8x128xf32>
    %39 = vector.extract_strided_slice %38 {offsets = [0, 0, 0, 0], sizes = [4, 7, 7, 128], strides = [1, 1, 1, 1]} : vector<4x8x8x128xf32> to vector<4x7x7x128xf32>
    %c0_72 = arith.constant 0 : index
    %c1_73 = arith.constant 1 : index
    %c1_74 = arith.constant 1 : index
    %c0_75 = arith.constant 0 : index
    %40 = vector.load %arg11[%c0_72, %c1_73, %c1_74, %c0_75] : memref<4x8x8x1152xf32, #tpu.memory_space<vmem>>, vector<4x7x7x128xf32>
    tpu.vector_store %arg11[%c0_72, %c1_73, %c1_74, %c0_75], %39 {strides = array<i32>} : memref<4x8x8x1152xf32, #tpu.memory_space<vmem>>, vector<4x7x7x128xf32>,
    %41 = vector.extract_strided_slice %38 {offsets = [0, 0, 0, 0], sizes = [4, 7, 8, 128], strides = [1, 1, 1, 1]} : vector<4x8x8x128xf32> to vector<4x7x8x128xf32>
    %c0_76 = arith.constant 0 : index
    %c1_77 = arith.constant 1 : index
    %c0_78 = arith.constant 0 : index
    %c128_79 = arith.constant 128 : index
    %42 = vector.load %arg11[%c0_76, %c1_77, %c0_78, %c128_79] : memref<4x8x8x1152xf32, #tpu.memory_space<vmem>>, vector<4x7x8x128xf32>
    tpu.vector_store %arg11[%c0_76, %c1_77, %c0_78, %c128_79], %41 {strides = array<i32>} : memref<4x8x8x1152xf32, #tpu.memory_space<vmem>>, vector<4x7x8x128xf32>,
    %43 = vector.extract_strided_slice %38 {offsets = [0, 0, 1, 0], sizes = [4, 7, 7, 128], strides = [1, 1, 1, 1]} : vector<4x8x8x128xf32> to vector<4x7x7x128xf32>
    %c0_80 = arith.constant 0 : index
    %c1_81 = arith.constant 1 : index
    %c0_82 = arith.constant 0 : index
    %c256_83 = arith.constant 256 : index
    %44 = vector.load %arg11[%c0_80, %c1_81, %c0_82, %c256_83] : memref<4x8x8x1152xf32, #tpu.memory_space<vmem>>, vector<4x7x7x128xf32>
    tpu.vector_store %arg11[%c0_80, %c1_81, %c0_82, %c256_83], %43 {strides = array<i32>} : memref<4x8x8x1152xf32, #tpu.memory_space<vmem>>, vector<4x7x7x128xf32>,
    %45 = vector.extract_strided_slice %38 {offsets = [0, 0, 0, 0], sizes = [4, 8, 7, 128], strides = [1, 1, 1, 1]} : vector<4x8x8x128xf32> to vector<4x8x7x128xf32>
    %c0_84 = arith.constant 0 : index
    %c0_85 = arith.constant 0 : index
    %c1_86 = arith.constant 1 : index
    %c384_87 = arith.constant 384 : index
    %46 = vector.load %arg11[%c0_84, %c0_85, %c1_86, %c384_87] : memref<4x8x8x1152xf32, #tpu.memory_space<vmem>>, vector<4x8x7x128xf32>
    tpu.vector_store %arg11[%c0_84, %c0_85, %c1_86, %c384_87], %45 {strides = array<i32>} : memref<4x8x8x1152xf32, #tpu.memory_space<vmem>>, vector<4x8x7x128xf32>,
    %c0_88 = arith.constant 0 : index
    %c0_89 = arith.constant 0 : index
    %c0_90 = arith.constant 0 : index
    %c512_91 = arith.constant 512 : index
    %47 = vector.load %arg11[%c0_88, %c0_89, %c0_90, %c512_91] : memref<4x8x8x1152xf32, #tpu.memory_space<vmem>>, vector<4x8x8x128xf32>
    tpu.vector_store %arg11[%c0_88, %c0_89, %c0_90, %c512_91], %38 {strides = array<i32>} : memref<4x8x8x1152xf32, #tpu.memory_space<vmem>>, vector<4x8x8x128xf32>,
    %48 = vector.extract_strided_slice %38 {offsets = [0, 0, 1, 0], sizes = [4, 8, 7, 128], strides = [1, 1, 1, 1]} : vector<4x8x8x128xf32> to vector<4x8x7x128xf32>
    %c0_92 = arith.constant 0 : index
    %c0_93 = arith.constant 0 : index
    %c0_94 = arith.constant 0 : index
    %c640_95 = arith.constant 640 : index
    %49 = vector.load %arg11[%c0_92, %c0_93, %c0_94, %c640_95] : memref<4x8x8x1152xf32, #tpu.memory_space<vmem>>, vector<4x8x7x128xf32>
    tpu.vector_store %arg11[%c0_92, %c0_93, %c0_94, %c640_95], %48 {strides = array<i32>} : memref<4x8x8x1152xf32, #tpu.memory_space<vmem>>, vector<4x8x7x128xf32>,
    %50 = vector.extract_strided_slice %38 {offsets = [0, 1, 0, 0], sizes = [4, 7, 7, 128], strides = [1, 1, 1, 1]} : vector<4x8x8x128xf32> to vector<4x7x7x128xf32>
    %c0_96 = arith.constant 0 : index
    %c0_97 = arith.constant 0 : index
    %c1_98 = arith.constant 1 : index
    %c768_99 = arith.constant 768 : index
    %51 = vector.load %arg11[%c0_96, %c0_97, %c1_98, %c768_99] : memref<4x8x8x1152xf32, #tpu.memory_space<vmem>>, vector<4x7x7x128xf32>
    tpu.vector_store %arg11[%c0_96, %c0_97, %c1_98, %c768_99], %50 {strides = array<i32>} : memref<4x8x8x1152xf32, #tpu.memory_space<vmem>>, vector<4x7x7x128xf32>,
    %52 = vector.extract_strided_slice %38 {offsets = [0, 1, 0, 0], sizes = [4, 7, 8, 128], strides = [1, 1, 1, 1]} : vector<4x8x8x128xf32> to vector<4x7x8x128xf32>
    %c0_100 = arith.constant 0 : index
    %c0_101 = arith.constant 0 : index
    %c0_102 = arith.constant 0 : index
    %c896_103 = arith.constant 896 : index
    %53 = vector.load %arg11[%c0_100, %c0_101, %c0_102, %c896_103] : memref<4x8x8x1152xf32, #tpu.memory_space<vmem>>, vector<4x7x8x128xf32>
    tpu.vector_store %arg11[%c0_100, %c0_101, %c0_102, %c896_103], %52 {strides = array<i32>} : memref<4x8x8x1152xf32, #tpu.memory_space<vmem>>, vector<4x7x8x128xf32>,
    %54 = vector.extract_strided_slice %38 {offsets = [0, 1, 1, 0], sizes = [4, 7, 7, 128], strides = [1, 1, 1, 1]} : vector<4x8x8x128xf32> to vector<4x7x7x128xf32>
    %c0_104 = arith.constant 0 : index
    %c0_105 = arith.constant 0 : index
    %c0_106 = arith.constant 0 : index
    %c1024_107 = arith.constant 1024 : index
    %55 = vector.load %arg11[%c0_104, %c0_105, %c0_106, %c1024_107] : memref<4x8x8x1152xf32, #tpu.memory_space<vmem>>, vector<4x7x7x128xf32>
    tpu.vector_store %arg11[%c0_104, %c0_105, %c0_106, %c1024_107], %54 {strides = array<i32>} : memref<4x8x8x1152xf32, #tpu.memory_space<vmem>>, vector<4x7x7x128xf32>,
    %c0_108 = arith.constant 0 : index
    %c0_109 = arith.constant 0 : index
    %c0_110 = arith.constant 0 : index
    %c0_111 = arith.constant 0 : index
    %56 = vector.load %arg11[%c0_108, %c0_109, %c0_110, %c0_111] : memref<4x8x8x1152xf32, #tpu.memory_space<vmem>>, vector<4x8x8x1152xf32>
    %57 = vector.shape_cast %56 : vector<4x8x8x1152xf32> to vector<256x1152xf32>
    %58 = arith.truncf %57 : vector<256x1152xf32> to vector<256x1152xbf16>
    %c0_112 = arith.constant 0 : index
    %c0_113 = arith.constant 0 : index
    %59 = vector.load %arg4[%c0_112, %c0_113] : memref<1152x128xbf16, #tpu.memory_space<vmem>>, vector<1152x128xbf16>
    %cst_114 = arith.constant dense<0.000000e+00> : vector<256x128xf32>
    %60 = tpu.matmul %58, %59, %cst_114 {dimension_numbers = #tpu.dot_dimension_numbers<[1], [0], [0], [1], [0, 0, 1, 1], [], []>} : vector<256x1152xbf16>, vector<1152x128xbf16>, vector<256x128xf32> -> vector<256x128xf32>
    %c0_115 = arith.constant 0 : index
    %c0_116 = arith.constant 0 : index
    %61 = vector.load %arg5[%c0_115, %c0_116] : memref<1x128xf32, #tpu.memory_space<vmem>>, vector<1x128xf32>
    %62 = vector.broadcast %61 : vector<1x128xf32> to vector<256x128xf32>
    %63 = arith.addf %60, %62 : vector<256x128xf32>
    %cst_117 = arith.constant 0.000000e+00 : f32
    %64 = vector.broadcast %cst_117 : f32 to vector<256x128xf32>
    %65 = arith.maximumf %63, %64 : vector<256x128xf32>
    %66 = vector.shape_cast %65 : vector<256x128xf32> to vector<4x64x128xf32>
    %cst_118 = arith.constant dense<0.000000e+00> : vector<4x128xf32>
    %67 = vector.multi_reduction <add>, %66, %cst_118 [1] : vector<4x64x128xf32> to vector<4x128xf32>
    %cst_119 = arith.constant 6.400000e+01 : f32
    %68 = vector.broadcast %cst_119 : f32 to vector<4x128xf32>
    %69 = arith.divf %67, %68 : vector<4x128xf32>
    %70 = arith.truncf %69 : vector<4x128xf32> to vector<4x128xbf16>
    %c0_120 = arith.constant 0 : index
    %c0_121 = arith.constant 0 : index
    %71 = vector.load %arg6[%c0_120, %c0_121] : memref<128x8xbf16, #tpu.memory_space<vmem>>, vector<128x8xbf16>
    %cst_122 = arith.constant dense<0.000000e+00> : vector<4x8xf32>
    %72 = tpu.matmul %70, %71, %cst_122 {dimension_numbers = #tpu.dot_dimension_numbers<[1], [0], [0], [1], [0, 0, 1, 1], [], []>} : vector<4x128xbf16>, vector<128x8xbf16>, vector<4x8xf32> -> vector<4x8xf32>
    %c0_123 = arith.constant 0 : index
    %c0_124 = arith.constant 0 : index
    %73 = vector.load %arg7[%c0_123, %c0_124] : memref<1x8xf32, #tpu.memory_space<vmem>>, vector<1x8xf32>
    %74 = vector.broadcast %73 : vector<1x8xf32> to vector<4x8xf32>
    %75 = arith.addf %72, %74 : vector<4x8xf32>
    %cst_125 = arith.constant 0.000000e+00 : f32
    %76 = vector.broadcast %cst_125 : f32 to vector<4x8xf32>
    %77 = arith.maximumf %75, %76 : vector<4x8xf32>
    %78 = arith.truncf %77 : vector<4x8xf32> to vector<4x8xbf16>
    %c0_126 = arith.constant 0 : index
    %c0_127 = arith.constant 0 : index
    %79 = vector.load %arg8[%c0_126, %c0_127] : memref<8x128xbf16, #tpu.memory_space<vmem>>, vector<8x128xbf16>
    %cst_128 = arith.constant dense<0.000000e+00> : vector<4x128xf32>
    %80 = tpu.matmul %78, %79, %cst_128 {dimension_numbers = #tpu.dot_dimension_numbers<[1], [0], [0], [1], [0, 0, 1, 1], [], []>} : vector<4x8xbf16>, vector<8x128xbf16>, vector<4x128xf32> -> vector<4x128xf32>
    %c0_129 = arith.constant 0 : index
    %c0_130 = arith.constant 0 : index
    %81 = vector.load %arg9[%c0_129, %c0_130] : memref<1x128xf32, #tpu.memory_space<vmem>>, vector<1x128xf32>
    %82 = vector.broadcast %81 : vector<1x128xf32> to vector<4x128xf32>
    %83 = arith.addf %80, %82 : vector<4x128xf32>
    %cst_131 = arith.constant 0.000000e+00 : f32
    %84 = vector.broadcast %cst_131 : f32 to vector<4x128xf32>
    %85 = arith.subf %84, %83 : vector<4x128xf32>
    %86 = math.exp %85 : vector<4x128xf32>
    %cst_132 = arith.constant 1.000000e+00 : f32
    %87 = vector.broadcast %cst_132 : f32 to vector<4x128xf32>
    %88 = arith.addf %87, %86 : vector<4x128xf32>
    %cst_133 = arith.constant 1.000000e+00 : f32
    %89 = vector.broadcast %cst_133 : f32 to vector<4x128xf32>
    %90 = arith.divf %89, %88 : vector<4x128xf32>
    %91 = vector.shape_cast %90 : vector<4x128xf32> to vector<4x1x128xf32>
    %92 = vector.broadcast %91 : vector<4x1x128xf32> to vector<4x64x128xf32>
    %93 = arith.mulf %66, %92 : vector<4x64x128xf32>
    %94 = arith.addf %93, %66 : vector<4x64x128xf32>
    %cst_134 = arith.constant 0.000000e+00 : f32
    %95 = vector.broadcast %cst_134 : f32 to vector<4x64x128xf32>
    %96 = arith.maximumf %94, %95 : vector<4x64x128xf32>
    %97 = vector.shape_cast %96 : vector<4x64x128xf32> to vector<4x8x8x128xf32>
    %c0_135 = arith.constant 0 : index
    %c0_136 = arith.constant 0 : index
    %c0_137 = arith.constant 0 : index
    %c0_138 = arith.constant 0 : index
    %98 = vector.load %arg10[%c0_135, %c0_136, %c0_137, %c0_138] : memref<4x8x8x128xf32, #tpu.memory_space<vmem>>, vector<4x8x8x128xf32>
    tpu.vector_store %arg10[%c0_135, %c0_136, %c0_137, %c0_138], %97 {strides = array<i32>} : memref<4x8x8x128xf32, #tpu.memory_space<vmem>>, vector<4x8x8x128xf32>,
    return
  }
  func.func @transform_0(%arg0: i32) -> (i32, i32, i32, i32) {
    %c0_i32 = arith.constant 0 : i32
    %c0_i32_0 = arith.constant 0 : i32
    %c0_i32_1 = arith.constant 0 : i32
    %c0_i32_2 = arith.constant 0 : i32
    return %arg0, %c0_i32, %c0_i32_0, %c0_i32_1 : i32, i32, i32, i32
  }
  func.func @transform_1(%arg0: i32) -> (i32, i32) {
    %c0_i32 = arith.constant 0 : i32
    %c0_i32_0 = arith.constant 0 : i32
    %c0_i32_1 = arith.constant 0 : i32
    return %c0_i32, %c0_i32_0 : i32, i32
  }
  func.func @transform_2(%arg0: i32) -> (i32, i32) {
    %c0_i32 = arith.constant 0 : i32
    %c0_i32_0 = arith.constant 0 : i32
    %c0_i32_1 = arith.constant 0 : i32
    return %c0_i32, %c0_i32_0 : i32, i32
  }
  func.func @transform_3(%arg0: i32) -> (i32, i32) {
    %c0_i32 = arith.constant 0 : i32
    %c0_i32_0 = arith.constant 0 : i32
    %c0_i32_1 = arith.constant 0 : i32
    return %c0_i32, %c0_i32_0 : i32, i32
  }
  func.func @transform_4(%arg0: i32) -> (i32, i32) {
    %c0_i32 = arith.constant 0 : i32
    %c0_i32_0 = arith.constant 0 : i32
    %c0_i32_1 = arith.constant 0 : i32
    return %c0_i32, %c0_i32_0 : i32, i32
  }
  func.func @transform_5(%arg0: i32) -> (i32, i32) {
    %c0_i32 = arith.constant 0 : i32
    %c0_i32_0 = arith.constant 0 : i32
    %c0_i32_1 = arith.constant 0 : i32
    return %c0_i32, %c0_i32_0 : i32, i32
  }
  func.func @transform_6(%arg0: i32) -> (i32, i32) {
    %c0_i32 = arith.constant 0 : i32
    %c0_i32_0 = arith.constant 0 : i32
    %c0_i32_1 = arith.constant 0 : i32
    return %c0_i32, %c0_i32_0 : i32, i32
  }
  func.func @transform_7(%arg0: i32) -> (i32, i32) {
    %c0_i32 = arith.constant 0 : i32
    %c0_i32_0 = arith.constant 0 : i32
    %c0_i32_1 = arith.constant 0 : i32
    return %c0_i32, %c0_i32_0 : i32, i32
  }
  func.func @transform_8(%arg0: i32) -> (i32, i32) {
    %c0_i32 = arith.constant 0 : i32
    %c0_i32_0 = arith.constant 0 : i32
    %c0_i32_1 = arith.constant 0 : i32
    return %c0_i32, %c0_i32_0 : i32, i32
  }
  func.func @transform_9(%arg0: i32) -> (i32, i32, i32, i32) {
    %c0_i32 = arith.constant 0 : i32
    %c0_i32_0 = arith.constant 0 : i32
    %c0_i32_1 = arith.constant 0 : i32
    %c0_i32_2 = arith.constant 0 : i32
    return %arg0, %c0_i32, %c0_i32_0, %c0_i32_1 : i32, i32, i32, i32
  }
}

</mosaic_0001>

<llo_original>
// kernel: se_res_block.1
$region0: #{se_res_block.1}
  #allocation0 [shape = 'u32[]', space=smem, size = 0x4, offset = 0x4, fixed_abs, tag = 'smem constant byte address 0x4 - core index']
  #allocation1 [shape = 'u32[144,128]{1,0:T(1,128)}', space=vmem, size = 0x12000, scoped, tag = 'internal scratch']
  #allocation2 [shape = 'f32[4,8,8,1152]{3,2,1,0:T(8,128)}', space=vmem, size = 0x120000, scoped, tag = 'scratch operand']
  %s0 = inlined_call_operand.hbm [shape: f32[8,8,8,128], index: 0, kind: input, shape index: {}]
  %s1 = inlined_call_operand.hbm [shape: bf16[1152,128], index: 1, kind: input, shape index: {}]
  %s2 = inlined_call_operand.vmem [shape: f32[1,128], index: 2, kind: input, shape index: {}]
  %s3 = inlined_call_operand.hbm [shape: bf16[1152,128], index: 3, kind: input, shape index: {}]
  %s4 = inlined_call_operand.vmem [shape: f32[1,128], index: 4, kind: input, shape index: {}]
  %s5 = inlined_call_operand.vmem [shape: bf16[128,8], index: 5, kind: input, shape index: {}]
  %s6 = inlined_call_operand.vmem [shape: f32[1,8], index: 6, kind: input, shape index: {}]
  %s7 = inlined_call_operand.vmem [shape: bf16[8,128], index: 7, kind: input, shape index: {}]
  %s8 = inlined_call_operand.vmem [shape: f32[1,128], index: 8, kind: input, shape index: {}]
  %s9 = inlined_call_operand.hbm [shape: f32[8,8,8,128], index: 9, kind: output, shape index: {}]
  %s10 = sld [smem:[#allocation0]]
  $region81: #{se_res_block.1} parent=0
    _
  %s12 = ssub.s32 1, %s10
  %s13 = scalar_select 0, %s12, %s10
  $region1: #{se_res_block.1} parent=0
    #allocation3 [shape = 'u8[262144]{0}', space=vmem, size = 0x40000, scoped, tag = 'input window, operand 0']
    #allocation4 [shape = 's32[2]{0}', space=sflag, size = 0x8, scoped, tag = 'scoped memory for se_res_block.1']
    #allocation5 [shape = 's32[2]{0}', space=sflag, size = 0x8, scoped, tag = 'scoped memory for se_res_block.1']
    #allocation6 [shape = 'u8[294912]{0}', space=vmem, size = 0x48000, scoped, tag = 'input window, operand 1, single buffered']
    #allocation7 [shape = 's32[1]{0}', space=sflag, size = 0x4, scoped, tag = 'scoped memory for se_res_block.1']
    #allocation8 [shape = 'u8[294912]{0}', space=vmem, size = 0x48000, scoped, tag = 'input window, operand 3, single buffered']
    #allocation9 [shape = 'u8[262144]{0}', space=vmem, size = 0x40000, scoped, tag = 'output window, operand 0']
    %14 = vsyncpa [#allocation4], 0
    %s15 = scalar_lea.sflag [#allocation4], 1
    %16 = vsyncpa %s15, 0
    %17 = vsyncpa [#allocation7], 0
    %18 = vsyncpa [#allocation5], 0
    %s19 = scalar_lea.sflag [#allocation5], 1
    %20 = vsyncpa %s19, 0
    loop: start=0, step=1, limit=4
    $region2: #{se_res_block.1} parent=1 // loop_pre_header
      _
    $region3: #{se_res_block.1} parent=1 // loop_header
      %s22 = sphi 0, %s26
      %p23 = scmp.ge.s32.totalorder %s22, 4
      %s32 = sphi 0, %s34
      %s35 = sphi 0, %s32
      %s36 = sphi 0, %s35
      %s52 = sphi 0, %s36
      %s56 = sphi 0, %s56
      %s58 = sphi 0, %s56
      %s59 = sphi 0, %s58
      %s73 = sphi 0, %s59
      %s77 = sphi 0, %s77
      %s79 = sphi 0, %s77
      %s80 = sphi 0, %s79
      %s94 = sphi 0, %s80
      %s98 = sphi 0, %s98
      %s100 = sphi 0, %s98
      %s101 = sphi 0, %s100
      %s115 = sphi 0, %s101
      %s119 = sphi 0, %s119
      %s121 = sphi 0, %s119
      %s122 = sphi 0, %s121
      %s136 = sphi 0, %s122
      %s140 = sphi 0, %s140
      %s142 = sphi 0, %s140
      %s143 = sphi 0, %s142
      %s157 = sphi 0, %s143
      %s161 = sphi 0, %s161
      %s163 = sphi 0, %s161
      %s164 = sphi 0, %s163
      %s178 = sphi 0, %s164
      %s182 = sphi 0, %s182
      %s184 = sphi 0, %s182
      %s185 = sphi 0, %s184
      %s199 = sphi 0, %s185
      %s203 = sphi 0, %s203
      %s205 = sphi 0, %s203
      %s206 = sphi 0, %s205
      %s220 = sphi 0, %s206
      %s226 = sphi 0, %s228
      %s229 = sphi 0, %s226
      %s230 = sphi 0, %s229
      %s246 = sphi 0, %s230
    $region4: #{se_res_block.1} parent=1 // loop_header_branch
      %25 = sbr.rel (%p23) target = $region8
    $region5: #{se_res_block.1} parent=1 // loop_body
      %s27 = ssub.s32 %s22, 1
      %s28 = ssub.s32 %s22, 2
      %s29 = sadd.s32 %s22, 1
      %s30 = ssub.s32 %s22, %s29
      %p31 = scmp.eq.s32.totalorder %s30, 0
      %s33 = sadd.s32 %s32, 1
      %s34 = scalar_select %p31, %s32, %s33
      %p37 = pneg %p31
      %p38 = scmp.eq.s32.totalorder %s22, 1
      %p39 = por %p37, %p38
      %p40 = scmp.ne.s32.totalorder %s32, %s35
      %p41 = scmp.eq.s32.totalorder %s22, 0
      %p42 = por %p40, %p41
      %p43 = scmp.ne.s32.totalorder %s32, %s35
      %p44 = scmp.eq.s32.totalorder %s27, 1
      %p45 = por %p43, %p44
      %p46 = scmp.ne.s32.totalorder %s35, %s36
      %p47 = scmp.eq.s32.totalorder %s27, 0
      %p48 = por %p46, %p47
      %p49 = scmp.ne.s32.totalorder %s35, %s36
      %p50 = scmp.eq.s32.totalorder %s28, 1
      %p51 = por %p49, %p50
      %p53 = scmp.ne.s32.totalorder %s36, %s52
      %p54 = scmp.eq.s32.totalorder %s28, 0
      %p55 = por %p53, %p54
      %s57 = sadd.s32 %s56, 1
      %p60 = scmp.eq.s32.totalorder %s22, 1
      %p61 = scmp.ne.s32.totalorder %s56, %s58
      %p62 = scmp.eq.s32.totalorder %s22, 0
      %p63 = por %p61, %p62
      %p64 = scmp.ne.s32.totalorder %s56, %s58
      %p65 = scmp.eq.s32.totalorder %s27, 1
      %p66 = por %p64, %p65
      %p67 = scmp.ne.s32.totalorder %s58, %s59
      %p68 = scmp.eq.s32.totalorder %s27, 0
      %p69 = por %p67, %p68
      %p70 = scmp.ne.s32.totalorder %s58, %s59
      %p71 = scmp.eq.s32.totalorder %s28, 1
      %p72 = por %p70, %p71
      %p74 = scmp.ne.s32.totalorder %s59, %s73
      %p75 = scmp.eq.s32.totalorder %s28, 0
      %p76 = por %p74, %p75
      %s78 = sadd.s32 %s77, 1
      %p81 = scmp.eq.s32.totalorder %s22, 1
      %p82 = scmp.ne.s32.totalorder %s77, %s79
      %p83 = scmp.eq.s32.totalorder %s22, 0
      %p84 = por %p82, %p83
      %p85 = scmp.ne.s32.totalorder %s77, %s79
      %p86 = scmp.eq.s32.totalorder %s27, 1
      %p87 = por %p85, %p86
      %p88 = scmp.ne.s32.totalorder %s79, %s80
      %p89 = scmp.eq.s32.totalorder %s27, 0
      %p90 = por %p88, %p89
      %p91 = scmp.ne.s32.totalorder %s79, %s80
      %p92 = scmp.eq.s32.totalorder %s28, 1
      %p93 = por %p91, %p92
      %p95 = scmp.ne.s32.totalorder %s80, %s94
      %p96 = scmp.eq.s32.totalorder %s28, 0
      %p97 = por %p95, %p96
      %s99 = sadd.s32 %s98, 1
      %p102 = scmp.eq.s32.totalorder %s22, 1
      %p103 = scmp.ne.s32.totalorder %s98, %s100
      %p104 = scmp.eq.s32.totalorder %s22, 0
      %p105 = por %p103, %p104
      %p106 = scmp.ne.s32.totalorder %s98, %s100
      %p107 = scmp.eq.s32.totalorder %s27, 1
      %p108 = por %p106, %p107
      %p109 = scmp.ne.s32.totalorder %s100, %s101
      %p110 = scmp.eq.s32.totalorder %s27, 0
      %p111 = por %p109, %p110
      %p112 = scmp.ne.s32.totalorder %s100, %s101
      %p113 = scmp.eq.s32.totalorder %s28, 1
      %p114 = por %p112, %p113
      %p116 = scmp.ne.s32.totalorder %s101, %s115
      %p117 = scmp.eq.s32.totalorder %s28, 0
      %p118 = por %p116, %p117
      %s120 = sadd.s32 %s119, 1
      %p123 = scmp.eq.s32.totalorder %s22, 1
      %p124 = scmp.ne.s32.totalorder %s119, %s121
      %p125 = scmp.eq.s32.totalorder %s22, 0
      %p126 = por %p124, %p125
      %p127 = scmp.ne.s32.totalorder %s119, %s121
      %p128 = scmp.eq.s32.totalorder %s27, 1
      %p129 = por %p127, %p128
      %p130 = scmp.ne.s32.totalorder %s121, %s122
      %p131 = scmp.eq.s32.totalorder %s27, 0
      %p132 = por %p130, %p131
      %p133 = scmp.ne.s32.totalorder %s121, %s122
      %p134 = scmp.eq.s32.totalorder %s28, 1
      %p135 = por %p133, %p134
      %p137 = scmp.ne.s32.totalorder %s122, %s136
      %p138 = scmp.eq.s32.totalorder %s28, 0
      %p139 = por %p137, %p138
      %s141 = sadd.s32 %s140, 1
      %p144 = scmp.eq.s32.totalorder %s22, 1
      %p145 = scmp.ne.s32.totalorder %s140, %s142
      %p146 = scmp.eq.s32.totalorder %s22, 0
      %p147 = por %p145, %p146
      %p148 = scmp.ne.s32.totalorder %s140, %s142
      %p149 = scmp.eq.s32.totalorder %s27, 1
      %p150 = por %p148, %p149
      %p151 = scmp.ne.s32.totalorder %s142, %s143
      %p152 = scmp.eq.s32.totalorder %s27, 0
      %p153 = por %p151, %p152
      %p154 = scmp.ne.s32.totalorder %s142, %s143
      %p155 = scmp.eq.s32.totalorder %s28, 1
      %p156 = por %p154, %p155
      %p158 = scmp.ne.s32.totalorder %s143, %s157
      %p159 = scmp.eq.s32.totalorder %s28, 0
      %p160 = por %p158, %p159
      %s162 = sadd.s32 %s161, 1
      %p165 = scmp.eq.s32.totalorder %s22, 1
      %p166 = scmp.ne.s32.totalorder %s161, %s163
      %p167 = scmp.eq.s32.totalorder %s22, 0
      %p168 = por %p166, %p167
      %p169 = scmp.ne.s32.totalorder %s161, %s163
      %p170 = scmp.eq.s32.totalorder %s27, 1
      %p171 = por %p169, %p170
      %p172 = scmp.ne.s32.totalorder %s163, %s164
      %p173 = scmp.eq.s32.totalorder %s27, 0
      %p174 = por %p172, %p173
      %p175 = scmp.ne.s32.totalorder %s163, %s164
      %p176 = scmp.eq.s32.totalorder %s28, 1
      %p177 = por %p175, %p176
      %p179 = scmp.ne.s32.totalorder %s164, %s178
      %p180 = scmp.eq.s32.totalorder %s28, 0
      %p181 = por %p179, %p180
      %s183 = sadd.s32 %s182, 1
      %p186 = scmp.eq.s32.totalorder %s22, 1
      %p187 = scmp.ne.s32.totalorder %s182, %s184
      %p188 = scmp.eq.s32.totalorder %s22, 0
      %p189 = por %p187, %p188
      %p190 = scmp.ne.s32.totalorder %s182, %s184
      %p191 = scmp.eq.s32.totalorder %s27, 1
      %p192 = por %p190, %p191
      %p193 = scmp.ne.s32.totalorder %s184, %s185
      %p194 = scmp.eq.s32.totalorder %s27, 0
      %p195 = por %p193, %p194
      %p196 = scmp.ne.s32.totalorder %s184, %s185
      %p197 = scmp.eq.s32.totalorder %s28, 1
      %p198 = por %p196, %p197
      %p200 = scmp.ne.s32.totalorder %s185, %s199
      %p201 = scmp.eq.s32.totalorder %s28, 0
      %p202 = por %p200, %p201
      %s204 = sadd.s32 %s203, 1
      %p207 = scmp.eq.s32.totalorder %s22, 1
      %p208 = scmp.ne.s32.totalorder %s203, %s205
      %p209 = scmp.eq.s32.totalorder %s22, 0
      %p210 = por %p208, %p209
      %p211 = scmp.ne.s32.totalorder %s203, %s205
      %p212 = scmp.eq.s32.totalorder %s27, 1
      %p213 = por %p211, %p212
      %p214 = scmp.ne.s32.totalorder %s205, %s206
      %p215 = scmp.eq.s32.totalorder %s27, 0
      %p216 = por %p214, %p215
      %p217 = scmp.ne.s32.totalorder %s205, %s206
      %p218 = scmp.eq.s32.totalorder %s28, 1
      %p219 = por %p217, %p218
      %p221 = scmp.ne.s32.totalorder %s206, %s220
      %p222 = scmp.eq.s32.totalorder %s28, 0
      %p223 = por %p221, %p222
      %s224 = ssub.s32 %s22, %s29
      %p225 = scmp.eq.s32.totalorder %s224, 0
      %s227 = sadd.s32 %s226, 1
      %s228 = scalar_select %p225, %s226, %s227
      %p231 = pneg %p225
      %p232 = scmp.eq.s32.totalorder %s22, 1
      %p233 = por %p231, %p232
      %p234 = scmp.ne.s32.totalorder %s226, %s229
      %p235 = scmp.eq.s32.totalorder %s22, 0
      %p236 = por %p234, %p235
      %p237 = scmp.ne.s32.totalorder %s226, %s229
      %p238 = scmp.eq.s32.totalorder %s27, 1
      %p239 = por %p237, %p238
      %p240 = scmp.ne.s32.totalorder %s229, %s230
      %p241 = scmp.eq.s32.totalorder %s27, 0
      %p242 = por %p240, %p241
      %p243 = scmp.ne.s32.totalorder %s229, %s230
      %p244 = scmp.eq.s32.totalorder %s28, 1
      %p245 = por %p243, %p244
      %p247 = scmp.ne.s32.totalorder %s230, %s246
      %p248 = scmp.eq.s32.totalorder %s28, 0
      %p249 = por %p247, %p248
      %p250 = scmp.le.s32.totalorder 1, %s22
      %p251 = scmp.lt.s32.totalorder %s22, 3
      %p252 = pnand %p250, %p251
      %p253 = pneg %p252
      // Predicated region
      $region9: #{se_res_block.1} parent=5 // pred_check
        _
      $region10: #{se_res_block.1} parent=5 // pred_check_branch
        %255 = sbr.rel (%p252) target = $region12
      $region11: #{se_res_block.1} parent=5 // pred_region
        %s256 = ssub.s32 %s22, 1
        // Predicated region
        $region13: #{se_res_block.1} parent=11 // pred_check
          %p257 = pneg %p69
        $region14: #{se_res_block.1} parent=11 // pred_check_branch
          %259 = sbr.rel (%p257) target = $region16
        $region15: #{se_res_block.1} parent=11 // pred_region
          %s261 = ssub.s32 9216, 9216
          %262 = vsyncadd [#allocation7], %s261
          %s263 = sshll.u32 [#allocation6], 4
          %s264 = int_to_ptr.vmem [resolvable:$true] %s263
          %269 = dma.hbm_to_vmem [thread:$0]  %s1, 9216, %s264, [#allocation7], 64, 64, 4
        $region16: #{se_res_block.1} parent=11 // pred_fallthru
          _
        // Predicated region
        $region17: #{se_res_block.1} parent=11 // pred_check
          %p270 = pneg %p90
        $region18: #{se_res_block.1} parent=11 // pred_check_branch
          %272 = sbr.rel (%p270) target = $region20
        $region19: #{se_res_block.1} parent=11 // pred_region
          _
        $region20: #{se_res_block.1} parent=11 // pred_fallthru
          _
        // Predicated region
        $region21: #{se_res_block.1} parent=11 // pred_check
          %p273 = pneg %p111
        $region22: #{se_res_block.1} parent=11 // pred_check_branch
          %275 = sbr.rel (%p273) target = $region24
        $region23: #{se_res_block.1} parent=11 // pred_region
          %s277 = ssub.s32 9216, 9216
          %278 = vsyncadd [#allocation7], %s277
          %s279 = sshll.u32 [#allocation8], 4
          %s280 = int_to_ptr.vmem [resolvable:$true] %s279
          %285 = dma.hbm_to_vmem [thread:$0]  %s3, 9216, %s280, [#allocation7], 64, 64, 4
        $region24: #{se_res_block.1} parent=11 // pred_fallthru
          _
        // Predicated region
        $region25: #{se_res_block.1} parent=11 // pred_check
          %p286 = pneg %p132
        $region26: #{se_res_block.1} parent=11 // pred_check_branch
          %288 = sbr.rel (%p286) target = $region28
        $region27: #{se_res_block.1} parent=11 // pred_region
          _
        $region28: #{se_res_block.1} parent=11 // pred_fallthru
          _
        // Predicated region
        $region29: #{se_res_block.1} parent=11 // pred_check
          %p289 = pneg %p153
        $region30: #{se_res_block.1} parent=11 // pred_check_branch
          %291 = sbr.rel (%p289) target = $region32
        $region31: #{se_res_block.1} parent=11 // pred_region
          _
        $region32: #{se_res_block.1} parent=11 // pred_fallthru
          _
        // Predicated region
        $region33: #{se_res_block.1} parent=11 // pred_check
          %p292 = pneg %p174
        $region34: #{se_res_block.1} parent=11 // pred_check_branch
          %294 = sbr.rel (%p292) target = $region36
        $region35: #{se_res_block.1} parent=11 // pred_region
          _
        $region36: #{se_res_block.1} parent=11 // pred_fallthru
          _
        // Predicated region
        $region37: #{se_res_block.1} parent=11 // pred_check
          %p295 = pneg %p195
        $region38: #{se_res_block.1} parent=11 // pred_check_branch
          %297 = sbr.rel (%p295) target = $region40
        $region39: #{se_res_block.1} parent=11 // pred_region
          _
        $region40: #{se_res_block.1} parent=11 // pred_fallthru
          _
        // Predicated region
        $region41: #{se_res_block.1} parent=11 // pred_check
          %p298 = pneg %p216
        $region42: #{se_res_block.1} parent=11 // pred_check_branch
          %300 = sbr.rel (%p298) target = $region44
        $region43: #{se_res_block.1} parent=11 // pred_region
          _
        $region44: #{se_res_block.1} parent=11 // pred_fallthru
          _
      $region12: #{se_res_block.1} parent=5 // pred_fallthru
        _
      %p301 = scmp.lt.s32.totalorder %s22, 2
      // Predicated region
      $region45: #{se_res_block.1} parent=5 // pred_check
        %p302 = pneg %p301
      $region46: #{se_res_block.1} parent=5 // pred_check_branch
        %304 = sbr.rel (%p302) target = $region48
      $region47: #{se_res_block.1} parent=5 // pred_region
        // Predicated region
        $region49: #{se_res_block.1} parent=47 // pred_check
          %p305 = pneg %p42
        $region50: #{se_res_block.1} parent=47 // pred_check_branch
          %307 = sbr.rel (%p305) target = $region52
        $region51: #{se_res_block.1} parent=47 // pred_region
          %s308 = sand.u32 %s32, 1
          %s309 = scalar_lea.sflag [#allocation4], %s308
          %s310 = sand.u32 %s32, 1
          %s311 = smul.addr %s310, 256
          %s312 = scalar_lea.vmem [#allocation3], %s311
          %s313 = smul.u32 4, %s22
          %s315 = ssub.s32 4096, 4096
          %316 = vsyncadd %s309, %s315
          %s317 = smul.addr %s313, 8
          %s318 = smul.addr %s317, 128
          %s319 = scalar_lea.hbm %s0, %s318
          %s320 = sshll.u32 %s312, 4
          %s321 = int_to_ptr.vmem [resolvable:$true] %s320
          %326 = dma.hbm_to_vmem [thread:$0]  %s319, 4096, %s321, %s309, 128, 128, 8
        $region52: #{se_res_block.1} parent=47 // pred_fallthru
          _
      $region48: #{se_res_block.1} parent=5 // pred_fallthru
        _
      %p327 = scmp.le.s32.totalorder 1, %s22
      %p328 = scmp.lt.s32.totalorder %s22, 3
      %p329 = pnand %p327, %p328
      %p330 = pneg %p329
      // Predicated region
      $region53: #{se_res_block.1} parent=5 // pred_check
        _
      $region54: #{se_res_block.1} parent=5 // pred_check_branch
        %332 = sbr.rel (%p329) target = $region56
      $region55: #{se_res_block.1} parent=5 // pred_region
        %s333 = ssub.s32 %s22, 1
        %s334 = sand.u32 %s35, 1
        %s335 = scalar_lea.sflag [#allocation4], %s334
        %s336 = sand.u32 %s35, 1
        %s337 = smul.addr %s336, 256
        %s338 = scalar_lea.vmem [#allocation3], %s337
        // Predicated region
        $region57: #{se_res_block.1} parent=55 // pred_check
          %p339 = pneg %p48
        $region58: #{se_res_block.1} parent=55 // pred_check_branch
          %341 = sbr.rel (%p339) target = $region60
        $region59: #{se_res_block.1} parent=55 // pred_region
          %342 = dma.done %s335, 4096
        $region60: #{se_res_block.1} parent=55 // pred_fallthru
          _
        // Predicated region
        $region61: #{se_res_block.1} parent=55 // pred_check
          %p343 = pneg %p69
        $region62: #{se_res_block.1} parent=55 // pred_check_branch
          %345 = sbr.rel (%p343) target = $region64
        $region63: #{se_res_block.1} parent=55 // pred_region
          %346 = dma.done [#allocation7], 9216
        $region64: #{se_res_block.1} parent=55 // pred_fallthru
          _
        // Predicated region
        $region65: #{se_res_block.1} parent=55 // pred_check
          %p347 = pneg %p111
        $region66: #{se_res_block.1} parent=55 // pred_check_branch
          %349 = sbr.rel (%p347) target = $region68
        $region67: #{se_res_block.1} parent=55 // pred_region
          %350 = dma.done [#allocation7], 9216
        $region68: #{se_res_block.1} parent=55 // pred_fallthru
          _
        %s351 = sand.u32 %s35, 1
        %s352 = scalar_lea.sflag [#allocation4], %s351
        %s353 = sand.u32 %s35, 1
        %s354 = smul.addr %s353, 256
        %s355 = scalar_lea.vmem [#allocation3], %s354
        %p356 = pneg %p48
        %p357 = pneg %p45
        %p358 = pneg %p69
        %p359 = pneg %p66
        %p360 = pneg %p90
        %p361 = pneg %p87
        %p362 = pneg %p111
        %p363 = pneg %p108
        %p364 = pneg %p132
        %p365 = pneg %p129
        %p366 = pneg %p153
        %p367 = pneg %p150
        %p368 = pneg %p174
        %p369 = pneg %p171
        %p370 = pneg %p195
        %p371 = pneg %p192
        %p372 = pneg %p216
        %p373 = pneg %p213
        %p374 = pneg %p242
        %p375 = pneg %p239
        %s376 = sand.u32 %s229, 1
        %s377 = scalar_lea.sflag [#allocation5], %s376
        %s378 = sand.u32 %s229, 1
        %s379 = smul.addr %s378, 256
        %s380 = scalar_lea.vmem [#allocation9], %s379
        %s381 = smul.u32 4, %s27
        %s382 = smul.u32 4, %s27
        %384 = vst [vmem:[#allocation2] sm:$0xff] 0.0
        %385 = vst [vmem:[#allocation2 + $0x8] sm:$0xff] 0.0
        %386 = vst [vmem:[#allocation2 + $0x10] sm:$0xff] 0.0
        %387 = vst [vmem:[#allocation2 + $0x240] sm:$0xff] 0.0
        %388 = vst [vmem:[#allocation2 + $0x248] sm:$0xff] 0.0
        %389 = vst [vmem:[#allocation2 + $0x250] sm:$0xff] 0.0
        %390 = vst [vmem:[#allocation2 + $0x480] sm:$0xff] 0.0
        %391 = vst [vmem:[#allocation2 + $0x488] sm:$0xff] 0.0
        %392 = vst [vmem:[#allocation2 + $0x490] sm:$0xff] 0.0
        %393 = vst [vmem:[#allocation2 + $0x6c0] sm:$0xff] 0.0
        %394 = vst [vmem:[#allocation2 + $0x6c8] sm:$0xff] 0.0
        %395 = vst [vmem:[#allocation2 + $0x6d0] sm:$0xff] 0.0
        %s396 = scalar_lea.vmem [#allocation2], 504
        %397 = vst [vmem:[%s396 + $0x30] sm:$0xff] 0.0
        %398 = vst [vmem:[%s396 + $0x38] sm:$0xff] 0.0
        %399 = vst [vmem:[%s396 + $0x40] sm:$0xff] 0.0
        %400 = vst [vmem:[%s396 + $0x270] sm:$0xff] 0.0
        %401 = vst [vmem:[%s396 + $0x278] sm:$0xff] 0.0
        %402 = vst [vmem:[%s396 + $0x280] sm:$0xff] 0.0
        %403 = vst [vmem:[%s396 + $0x4b0] sm:$0xff] 0.0
        %404 = vst [vmem:[%s396 + $0x4b8] sm:$0xff] 0.0
        %405 = vst [vmem:[%s396 + $0x4c0] sm:$0xff] 0.0
        %406 = vst [vmem:[%s396 + $0x6f0] sm:$0xff] 0.0
        %407 = vst [vmem:[%s396 + $0x6f8] sm:$0xff] 0.0
        %408 = vst [vmem:[%s396 + $0x700] sm:$0xff] 0.0
        %409 = vst [vmem:[#allocation2] sm:$0x1] 0.0
        %410 = vst [vmem:[#allocation2 + $0x48] sm:$0x1] 0.0
        %411 = vst [vmem:[#allocation2 + $0x90] sm:$0x1] 0.0
        %412 = vst [vmem:[#allocation2 + $0xd8] sm:$0x1] 0.0
        %413 = vst [vmem:[#allocation2 + $0x120] sm:$0x1] 0.0
        %414 = vst [vmem:[#allocation2 + $0x168] sm:$0x1] 0.0
        %415 = vst [vmem:[#allocation2 + $0x1b0] sm:$0x1] 0.0
        %416 = vst [vmem:[#allocation2 + $0x1f8] sm:$0x1] 0.0
        %417 = vst [vmem:[#allocation2 + $0x240] sm:$0x1] 0.0
        %418 = vst [vmem:[#allocation2 + $0x288] sm:$0x1] 0.0
        %419 = vst [vmem:[#allocation2 + $0x2d0] sm:$0x1] 0.0
        %420 = vst [vmem:[#allocation2 + $0x318] sm:$0x1] 0.0
        %421 = vst [vmem:[#allocation2 + $0x360] sm:$0x1] 0.0
        %422 = vst [vmem:[#allocation2 + $0x3a8] sm:$0x1] 0.0
        %423 = vst [vmem:[#allocation2 + $0x3f0] sm:$0x1] 0.0
        %424 = vst [vmem:[#allocation2 + $0x438] sm:$0x1] 0.0
        %425 = vst [vmem:[#allocation2 + $0x480] sm:$0x1] 0.0
        %426 = vst [vmem:[#allocation2 + $0x4c8] sm:$0x1] 0.0
        %427 = vst [vmem:[#allocation2 + $0x510] sm:$0x1] 0.0
        %428 = vst [vmem:[#allocation2 + $0x558] sm:$0x1] 0.0
        %429 = vst [vmem:[#allocation2 + $0x5a0] sm:$0x1] 0.0
        %430 = vst [vmem:[#allocation2 + $0x5e8] sm:$0x1] 0.0
        %431 = vst [vmem:[#allocation2 + $0x630] sm:$0x1] 0.0
        %432 = vst [vmem:[#allocation2 + $0x678] sm:$0x1] 0.0
        %433 = vst [vmem:[#allocation2 + $0x6c0] sm:$0x1] 0.0
        %434 = vst [vmem:[#allocation2 + $0x708] sm:$0x1] 0.0
        %435 = vst [vmem:[#allocation2 + $0x750] sm:$0x1] 0.0
        %436 = vst [vmem:[#allocation2 + $0x798] sm:$0x1] 0.0
        %437 = vst [vmem:[#allocation2 + $0x7e0] sm:$0x1] 0.0
        %438 = vst [vmem:[#allocation2 + $0x828] sm:$0x1] 0.0
        %439 = vst [vmem:[#allocation2 + $0x870] sm:$0x1] 0.0
        %440 = vst [vmem:[#allocation2 + $0x8b8] sm:$0x1] 0.0
        %441 = vst [vmem:[#allocation2 + $0x18] sm:$0x1] 0.0
        %442 = vst [vmem:[#allocation2 + $0x60] sm:$0x1] 0.0
        %443 = vst [vmem:[#allocation2 + $0xa8] sm:$0x1] 0.0
        %444 = vst [vmem:[#allocation2 + $0xf0] sm:$0x1] 0.0
        %445 = vst [vmem:[#allocation2 + $0x138] sm:$0x1] 0.0
        %446 = vst [vmem:[#allocation2 + $0x180] sm:$0x1] 0.0
        %447 = vst [vmem:[#allocation2 + $0x1c8] sm:$0x1] 0.0
        %448 = vst [vmem:[#allocation2 + $0x210] sm:$0x1] 0.0
        %449 = vst [vmem:[#allocation2 + $0x258] sm:$0x1] 0.0
        %450 = vst [vmem:[#allocation2 + $0x2a0] sm:$0x1] 0.0
        %451 = vst [vmem:[#allocation2 + $0x2e8] sm:$0x1] 0.0
        %452 = vst [vmem:[#allocation2 + $0x330] sm:$0x1] 0.0
        %453 = vst [vmem:[#allocation2 + $0x378] sm:$0x1] 0.0
        %454 = vst [vmem:[#allocation2 + $0x3c0] sm:$0x1] 0.0
        %455 = vst [vmem:[#allocation2 + $0x408] sm:$0x1] 0.0
        %456 = vst [vmem:[#allocation2 + $0x450] sm:$0x1] 0.0
        %457 = vst [vmem:[#allocation2 + $0x498] sm:$0x1] 0.0
        %458 = vst [vmem:[#allocation2 + $0x4e0] sm:$0x1] 0.0
        %459 = vst [vmem:[#allocation2 + $0x528] sm:$0x1] 0.0
        %460 = vst [vmem:[#allocation2 + $0x570] sm:$0x1] 0.0
        %461 = vst [vmem:[#allocation2 + $0x5b8] sm:$0x1] 0.0
        %462 = vst [vmem:[#allocation2 + $0x600] sm:$0x1] 0.0
        %463 = vst [vmem:[#allocation2 + $0x648] sm:$0x1] 0.0
        %464 = vst [vmem:[#allocation2 + $0x690] sm:$0x1] 0.0
        %465 = vst [vmem:[#allocation2 + $0x6d8] sm:$0x1] 0.0
        %466 = vst [vmem:[#allocation2 + $0x720] sm:$0x1] 0.0
        %467 = vst [vmem:[#allocation2 + $0x768] sm:$0x1] 0.0
        %468 = vst [vmem:[#allocation2 + $0x7b0] sm:$0x1] 0.0
        %469 = vst [vmem:[#allocation2 + $0x7f8] sm:$0x1] 0.0
        %470 = vst [vmem:[#allocation2 + $0x840] sm:$0x1] 0.0
        %471 = vst [vmem:[#allocation2 + $0x888] sm:$0x1] 0.0
        %472 = vst [vmem:[#allocation2 + $0x8d0] sm:$0x1] 0.0
        %473 = vst [vmem:[#allocation2 + $0x30] sm:$0x1] 0.0
        %474 = vst [vmem:[#allocation2 + $0x78] sm:$0x1] 0.0
        %475 = vst [vmem:[#allocation2 + $0xc0] sm:$0x1] 0.0
        %476 = vst [vmem:[#allocation2 + $0x108] sm:$0x1] 0.0
        %477 = vst [vmem:[#allocation2 + $0x150] sm:$0x1] 0.0
        %478 = vst [vmem:[#allocation2 + $0x198] sm:$0x1] 0.0
        %479 = vst [vmem:[#allocation2 + $0x1e0] sm:$0x1] 0.0
        %480 = vst [vmem:[#allocation2 + $0x228] sm:$0x1] 0.0
        %481 = vst [vmem:[#allocation2 + $0x270] sm:$0x1] 0.0
        %482 = vst [vmem:[#allocation2 + $0x2b8] sm:$0x1] 0.0
        %483 = vst [vmem:[#allocation2 + $0x300] sm:$0x1] 0.0
        %484 = vst [vmem:[#allocation2 + $0x348] sm:$0x1] 0.0
        %485 = vst [vmem:[#allocation2 + $0x390] sm:$0x1] 0.0
        %486 = vst [vmem:[#allocation2 + $0x3d8] sm:$0x1] 0.0
        %487 = vst [vmem:[#allocation2 + $0x420] sm:$0x1] 0.0
        %488 = vst [vmem:[#allocation2 + $0x468] sm:$0x1] 0.0
        %489 = vst [vmem:[#allocation2 + $0x4b0] sm:$0x1] 0.0
        %490 = vst [vmem:[#allocation2 + $0x4f8] sm:$0x1] 0.0
        %491 = vst [vmem:[#allocation2 + $0x540] sm:$0x1] 0.0
        %492 = vst [vmem:[#allocation2 + $0x588] sm:$0x1] 0.0
        %493 = vst [vmem:[#allocation2 + $0x5d0] sm:$0x1] 0.0
        %494 = vst [vmem:[#allocation2 + $0x618] sm:$0x1] 0.0
        %495 = vst [vmem:[#allocation2 + $0x660] sm:$0x1] 0.0
        %496 = vst [vmem:[#allocation2 + $0x6a8] sm:$0x1] 0.0
        %497 = vst [vmem:[#allocation2 + $0x6f0] sm:$0x1] 0.0
        %498 = vst [vmem:[#allocation2 + $0x738] sm:$0x1] 0.0
        %499 = vst [vmem:[#allocation2 + $0x780] sm:$0x1] 0.0
        %500 = vst [vmem:[#allocation2 + $0x7c8] sm:$0x1] 0.0
        %501 = vst [vmem:[#allocation2 + $0x810] sm:$0x1] 0.0
        %502 = vst [vmem:[#allocation2 + $0x858] sm:$0x1] 0.0
        %503 = vst [vmem:[#allocation2 + $0x8a0] sm:$0x1] 0.0
        %504 = vst [vmem:[#allocation2 + $0x8e8] sm:$0x1] 0.0
        %505 = vst [vmem:[#allocation2 + $0x17] sm:$0x1] 0.0
        %506 = vst [vmem:[#allocation2 + $0x5f] sm:$0x1] 0.0
        %507 = vst [vmem:[#allocation2 + $0xa7] sm:$0x1] 0.0
        %508 = vst [vmem:[#allocation2 + $0xef] sm:$0x1] 0.0
        %509 = vst [vmem:[#allocation2 + $0x137] sm:$0x1] 0.0
        %510 = vst [vmem:[#allocation2 + $0x17f] sm:$0x1] 0.0
        %511 = vst [vmem:[#allocation2 + $0x1c7] sm:$0x1] 0.0
        %512 = vst [vmem:[#allocation2 + $0x20f] sm:$0x1] 0.0
        %513 = vst [vmem:[#allocation2 + $0x257] sm:$0x1] 0.0
        %514 = vst [vmem:[#allocation2 + $0x29f] sm:$0x1] 0.0
        %515 = vst [vmem:[#allocation2 + $0x2e7] sm:$0x1] 0.0
        %516 = vst [vmem:[#allocation2 + $0x32f] sm:$0x1] 0.0
        %517 = vst [vmem:[#allocation2 + $0x377] sm:$0x1] 0.0
        %518 = vst [vmem:[#allocation2 + $0x3bf] sm:$0x1] 0.0
        %519 = vst [vmem:[#allocation2 + $0x407] sm:$0x1] 0.0
        %520 = vst [vmem:[#allocation2 + $0x44f] sm:$0x1] 0.0
        %521 = vst [vmem:[#allocation2 + $0x497] sm:$0x1] 0.0
        %522 = vst [vmem:[#allocation2 + $0x4df] sm:$0x1] 0.0
        %523 = vst [vmem:[#allocation2 + $0x527] sm:$0x1] 0.0
        %524 = vst [vmem:[#allocation2 + $0x56f] sm:$0x1] 0.0
        %525 = vst [vmem:[#allocation2 + $0x5b7] sm:$0x1] 0.0
        %526 = vst [vmem:[#allocation2 + $0x5ff] sm:$0x1] 0.0
        %527 = vst [vmem:[#allocation2 + $0x647] sm:$0x1] 0.0
        %528 = vst [vmem:[#allocation2 + $0x68f] sm:$0x1] 0.0
        %529 = vst [vmem:[#allocation2 + $0x6d7] sm:$0x1] 0.0
        %530 = vst [vmem:[#allocation2 + $0x71f] sm:$0x1] 0.0
        %531 = vst [vmem:[#allocation2 + $0x767] sm:$0x1] 0.0
        %532 = vst [vmem:[#allocation2 + $0x7af] sm:$0x1] 0.0
        %533 = vst [vmem:[#allocation2 + $0x7f7] sm:$0x1] 0.0
        %534 = vst [vmem:[#allocation2 + $0x83f] sm:$0x1] 0.0
        %535 = vst [vmem:[#allocation2 + $0x887] sm:$0x1] 0.0
        %536 = vst [vmem:[#allocation2 + $0x8cf] sm:$0x1] 0.0
        %537 = vst [vmem:[#allocation2 + $0x2f] sm:$0x1] 0.0
        %538 = vst [vmem:[#allocation2 + $0x77] sm:$0x1] 0.0
        %539 = vst [vmem:[#allocation2 + $0xbf] sm:$0x1] 0.0
        %540 = vst [vmem:[#allocation2 + $0x107] sm:$0x1] 0.0
        %541 = vst [vmem:[#allocation2 + $0x14f] sm:$0x1] 0.0
        %542 = vst [vmem:[#allocation2 + $0x197] sm:$0x1] 0.0
        %543 = vst [vmem:[#allocation2 + $0x1df] sm:$0x1] 0.0
        %544 = vst [vmem:[#allocation2 + $0x227] sm:$0x1] 0.0
        %545 = vst [vmem:[#allocation2 + $0x26f] sm:$0x1] 0.0
        %546 = vst [vmem:[#allocation2 + $0x2b7] sm:$0x1] 0.0
        %547 = vst [vmem:[#allocation2 + $0x2ff] sm:$0x1] 0.0
        %548 = vst [vmem:[#allocation2 + $0x347] sm:$0x1] 0.0
        %549 = vst [vmem:[#allocation2 + $0x38f] sm:$0x1] 0.0
        %550 = vst [vmem:[#allocation2 + $0x3d7] sm:$0x1] 0.0
        %551 = vst [vmem:[#allocation2 + $0x41f] sm:$0x1] 0.0
        %552 = vst [vmem:[#allocation2 + $0x467] sm:$0x1] 0.0
        %553 = vst [vmem:[#allocation2 + $0x4af] sm:$0x1] 0.0
        %554 = vst [vmem:[#allocation2 + $0x4f7] sm:$0x1] 0.0
        %555 = vst [vmem:[#allocation2 + $0x53f] sm:$0x1] 0.0
        %556 = vst [vmem:[#allocation2 + $0x587] sm:$0x1] 0.0
        %557 = vst [vmem:[#allocation2 + $0x5cf] sm:$0x1] 0.0
        %558 = vst [vmem:[#allocation2 + $0x617] sm:$0x1] 0.0
        %559 = vst [vmem:[#allocation2 + $0x65f] sm:$0x1] 0.0
        %560 = vst [vmem:[#allocation2 + $0x6a7] sm:$0x1] 0.0
        %561 = vst [vmem:[#allocation2 + $0x6ef] sm:$0x1] 0.0
        %562 = vst [vmem:[#allocation2 + $0x737] sm:$0x1] 0.0
        %563 = vst [vmem:[#allocation2 + $0x77f] sm:$0x1] 0.0
        %564 = vst [vmem:[#allocation2 + $0x7c7] sm:$0x1] 0.0
        %565 = vst [vmem:[#allocation2 + $0x80f] sm:$0x1] 0.0
        %566 = vst [vmem:[#allocation2 + $0x857] sm:$0x1] 0.0
        %567 = vst [vmem:[#allocation2 + $0x89f] sm:$0x1] 0.0
        %568 = vst [vmem:[#allocation2 + $0x8e7] sm:$0x1] 0.0
        %569 = vst [vmem:[#allocation2 + $0x47] sm:$0x1] 0.0
        %570 = vst [vmem:[#allocation2 + $0x8f] sm:$0x1] 0.0
        %571 = vst [vmem:[#allocation2 + $0xd7] sm:$0x1] 0.0
        %572 = vst [vmem:[#allocation2 + $0x11f] sm:$0x1] 0.0
        %573 = vst [vmem:[#allocation2 + $0x167] sm:$0x1] 0.0
        %574 = vst [vmem:[#allocation2 + $0x1af] sm:$0x1] 0.0
        %575 = vst [vmem:[#allocation2 + $0x1f7] sm:$0x1] 0.0
        %576 = vst [vmem:[#allocation2 + $0x23f] sm:$0x1] 0.0
        %577 = vst [vmem:[#allocation2 + $0x287] sm:$0x1] 0.0
        %578 = vst [vmem:[#allocation2 + $0x2cf] sm:$0x1] 0.0
        %579 = vst [vmem:[#allocation2 + $0x317] sm:$0x1] 0.0
        %580 = vst [vmem:[#allocation2 + $0x35f] sm:$0x1] 0.0
        %581 = vst [vmem:[#allocation2 + $0x3a7] sm:$0x1] 0.0
        %582 = vst [vmem:[#allocation2 + $0x3ef] sm:$0x1] 0.0
        %583 = vst [vmem:[#allocation2 + $0x437] sm:$0x1] 0.0
        %584 = vst [vmem:[#allocation2 + $0x47f] sm:$0x1] 0.0
        %585 = vst [vmem:[#allocation2 + $0x4c7] sm:$0x1] 0.0
        %586 = vst [vmem:[#allocation2 + $0x50f] sm:$0x1] 0.0
        %587 = vst [vmem:[#allocation2 + $0x557] sm:$0x1] 0.0
        %588 = vst [vmem:[#allocation2 + $0x59f] sm:$0x1] 0.0
        %589 = vst [vmem:[#allocation2 + $0x5e7] sm:$0x1] 0.0
        %590 = vst [vmem:[#allocation2 + $0x62f] sm:$0x1] 0.0
        %591 = vst [vmem:[#allocation2 + $0x677] sm:$0x1] 0.0
        %592 = vst [vmem:[#allocation2 + $0x6bf] sm:$0x1] 0.0
        %593 = vst [vmem:[#allocation2 + $0x707] sm:$0x1] 0.0
        %594 = vst [vmem:[#allocation2 + $0x74f] sm:$0x1] 0.0
        %595 = vst [vmem:[#allocation2 + $0x797] sm:$0x1] 0.0
        %596 = vst [vmem:[#allocation2 + $0x7df] sm:$0x1] 0.0
        %597 = vst [vmem:[#allocation2 + $0x827] sm:$0x1] 0.0
        %598 = vst [vmem:[#allocation2 + $0x86f] sm:$0x1] 0.0
        %599 = vst [vmem:[#allocation2 + $0x8b7] sm:$0x1] 0.0
        %600 = vst [vmem:[#allocation2 + $0x8ff] sm:$0x1] 0.0
        %v601 = vld [vmem:[%s338] sm:$0xff]
        %v602 = vld [vmem:[%s338 + $0x8] sm:$0xff]
        %v603 = vld [vmem:[%s338 + $0x10] sm:$0xff]
        %v604 = vld [vmem:[%s338 + $0x18] sm:$0xff]
        %v605 = vld [vmem:[%s338 + $0x20] sm:$0xff]
        %v606 = vld [vmem:[%s338 + $0x28] sm:$0xff]
        %v607 = vld [vmem:[%s338 + $0x30] sm:$0xff]
        %v608 = vld [vmem:[%s338 + $0x38] sm:$0xff]
        %v609 = vld [vmem:[%s338 + $0x40] sm:$0xff]
        %v610 = vld [vmem:[%s338 + $0x48] sm:$0xff]
        %v611 = vld [vmem:[%s338 + $0x50] sm:$0xff]
        %v612 = vld [vmem:[%s338 + $0x58] sm:$0xff]
        %v613 = vld [vmem:[%s338 + $0x60] sm:$0xff]
        %v614 = vld [vmem:[%s338 + $0x68] sm:$0xff]
        %v615 = vld [vmem:[%s338 + $0x70] sm:$0xff]
        %v616 = vld [vmem:[%s338 + $0x78] sm:$0xff]
        %v617 = vld [vmem:[%s338 + $0x80] sm:$0xff]
        %v618 = vld [vmem:[%s338 + $0x88] sm:$0xff]
        %v619 = vld [vmem:[%s338 + $0x90] sm:$0xff]
        %v620 = vld [vmem:[%s338 + $0x98] sm:$0xff]
        %v621 = vld [vmem:[%s338 + $0xa0] sm:$0xff]
        %v622 = vld [vmem:[%s338 + $0xa8] sm:$0xff]
        %v623 = vld [vmem:[%s338 + $0xb0] sm:$0xff]
        %v624 = vld [vmem:[%s338 + $0xb8] sm:$0xff]
        %v625 = vld [vmem:[%s338 + $0xc0] sm:$0xff]
        %v626 = vld [vmem:[%s338 + $0xc8] sm:$0xff]
        %v627 = vld [vmem:[%s338 + $0xd0] sm:$0xff]
        %v628 = vld [vmem:[%s338 + $0xd8] sm:$0xff]
        %v629 = vld [vmem:[%s338 + $0xe0] sm:$0xff]
        %v630 = vld [vmem:[%s338 + $0xe8] sm:$0xff]
        %v631 = vld [vmem:[%s338 + $0xf0] sm:$0xff]
        %v632 = vld [vmem:[%s338 + $0xf8] sm:$0xff]
        %v661 = vrot.slane %v601, 7
        %v662 = vrot.slane %v602, 7
        %v663 = vrot.slane %v603, 7
        %v664 = vrot.slane %v604, 7
        %v665 = vrot.slane %v605, 7
        %v666 = vrot.slane %v606, 7
        %v667 = vrot.slane %v607, 7
        %v668 = vrot.slane %v609, 7
        %v669 = vrot.slane %v610, 7
        %v670 = vrot.slane %v611, 7
        %v671 = vrot.slane %v612, 7
        %v672 = vrot.slane %v613, 7
        %v673 = vrot.slane %v614, 7
        %v674 = vrot.slane %v615, 7
        %v675 = vrot.slane %v617, 7
        %v676 = vrot.slane %v618, 7
        %v677 = vrot.slane %v619, 7
        %v678 = vrot.slane %v620, 7
        %v679 = vrot.slane %v621, 7
        %v680 = vrot.slane %v622, 7
        %v681 = vrot.slane %v623, 7
        %v682 = vrot.slane %v625, 7
        %v683 = vrot.slane %v626, 7
        %v684 = vrot.slane %v627, 7
        %v685 = vrot.slane %v628, 7
        %v686 = vrot.slane %v629, 7
        %v687 = vrot.slane %v630, 7
        %v688 = vrot.slane %v631, 7
        %s717 = scalar_lea.vmem [#allocation2], 72
        %718 = vst [vmem:[%s717] sm:$0xfe] %v661
        %719 = vst [vmem:[%s717 + $0x48] sm:$0xfe] %v662
        %720 = vst [vmem:[%s717 + $0x90] sm:$0xfe] %v663
        %721 = vst [vmem:[%s717 + $0xd8] sm:$0xfe] %v664
        %722 = vst [vmem:[%s717 + $0x120] sm:$0xfe] %v665
        %723 = vst [vmem:[%s717 + $0x168] sm:$0xfe] %v666
        %724 = vst [vmem:[%s717 + $0x1b0] sm:$0xfe] %v667
        %725 = vst [vmem:[%s717 + $0x240] sm:$0xfe] %v668
        %726 = vst [vmem:[%s717 + $0x288] sm:$0xfe] %v669
        %727 = vst [vmem:[%s717 + $0x2d0] sm:$0xfe] %v670
        %728 = vst [vmem:[%s717 + $0x318] sm:$0xfe] %v671
        %729 = vst [vmem:[%s717 + $0x360] sm:$0xfe] %v672
        %730 = vst [vmem:[%s717 + $0x3a8] sm:$0xfe] %v673
        %731 = vst [vmem:[%s717 + $0x3f0] sm:$0xfe] %v674
        %732 = vst [vmem:[%s717 + $0x480] sm:$0xfe] %v675
        %733 = vst [vmem:[%s717 + $0x4c8] sm:$0xfe] %v676
        %734 = vst [vmem:[%s717 + $0x510] sm:$0xfe] %v677
        %735 = vst [vmem:[%s717 + $0x558] sm:$0xfe] %v678
        %736 = vst [vmem:[%s717 + $0x5a0] sm:$0xfe] %v679
        %737 = vst [vmem:[%s717 + $0x5e8] sm:$0xfe] %v680
        %738 = vst [vmem:[%s717 + $0x630] sm:$0xfe] %v681
        %739 = vst [vmem:[%s717 + $0x6c0] sm:$0xfe] %v682
        %740 = vst [vmem:[%s717 + $0x708] sm:$0xfe] %v683
        %741 = vst [vmem:[%s717 + $0x750] sm:$0xfe] %v684
        %742 = vst [vmem:[%s717 + $0x798] sm:$0xfe] %v685
        %743 = vst [vmem:[%s717 + $0x7e0] sm:$0xfe] %v686
        %744 = vst [vmem:[%s717 + $0x828] sm:$0xfe] %v687
        %745 = vst [vmem:[%s717 + $0x870] sm:$0xfe] %v688
        %746 = vst [vmem:[%s717 + $0x8] sm:$0xff] %v601
        %747 = vst [vmem:[%s717 + $0x50] sm:$0xff] %v602
        %748 = vst [vmem:[%s717 + $0x98] sm:$0xff] %v603
        %749 = vst [vmem:[%s717 + $0xe0] sm:$0xff] %v604
        %750 = vst [vmem:[%s717 + $0x128] sm:$0xff] %v605
        %751 = vst [vmem:[%s717 + $0x170] sm:$0xff] %v606
        %752 = vst [vmem:[%s717 + $0x1b8] sm:$0xff] %v607
        %753 = vst [vmem:[%s717 + $0x248] sm:$0xff] %v609
        %754 = vst [vmem:[%s717 + $0x290] sm:$0xff] %v610
        %755 = vst [vmem:[%s717 + $0x2d8] sm:$0xff] %v611
        %756 = vst [vmem:[%s717 + $0x320] sm:$0xff] %v612
        %757 = vst [vmem:[%s717 + $0x368] sm:$0xff] %v613
        %758 = vst [vmem:[%s717 + $0x3b0] sm:$0xff] %v614
        %759 = vst [vmem:[%s717 + $0x3f8] sm:$0xff] %v615
        %760 = vst [vmem:[%s717 + $0x488] sm:$0xff] %v617
        %761 = vst [vmem:[%s717 + $0x4d0] sm:$0xff] %v618
        %762 = vst [vmem:[%s717 + $0x518] sm:$0xff] %v619
        %763 = vst [vmem:[%s717 + $0x560] sm:$0xff] %v620
        %764 = vst [vmem:[%s717 + $0x5a8] sm:$0xff] %v621
        %765 = vst [vmem:[%s717 + $0x5f0] sm:$0xff] %v622
        %766 = vst [vmem:[%s717 + $0x638] sm:$0xff] %v623
        %767 = vst [vmem:[%s717 + $0x6c8] sm:$0xff] %v625
        %768 = vst [vmem:[%s717 + $0x710] sm:$0xff] %v626
        %769 = vst [vmem:[%s717 + $0x758] sm:$0xff] %v627
        %770 = vst [vmem:[%s717 + $0x7a0] sm:$0xff] %v628
        %771 = vst [vmem:[%s717 + $0x7e8] sm:$0xff] %v629
        %772 = vst [vmem:[%s717 + $0x830] sm:$0xff] %v630
        %773 = vst [vmem:[%s717 + $0x878] sm:$0xff] %v631
        %v774 = vrot.slane %v601, 1
        %v775 = vrot.slane %v602, 1
        %v776 = vrot.slane %v603, 1
        %v777 = vrot.slane %v604, 1
        %v778 = vrot.slane %v605, 1
        %v779 = vrot.slane %v606, 1
        %v780 = vrot.slane %v607, 1
        %v781 = vrot.slane %v609, 1
        %v782 = vrot.slane %v610, 1
        %v783 = vrot.slane %v611, 1
        %v784 = vrot.slane %v612, 1
        %v785 = vrot.slane %v613, 1
        %v786 = vrot.slane %v614, 1
        %v787 = vrot.slane %v615, 1
        %v788 = vrot.slane %v617, 1
        %v789 = vrot.slane %v618, 1
        %v790 = vrot.slane %v619, 1
        %v791 = vrot.slane %v620, 1
        %v792 = vrot.slane %v621, 1
        %v793 = vrot.slane %v622, 1
        %v794 = vrot.slane %v623, 1
        %v795 = vrot.slane %v625, 1
        %v796 = vrot.slane %v626, 1
        %v797 = vrot.slane %v627, 1
        %v798 = vrot.slane %v628, 1
        %v799 = vrot.slane %v629, 1
        %v800 = vrot.slane %v630, 1
        %v801 = vrot.slane %v631, 1
        %830 = vst [vmem:[%s717 + $0x10] sm:$0x7f] %v774
        %831 = vst [vmem:[%s717 + $0x58] sm:$0x7f] %v775
        %832 = vst [vmem:[%s717 + $0xa0] sm:$0x7f] %v776
        %833 = vst [vmem:[%s717 + $0xe8] sm:$0x7f] %v777
        %834 = vst [vmem:[%s717 + $0x130] sm:$0x7f] %v778
        %835 = vst [vmem:[%s717 + $0x178] sm:$0x7f] %v779
        %836 = vst [vmem:[%s717 + $0x1c0] sm:$0x7f] %v780
        %837 = vst [vmem:[%s717 + $0x250] sm:$0x7f] %v781
        %838 = vst [vmem:[%s717 + $0x298] sm:$0x7f] %v782
        %839 = vst [vmem:[%s717 + $0x2e0] sm:$0x7f] %v783
        %840 = vst [vmem:[%s717 + $0x328] sm:$0x7f] %v784
        %841 = vst [vmem:[%s717 + $0x370] sm:$0x7f] %v785
        %842 = vst [vmem:[%s717 + $0x3b8] sm:$0x7f] %v786
        %843 = vst [vmem:[%s717 + $0x400] sm:$0x7f] %v787
        %844 = vst [vmem:[%s717 + $0x490] sm:$0x7f] %v788
        %845 = vst [vmem:[%s717 + $0x4d8] sm:$0x7f] %v789
        %846 = vst [vmem:[%s717 + $0x520] sm:$0x7f] %v790
        %847 = vst [vmem:[%s717 + $0x568] sm:$0x7f] %v791
        %848 = vst [vmem:[%s717 + $0x5b0] sm:$0x7f] %v792
        %849 = vst [vmem:[%s717 + $0x5f8] sm:$0x7f] %v793
        %850 = vst [vmem:[%s717 + $0x640] sm:$0x7f] %v794
        %851 = vst [vmem:[%s717 + $0x6d0] sm:$0x7f] %v795
        %852 = vst [vmem:[%s717 + $0x718] sm:$0x7f] %v796
        %853 = vst [vmem:[%s717 + $0x760] sm:$0x7f] %v797
        %854 = vst [vmem:[%s717 + $0x7a8] sm:$0x7f] %v798
        %855 = vst [vmem:[%s717 + $0x7f0] sm:$0x7f] %v799
        %856 = vst [vmem:[%s717 + $0x838] sm:$0x7f] %v800
        %857 = vst [vmem:[%s717 + $0x880] sm:$0x7f] %v801
        %v862 = vrot.slane %v608, 7
        %v863 = vrot.slane %v616, 7
        %v864 = vrot.slane %v624, 7
        %v865 = vrot.slane %v632, 7
        %870 = vst [vmem:[#allocation2 + $0x18] sm:$0xfe] %v661
        %871 = vst [vmem:[#allocation2 + $0x60] sm:$0xfe] %v662
        %872 = vst [vmem:[#allocation2 + $0xa8] sm:$0xfe] %v663
        %873 = vst [vmem:[#allocation2 + $0xf0] sm:$0xfe] %v664
        %874 = vst [vmem:[#allocation2 + $0x138] sm:$0xfe] %v665
        %875 = vst [vmem:[#allocation2 + $0x180] sm:$0xfe] %v666
        %876 = vst [vmem:[#allocation2 + $0x1c8] sm:$0xfe] %v667
        %877 = vst [vmem:[#allocation2 + $0x210] sm:$0xfe] %v862
        %878 = vst [vmem:[#allocation2 + $0x258] sm:$0xfe] %v668
        %879 = vst [vmem:[#allocation2 + $0x2a0] sm:$0xfe] %v669
        %880 = vst [vmem:[#allocation2 + $0x2e8] sm:$0xfe] %v670
        %881 = vst [vmem:[#allocation2 + $0x330] sm:$0xfe] %v671
        %882 = vst [vmem:[#allocation2 + $0x378] sm:$0xfe] %v672
        %883 = vst [vmem:[#allocation2 + $0x3c0] sm:$0xfe] %v673
        %884 = vst [vmem:[#allocation2 + $0x408] sm:$0xfe] %v674
        %885 = vst [vmem:[#allocation2 + $0x450] sm:$0xfe] %v863
        %886 = vst [vmem:[#allocation2 + $0x498] sm:$0xfe] %v675
        %887 = vst [vmem:[#allocation2 + $0x4e0] sm:$0xfe] %v676
        %888 = vst [vmem:[#allocation2 + $0x528] sm:$0xfe] %v677
        %889 = vst [vmem:[#allocation2 + $0x570] sm:$0xfe] %v678
        %890 = vst [vmem:[#allocation2 + $0x5b8] sm:$0xfe] %v679
        %891 = vst [vmem:[#allocation2 + $0x600] sm:$0xfe] %v680
        %892 = vst [vmem:[#allocation2 + $0x648] sm:$0xfe] %v681
        %893 = vst [vmem:[#allocation2 + $0x690] sm:$0xfe] %v864
        %894 = vst [vmem:[#allocation2 + $0x6d8] sm:$0xfe] %v682
        %895 = vst [vmem:[#allocation2 + $0x720] sm:$0xfe] %v683
        %896 = vst [vmem:[#allocation2 + $0x768] sm:$0xfe] %v684
        %897 = vst [vmem:[#allocation2 + $0x7b0] sm:$0xfe] %v685
        %898 = vst [vmem:[#allocation2 + $0x7f8] sm:$0xfe] %v686
        %899 = vst [vmem:[#allocation2 + $0x840] sm:$0xfe] %v687
        %900 = vst [vmem:[#allocation2 + $0x888] sm:$0xfe] %v688
        %901 = vst [vmem:[#allocation2 + $0x8d0] sm:$0xfe] %v865
        %902 = vst [vmem:[#allocation2 + $0x20] sm:$0xff] %v601
        %903 = vst [vmem:[#allocation2 + $0x68] sm:$0xff] %v602
        %904 = vst [vmem:[#allocation2 + $0xb0] sm:$0xff] %v603
        %905 = vst [vmem:[#allocation2 + $0xf8] sm:$0xff] %v604
        %906 = vst [vmem:[#allocation2 + $0x140] sm:$0xff] %v605
        %907 = vst [vmem:[#allocation2 + $0x188] sm:$0xff] %v606
        %908 = vst [vmem:[#allocation2 + $0x1d0] sm:$0xff] %v607
        %909 = vst [vmem:[#allocation2 + $0x218] sm:$0xff] %v608
        %910 = vst [vmem:[#allocation2 + $0x260] sm:$0xff] %v609
        %911 = vst [vmem:[#allocation2 + $0x2a8] sm:$0xff] %v610
        %912 = vst [vmem:[#allocation2 + $0x2f0] sm:$0xff] %v611
        %913 = vst [vmem:[#allocation2 + $0x338] sm:$0xff] %v612
        %914 = vst [vmem:[#allocation2 + $0x380] sm:$0xff] %v613
        %915 = vst [vmem:[#allocation2 + $0x3c8] sm:$0xff] %v614
        %916 = vst [vmem:[#allocation2 + $0x410] sm:$0xff] %v615
        %917 = vst [vmem:[#allocation2 + $0x458] sm:$0xff] %v616
        %918 = vst [vmem:[#allocation2 + $0x4a0] sm:$0xff] %v617
        %919 = vst [vmem:[#allocation2 + $0x4e8] sm:$0xff] %v618
        %920 = vst [vmem:[#allocation2 + $0x530] sm:$0xff] %v619
        %921 = vst [vmem:[#allocation2 + $0x578] sm:$0xff] %v620
        %922 = vst [vmem:[#allocation2 + $0x5c0] sm:$0xff] %v621
        %923 = vst [vmem:[#allocation2 + $0x608] sm:$0xff] %v622
        %924 = vst [vmem:[#allocation2 + $0x650] sm:$0xff] %v623
        %925 = vst [vmem:[#allocation2 + $0x698] sm:$0xff] %v624
        %926 = vst [vmem:[#allocation2 + $0x6e0] sm:$0xff] %v625
        %927 = vst [vmem:[#allocation2 + $0x728] sm:$0xff] %v626
        %928 = vst [vmem:[#allocation2 + $0x770] sm:$0xff] %v627
        %929 = vst [vmem:[#allocation2 + $0x7b8] sm:$0xff] %v628
        %930 = vst [vmem:[#allocation2 + $0x800] sm:$0xff] %v629
        %931 = vst [vmem:[#allocation2 + $0x848] sm:$0xff] %v630
        %932 = vst [vmem:[#allocation2 + $0x890] sm:$0xff] %v631
        %933 = vst [vmem:[#allocation2 + $0x8d8] sm:$0xff] %v632
        %v934 = vrot.slane %v608, 1
        %v935 = vrot.slane %v616, 1
        %v936 = vrot.slane %v624, 1
        %v937 = vrot.slane %v632, 1
        %942 = vst [vmem:[#allocation2 + $0x28] sm:$0x7f] %v774
        %943 = vst [vmem:[#allocation2 + $0x70] sm:$0x7f] %v775
        %944 = vst [vmem:[#allocation2 + $0xb8] sm:$0x7f] %v776
        %945 = vst [vmem:[#allocation2 + $0x100] sm:$0x7f] %v777
        %946 = vst [vmem:[#allocation2 + $0x148] sm:$0x7f] %v778
        %947 = vst [vmem:[#allocation2 + $0x190] sm:$0x7f] %v779
        %948 = vst [vmem:[#allocation2 + $0x1d8] sm:$0x7f] %v780
        %949 = vst [vmem:[#allocation2 + $0x220] sm:$0x7f] %v934
        %950 = vst [vmem:[#allocation2 + $0x268] sm:$0x7f] %v781
        %951 = vst [vmem:[#allocation2 + $0x2b0] sm:$0x7f] %v782
        %952 = vst [vmem:[#allocation2 + $0x2f8] sm:$0x7f] %v783
        %953 = vst [vmem:[#allocation2 + $0x340] sm:$0x7f] %v784
        %954 = vst [vmem:[#allocation2 + $0x388] sm:$0x7f] %v785
        %955 = vst [vmem:[#allocation2 + $0x3d0] sm:$0x7f] %v786
        %956 = vst [vmem:[#allocation2 + $0x418] sm:$0x7f] %v787
        %957 = vst [vmem:[#allocation2 + $0x460] sm:$0x7f] %v935
        %958 = vst [vmem:[#allocation2 + $0x4a8] sm:$0x7f] %v788
        %959 = vst [vmem:[#allocation2 + $0x4f0] sm:$0x7f] %v789
        %960 = vst [vmem:[#allocation2 + $0x538] sm:$0x7f] %v790
        %961 = vst [vmem:[#allocation2 + $0x580] sm:$0x7f] %v791
        %962 = vst [vmem:[#allocation2 + $0x5c8] sm:$0x7f] %v792
        %963 = vst [vmem:[#allocation2 + $0x610] sm:$0x7f] %v793
        %964 = vst [vmem:[#allocation2 + $0x658] sm:$0x7f] %v794
        %965 = vst [vmem:[#allocation2 + $0x6a0] sm:$0x7f] %v936
        %966 = vst [vmem:[#allocation2 + $0x6e8] sm:$0x7f] %v795
        %967 = vst [vmem:[#allocation2 + $0x730] sm:$0x7f] %v796
        %968 = vst [vmem:[#allocation2 + $0x778] sm:$0x7f] %v797
        %969 = vst [vmem:[#allocation2 + $0x7c0] sm:$0x7f] %v798
        %970 = vst [vmem:[#allocation2 + $0x808] sm:$0x7f] %v799
        %971 = vst [vmem:[#allocation2 + $0x850] sm:$0x7f] %v800
        %972 = vst [vmem:[#allocation2 + $0x898] sm:$0x7f] %v801
        %973 = vst [vmem:[#allocation2 + $0x8e0] sm:$0x7f] %v937
        %974 = vst [vmem:[#allocation2 + $0x30] sm:$0xfe] %v662
        %975 = vst [vmem:[#allocation2 + $0x78] sm:$0xfe] %v663
        %976 = vst [vmem:[#allocation2 + $0xc0] sm:$0xfe] %v664
        %977 = vst [vmem:[#allocation2 + $0x108] sm:$0xfe] %v665
        %978 = vst [vmem:[#allocation2 + $0x150] sm:$0xfe] %v666
        %979 = vst [vmem:[#allocation2 + $0x198] sm:$0xfe] %v667
        %980 = vst [vmem:[#allocation2 + $0x1e0] sm:$0xfe] %v862
        %981 = vst [vmem:[#allocation2 + $0x270] sm:$0xfe] %v669
        %982 = vst [vmem:[#allocation2 + $0x2b8] sm:$0xfe] %v670
        %983 = vst [vmem:[#allocation2 + $0x300] sm:$0xfe] %v671
        %984 = vst [vmem:[#allocation2 + $0x348] sm:$0xfe] %v672
        %985 = vst [vmem:[#allocation2 + $0x390] sm:$0xfe] %v673
        %986 = vst [vmem:[#allocation2 + $0x3d8] sm:$0xfe] %v674
        %987 = vst [vmem:[#allocation2 + $0x420] sm:$0xfe] %v863
        %988 = vst [vmem:[#allocation2 + $0x4b0] sm:$0xfe] %v676
        %989 = vst [vmem:[#allocation2 + $0x4f8] sm:$0xfe] %v677
        %990 = vst [vmem:[#allocation2 + $0x540] sm:$0xfe] %v678
        %991 = vst [vmem:[#allocation2 + $0x588] sm:$0xfe] %v679
        %992 = vst [vmem:[#allocation2 + $0x5d0] sm:$0xfe] %v680
        %993 = vst [vmem:[#allocation2 + $0x618] sm:$0xfe] %v681
        %994 = vst [vmem:[#allocation2 + $0x660] sm:$0xfe] %v864
        %995 = vst [vmem:[#allocation2 + $0x6f0] sm:$0xfe] %v683
        %996 = vst [vmem:[#allocation2 + $0x738] sm:$0xfe] %v684
        %997 = vst [vmem:[#allocation2 + $0x780] sm:$0xfe] %v685
        %998 = vst [vmem:[#allocation2 + $0x7c8] sm:$0xfe] %v686
        %999 = vst [vmem:[#allocation2 + $0x810] sm:$0xfe] %v687
        %1000 = vst [vmem:[#allocation2 + $0x858] sm:$0xfe] %v688
        %1001 = vst [vmem:[#allocation2 + $0x8a0] sm:$0xfe] %v865
        %1002 = vst [vmem:[#allocation2 + $0x38] sm:$0xff] %v602
        %1003 = vst [vmem:[#allocation2 + $0x80] sm:$0xff] %v603
        %1004 = vst [vmem:[#allocation2 + $0xc8] sm:$0xff] %v604
        %1005 = vst [vmem:[#allocation2 + $0x110] sm:$0xff] %v605
        %1006 = vst [vmem:[#allocation2 + $0x158] sm:$0xff] %v606
        %1007 = vst [vmem:[#allocation2 + $0x1a0] sm:$0xff] %v607
        %1008 = vst [vmem:[#allocation2 + $0x1e8] sm:$0xff] %v608
        %1009 = vst [vmem:[#allocation2 + $0x278] sm:$0xff] %v610
        %1010 = vst [vmem:[#allocation2 + $0x2c0] sm:$0xff] %v611
        %1011 = vst [vmem:[#allocation2 + $0x308] sm:$0xff] %v612
        %1012 = vst [vmem:[#allocation2 + $0x350] sm:$0xff] %v613
        %1013 = vst [vmem:[#allocation2 + $0x398] sm:$0xff] %v614
        %1014 = vst [vmem:[#allocation2 + $0x3e0] sm:$0xff] %v615
        %1015 = vst [vmem:[#allocation2 + $0x428] sm:$0xff] %v616
        %1016 = vst [vmem:[#allocation2 + $0x4b8] sm:$0xff] %v618
        %1017 = vst [vmem:[#allocation2 + $0x500] sm:$0xff] %v619
        %1018 = vst [vmem:[#allocation2 + $0x548] sm:$0xff] %v620
        %1019 = vst [vmem:[#allocation2 + $0x590] sm:$0xff] %v621
        %1020 = vst [vmem:[#allocation2 + $0x5d8] sm:$0xff] %v622
        %1021 = vst [vmem:[#allocation2 + $0x620] sm:$0xff] %v623
        %1022 = vst [vmem:[#allocation2 + $0x668] sm:$0xff] %v624
        %1023 = vst [vmem:[#allocation2 + $0x6f8] sm:$0xff] %v626
        %1024 = vst [vmem:[#allocation2 + $0x740] sm:$0xff] %v627
        %1025 = vst [vmem:[#allocation2 + $0x788] sm:$0xff] %v628
        %1026 = vst [vmem:[#allocation2 + $0x7d0] sm:$0xff] %v629
        %1027 = vst [vmem:[#allocation2 + $0x818] sm:$0xff] %v630
        %1028 = vst [vmem:[#allocation2 + $0x860] sm:$0xff] %v631
        %1029 = vst [vmem:[#allocation2 + $0x8a8] sm:$0xff] %v632
        %1030 = vst [vmem:[#allocation2 + $0x40] sm:$0x7f] %v775
        %1031 = vst [vmem:[#allocation2 + $0x88] sm:$0x7f] %v776
        %1032 = vst [vmem:[#allocation2 + $0xd0] sm:$0x7f] %v777
        %1033 = vst [vmem:[#allocation2 + $0x118] sm:$0x7f] %v778
        %1034 = vst [vmem:[#allocation2 + $0x160] sm:$0x7f] %v779
        %1035 = vst [vmem:[#allocation2 + $0x1a8] sm:$0x7f] %v780
        %1036 = vst [vmem:[#allocation2 + $0x1f0] sm:$0x7f] %v934
        %1037 = vst [vmem:[#allocation2 + $0x280] sm:$0x7f] %v782
        %1038 = vst [vmem:[#allocation2 + $0x2c8] sm:$0x7f] %v783
        %1039 = vst [vmem:[#allocation2 + $0x310] sm:$0x7f] %v784
        %1040 = vst [vmem:[#allocation2 + $0x358] sm:$0x7f] %v785
        %1041 = vst [vmem:[#allocation2 + $0x3a0] sm:$0x7f] %v786
        %1042 = vst [vmem:[#allocation2 + $0x3e8] sm:$0x7f] %v787
        %1043 = vst [vmem:[#allocation2 + $0x430] sm:$0x7f] %v935
        %1044 = vst [vmem:[#allocation2 + $0x4c0] sm:$0x7f] %v789
        %1045 = vst [vmem:[#allocation2 + $0x508] sm:$0x7f] %v790
        %1046 = vst [vmem:[#allocation2 + $0x550] sm:$0x7f] %v791
        %1047 = vst [vmem:[#allocation2 + $0x598] sm:$0x7f] %v792
        %1048 = vst [vmem:[#allocation2 + $0x5e0] sm:$0x7f] %v793
        %1049 = vst [vmem:[#allocation2 + $0x628] sm:$0x7f] %v794
        %1050 = vst [vmem:[#allocation2 + $0x670] sm:$0x7f] %v936
        %1051 = vst [vmem:[#allocation2 + $0x700] sm:$0x7f] %v796
        %1052 = vst [vmem:[#allocation2 + $0x748] sm:$0x7f] %v797
        %1053 = vst [vmem:[#allocation2 + $0x790] sm:$0x7f] %v798
        %1054 = vst [vmem:[#allocation2 + $0x7d8] sm:$0x7f] %v799
        %1055 = vst [vmem:[#allocation2 + $0x820] sm:$0x7f] %v800
        %1056 = vst [vmem:[#allocation2 + $0x868] sm:$0x7f] %v801
        %1057 = vst [vmem:[#allocation2 + $0x8b0] sm:$0x7f] %v937
        %v1058 = vld [vmem:[#allocation2] sm:$0xff]
        %v1059 = vld [vmem:[#allocation2 + $0x8] sm:$0xff]
        %v1060 = vld [vmem:[#allocation2 + $0x10] sm:$0xff]
        %v1061 = vld [vmem:[#allocation2 + $0x18] sm:$0xff]
        %v1062 = vld [vmem:[#allocation2 + $0x20] sm:$0xff]
        %v1063 = vld [vmem:[#allocation2 + $0x28] sm:$0xff]
        %v1064 = vld [vmem:[#allocation2 + $0x30] sm:$0xff]
        %v1065 = vld [vmem:[#allocation2 + $0x38] sm:$0xff]
        %v1066 = vld [vmem:[#allocation2 + $0x40] sm:$0xff]
        %v1067 = vld [vmem:[#allocation2 + $0x48] sm:$0xff]
        %v1068 = vld [vmem:[#allocation2 + $0x50] sm:$0xff]
        %v1069 = vld [vmem:[#allocation2 + $0x58] sm:$0xff]
        %v1070 = vld [vmem:[#allocation2 + $0x60] sm:$0xff]
        %v1071 = vld [vmem:[#allocation2 + $0x68] sm:$0xff]
        %v1072 = vld [vmem:[#allocation2 + $0x70] sm:$0xff]
        %v1073 = vld [vmem:[#allocation2 + $0x78] sm:$0xff]
        %v1074 = vld [vmem:[#allocation2 + $0x80] sm:$0xff]
        %v1075 = vld [vmem:[#allocation2 + $0x88] sm:$0xff]
        %v1076 = vld [vmem:[#allocation2 + $0x90] sm:$0xff]
        %v1077 = vld [vmem:[#allocation2 + $0x98] sm:$0xff]
        %v1078 = vld [vmem:[#allocation2 + $0xa0] sm:$0xff]
        %v1079 = vld [vmem:[#allocation2 + $0xa8] sm:$0xff]
        %v1080 = vld [vmem:[#allocation2 + $0xb0] sm:$0xff]
        %v1081 = vld [vmem:[#allocation2 + $0xb8] sm:$0xff]
        %v1082 = vld [vmem:[#allocation2 + $0xc0] sm:$0xff]
        %v1083 = vld [vmem:[#allocation2 + $0xc8] sm:$0xff]
        %v1084 = vld [vmem:[#allocation2 + $0xd0] sm:$0xff]
        %v1085 = vld [vmem:[#allocation2 + $0xd8] sm:$0xff]
        %v1086 = vld [vmem:[#allocation2 + $0xe0] sm:$0xff]
        %v1087 = vld [vmem:[#allocation2 + $0xe8] sm:$0xff]
        %v1088 = vld [vmem:[#allocation2 + $0xf0] sm:$0xff]
        %v1089 = vld [vmem:[#allocation2 + $0xf8] sm:$0xff]
        %v1090 = vld [vmem:[#allocation2 + $0x100] sm:$0xff]
        %v1091 = vld [vmem:[#allocation2 + $0x108] sm:$0xff]
        %v1092 = vld [vmem:[#allocation2 + $0x110] sm:$0xff]
        %v1093 = vld [vmem:[#allocation2 + $0x118] sm:$0xff]
        %v1094 = vld [vmem:[#allocation2 + $0x120] sm:$0xff]
        %v1095 = vld [vmem:[#allocation2 + $0x128] sm:$0xff]
        %v1096 = vld [vmem:[#allocation2 + $0x130] sm:$0xff]
        %v1097 = vld [vmem:[#allocation2 + $0x138] sm:$0xff]
        %v1098 = vld [vmem:[#allocation2 + $0x140] sm:$0xff]
        %v1099 = vld [vmem:[#allocation2 + $0x148] sm:$0xff]
        %v1100 = vld [vmem:[#allocation2 + $0x150] sm:$0xff]
        %v1101 = vld [vmem:[#allocation2 + $0x158] sm:$0xff]
        %v1102 = vld [vmem:[#allocation2 + $0x160] sm:$0xff]
        %v1103 = vld [vmem:[#allocation2 + $0x168] sm:$0xff]
        %v1104 = vld [vmem:[#allocation2 + $0x170] sm:$0xff]
        %v1105 = vld [vmem:[#allocation2 + $0x178] sm:$0xff]
        %v1106 = vld [vmem:[#allocation2 + $0x180] sm:$0xff]
        %v1107 = vld [vmem:[#allocation2 + $0x188] sm:$0xff]
        %v1108 = vld [vmem:[#allocation2 + $0x190] sm:$0xff]
        %v1109 = vld [vmem:[#allocation2 + $0x198] sm:$0xff]
        %v1110 = vld [vmem:[#allocation2 + $0x1a0] sm:$0xff]
        %v1111 = vld [vmem:[#allocation2 + $0x1a8] sm:$0xff]
        %v1112 = vld [vmem:[#allocation2 + $0x1b0] sm:$0xff]
        %v1113 = vld [vmem:[#allocation2 + $0x1b8] sm:$0xff]
        %v1114 = vld [vmem:[#allocation2 + $0x1c0] sm:$0xff]
        %v1115 = vld [vmem:[#allocation2 + $0x1c8] sm:$0xff]
        %v1116 = vld [vmem:[#allocation2 + $0x1d0] sm:$0xff]
        %v1117 = vld [vmem:[#allocation2 + $0x1d8] sm:$0xff]
        %v1118 = vld [vmem:[#allocation2 + $0x1e0] sm:$0xff]
        %v1119 = vld [vmem:[#allocation2 + $0x1e8] sm:$0xff]
        %v1120 = vld [vmem:[#allocation2 + $0x1f0] sm:$0xff]
        %v1121 = vld [vmem:[#allocation2 + $0x1f8] sm:$0xff]
        %v1122 = vld [vmem:[#allocation2 + $0x200] sm:$0xff]
        %v1123 = vld [vmem:[#allocation2 + $0x208] sm:$0xff]
        %v1124 = vld [vmem:[#allocation2 + $0x210] sm:$0xff]
        %v1125 = vld [vmem:[#allocation2 + $0x218] sm:$0xff]
        %v1126 = vld [vmem:[#allocation2 + $0x220] sm:$0xff]
        %v1127 = vld [vmem:[#allocation2 + $0x228] sm:$0xff]
        %v1128 = vld [vmem:[#allocation2 + $0x230] sm:$0xff]
        %v1129 = vld [vmem:[#allocation2 + $0x238] sm:$0xff]
        %v1130 = vld [vmem:[#allocation2 + $0x240] sm:$0xff]
        %v1131 = vld [vmem:[#allocation2 + $0x248] sm:$0xff]
        %v1132 = vld [vmem:[#allocation2 + $0x250] sm:$0xff]
        %v1133 = vld [vmem:[#allocation2 + $0x258] sm:$0xff]
        %v1134 = vld [vmem:[#allocation2 + $0x260] sm:$0xff]
        %v1135 = vld [vmem:[#allocation2 + $0x268] sm:$0xff]
        %v1136 = vld [vmem:[#allocation2 + $0x270] sm:$0xff]
        %v1137 = vld [vmem:[#allocation2 + $0x278] sm:$0xff]
        %v1138 = vld [vmem:[#allocation2 + $0x280] sm:$0xff]
        %v1139 = vld [vmem:[#allocation2 + $0x288] sm:$0xff]
        %v1140 = vld [vmem:[#allocation2 + $0x290] sm:$0xff]
        %v1141 = vld [vmem:[#allocation2 + $0x298] sm:$0xff]
        %v1142 = vld [vmem:[#allocation2 + $0x2a0] sm:$0xff]
        %v1143 = vld [vmem:[#allocation2 + $0x2a8] sm:$0xff]
        %v1144 = vld [vmem:[#allocation2 + $0x2b0] sm:$0xff]
        %v1145 = vld [vmem:[#allocation2 + $0x2b8] sm:$0xff]
        %v1146 = vld [vmem:[#allocation2 + $0x2c0] sm:$0xff]
        %v1147 = vld [vmem:[#allocation2 + $0x2c8] sm:$0xff]
        %v1148 = vld [vmem:[#allocation2 + $0x2d0] sm:$0xff]
        %v1149 = vld [vmem:[#allocation2 + $0x2d8] sm:$0xff]
        %v1150 = vld [vmem:[#allocation2 + $0x2e0] sm:$0xff]
        %v1151 = vld [vmem:[#allocation2 + $0x2e8] sm:$0xff]
        %v1152 = vld [vmem:[#allocation2 + $0x2f0] sm:$0xff]
        %v1153 = vld [vmem:[#allocation2 + $0x2f8] sm:$0xff]
        %v1154 = vld [vmem:[#allocation2 + $0x300] sm:$0xff]
        %v1155 = vld [vmem:[#allocation2 + $0x308] sm:$0xff]
        %v1156 = vld [vmem:[#allocation2 + $0x310] sm:$0xff]
        %v1157 = vld [vmem:[#allocation2 + $0x318] sm:$0xff]
        %v1158 = vld [vmem:[#allocation2 + $0x320] sm:$0xff]
        %v1159 = vld [vmem:[#allocation2 + $0x328] sm:$0xff]
        %v1160 = vld [vmem:[#allocation2 + $0x330] sm:$0xff]
        %v1161 = vld [vmem:[#allocation2 + $0x338] sm:$0xff]
        %v1162 = vld [vmem:[#allocation2 + $0x340] sm:$0xff]
        %v1163 = vld [vmem:[#allocation2 + $0x348] sm:$0xff]
        %v1164 = vld [vmem:[#allocation2 + $0x350] sm:$0xff]
        %v1165 = vld [vmem:[#allocation2 + $0x358] sm:$0xff]
        %v1166 = vld [vmem:[#allocation2 + $0x360] sm:$0xff]
        %v1167 = vld [vmem:[#allocation2 + $0x368] sm:$0xff]
        %v1168 = vld [vmem:[#allocation2 + $0x370] sm:$0xff]
        %v1169 = vld [vmem:[#allocation2 + $0x378] sm:$0xff]
        %v1170 = vld [vmem:[#allocation2 + $0x380] sm:$0xff]
        %v1171 = vld [vmem:[#allocation2 + $0x388] sm:$0xff]
        %v1172 = vld [vmem:[#allocation2 + $0x390] sm:$0xff]
        %v1173 = vld [vmem:[#allocation2 + $0x398] sm:$0xff]
        %v1174 = vld [vmem:[#allocation2 + $0x3a0] sm:$0xff]
        %v1175 = vld [vmem:[#allocation2 + $0x3a8] sm:$0xff]
        %v1176 = vld [vmem:[#allocation2 + $0x3b0] sm:$0xff]
        %v1177 = vld [vmem:[#allocation2 + $0x3b8] sm:$0xff]
        %v1178 = vld [vmem:[#allocation2 + $0x3c0] sm:$0xff]
        %v1179 = vld [vmem:[#allocation2 + $0x3c8] sm:$0xff]
        %v1180 = vld [vmem:[#allocation2 + $0x3d0] sm:$0xff]
        %v1181 = vld [vmem:[#allocation2 + $0x3d8] sm:$0xff]
        %v1182 = vld [vmem:[#allocation2 + $0x3e0] sm:$0xff]
        %v1183 = vld [vmem:[#allocation2 + $0x3e8] sm:$0xff]
        %v1184 = vld [vmem:[#allocation2 + $0x3f0] sm:$0xff]
        %v1185 = vld [vmem:[#allocation2 + $0x3f8] sm:$0xff]
        %v1186 = vld [vmem:[#allocation2 + $0x400] sm:$0xff]
        %v1187 = vld [vmem:[#allocation2 + $0x408] sm:$0xff]
        %v1188 = vld [vmem:[#allocation2 + $0x410] sm:$0xff]
        %v1189 = vld [vmem:[#allocation2 + $0x418] sm:$0xff]
        %v1190 = vld [vmem:[#allocation2 + $0x420] sm:$0xff]
        %v1191 = vld [vmem:[#allocation2 + $0x428] sm:$0xff]
        %v1192 = vld [vmem:[#allocation2 + $0x430] sm:$0xff]
        %v1193 = vld [vmem:[#allocation2 + $0x438] sm:$0xff]
        %v1194 = vld [vmem:[#allocation2 + $0x440] sm:$0xff]
        %v1195 = vld [vmem:[#allocation2 + $0x448] sm:$0xff]
        %v1196 = vld [vmem:[#allocation2 + $0x450] sm:$0xff]
        %v1197 = vld [vmem:[#allocation2 + $0x458] sm:$0xff]
        %v1198 = vld [vmem:[#allocation2 + $0x460] sm:$0xff]
        %v1199 = vld [vmem:[#allocation2 + $0x468] sm:$0xff]
        %v1200 = vld [vmem:[#allocation2 + $0x470] sm:$0xff]
        %v1201 = vld [vmem:[#allocation2 + $0x478] sm:$0xff]
        %v1202 = vld [vmem:[#allocation2 + $0x480] sm:$0xff]
        %v1203 = vld [vmem:[#allocation2 + $0x488] sm:$0xff]
        %v1204 = vld [vmem:[#allocation2 + $0x490] sm:$0xff]
        %v1205 = vld [vmem:[#allocation2 + $0x498] sm:$0xff]
        %v1206 = vld [vmem:[#allocation2 + $0x4a0] sm:$0xff]
        %v1207 = vld [vmem:[#allocation2 + $0x4a8] sm:$0xff]
        %v1208 = vld [vmem:[#allocation2 + $0x4b0] sm:$0xff]
        %v1209 = vld [vmem:[#allocation2 + $0x4b8] sm:$0xff]
        %v1210 = vld [vmem:[#allocation2 + $0x4c0] sm:$0xff]
        %v1211 = vld [vmem:[#allocation2 + $0x4c8] sm:$0xff]
        %v1212 = vld [vmem:[#allocation2 + $0x4d0] sm:$0xff]
        %v1213 = vld [vmem:[#allocation2 + $0x4d8] sm:$0xff]
        %v1214 = vld [vmem:[#allocation2 + $0x4e0] sm:$0xff]
        %v1215 = vld [vmem:[#allocation2 + $0x4e8] sm:$0xff]
        %v1216 = vld [vmem:[#allocation2 + $0x4f0] sm:$0xff]
        %v1217 = vld [vmem:[#allocation2 + $0x4f8] sm:$0xff]
        %v1218 = vld [vmem:[#allocation2 + $0x500] sm:$0xff]
        %v1219 = vld [vmem:[#allocation2 + $0x508] sm:$0xff]
        %v1220 = vld [vmem:[#allocation2 + $0x510] sm:$0xff]
        %v1221 = vld [vmem:[#allocation2 + $0x518] sm:$0xff]
        %v1222 = vld [vmem:[#allocation2 + $0x520] sm:$0xff]
        %v1223 = vld [vmem:[#allocation2 + $0x528] sm:$0xff]
        %v1224 = vld [vmem:[#allocation2 + $0x530] sm:$0xff]
        %v1225 = vld [vmem:[#allocation2 + $0x538] sm:$0xff]
        %v1226 = vld [vmem:[#allocation2 + $0x540] sm:$0xff]
        %v1227 = vld [vmem:[#allocation2 + $0x548] sm:$0xff]
        %v1228 = vld [vmem:[#allocation2 + $0x550] sm:$0xff]
        %v1229 = vld [vmem:[#allocation2 + $0x558] sm:$0xff]
        %v1230 = vld [vmem:[#allocation2 + $0x560] sm:$0xff]
        %v1231 = vld [vmem:[#allocation2 + $0x568] sm:$0xff]
        %v1232 = vld [vmem:[#allocation2 + $0x570] sm:$0xff]
        %v1233 = vld [vmem:[#allocation2 + $0x578] sm:$0xff]
        %v1234 = vld [vmem:[#allocation2 + $0x580] sm:$0xff]
        %v1235 = vld [vmem:[#allocation2 + $0x588] sm:$0xff]
        %v1236 = vld [vmem:[#allocation2 + $0x590] sm:$0xff]
        %v1237 = vld [vmem:[#allocation2 + $0x598] sm:$0xff]
        %v1238 = vld [vmem:[#allocation2 + $0x5a0] sm:$0xff]
        %v1239 = vld [vmem:[#allocation2 + $0x5a8] sm:$0xff]
        %v1240 = vld [vmem:[#allocation2 + $0x5b0] sm:$0xff]
        %v1241 = vld [vmem:[#allocation2 + $0x5b8] sm:$0xff]
        %v1242 = vld [vmem:[#allocation2 + $0x5c0] sm:$0xff]
        %v1243 = vld [vmem:[#allocation2 + $0x5c8] sm:$0xff]
        %v1244 = vld [vmem:[#allocation2 + $0x5d0] sm:$0xff]
        %v1245 = vld [vmem:[#allocation2 + $0x5d8] sm:$0xff]
        %v1246 = vld [vmem:[#allocation2 + $0x5e0] sm:$0xff]
        %v1247 = vld [vmem:[#allocation2 + $0x5e8] sm:$0xff]
        %v1248 = vld [vmem:[#allocation2 + $0x5f0] sm:$0xff]
        %v1249 = vld [vmem:[#allocation2 + $0x5f8] sm:$0xff]
        %v1250 = vld [vmem:[#allocation2 + $0x600] sm:$0xff]
        %v1251 = vld [vmem:[#allocation2 + $0x608] sm:$0xff]
        %v1252 = vld [vmem:[#allocation2 + $0x610] sm:$0xff]
        %v1253 = vld [vmem:[#allocation2 + $0x618] sm:$0xff]
        %v1254 = vld [vmem:[#allocation2 + $0x620] sm:$0xff]
        %v1255 = vld [vmem:[#allocation2 + $0x628] sm:$0xff]
        %v1256 = vld [vmem:[#allocation2 + $0x630] sm:$0xff]
        %v1257 = vld [vmem:[#allocation2 + $0x638] sm:$0xff]
        %v1258 = vld [vmem:[#allocation2 + $0x640] sm:$0xff]
        %v1259 = vld [vmem:[#allocation2 + $0x648] sm:$0xff]
        %v1260 = vld [vmem:[#allocation2 + $0x650] sm:$0xff]
        %v1261 = vld [vmem:[#allocation2 + $0x658] sm:$0xff]
        %v1262 = vld [vmem:[#allocation2 + $0x660] sm:$0xff]
        %v1263 = vld [vmem:[#allocation2 + $0x668] sm:$0xff]
        %v1264 = vld [vmem:[#allocation2 + $0x670] sm:$0xff]
        %v1265 = vld [vmem:[#allocation2 + $0x678] sm:$0xff]
        %v1266 = vld [vmem:[#allocation2 + $0x680] sm:$0xff]
        %v1267 = vld [vmem:[#allocation2 + $0x688] sm:$0xff]
        %v1268 = vld [vmem:[#allocation2 + $0x690] sm:$0xff]
        %v1269 = vld [vmem:[#allocation2 + $0x698] sm:$0xff]
        %v1270 = vld [vmem:[#allocation2 + $0x6a0] sm:$0xff]
        %v1271 = vld [vmem:[#allocation2 + $0x6a8] sm:$0xff]
        %v1272 = vld [vmem:[#allocation2 + $0x6b0] sm:$0xff]
        %v1273 = vld [vmem:[#allocation2 + $0x6b8] sm:$0xff]
        %v1274 = vld [vmem:[#allocation2 + $0x6c0] sm:$0xff]
        %v1275 = vld [vmem:[#allocation2 + $0x6c8] sm:$0xff]
        %v1276 = vld [vmem:[#allocation2 + $0x6d0] sm:$0xff]
        %v1277 = vld [vmem:[#allocation2 + $0x6d8] sm:$0xff]
        %v1278 = vld [vmem:[#allocation2 + $0x6e0] sm:$0xff]
        %v1279 = vld [vmem:[#allocation2 + $0x6e8] sm:$0xff]
        %v1280 = vld [vmem:[#allocation2 + $0x6f0] sm:$0xff]
        %v1281 = vld [vmem:[#allocation2 + $0x6f8] sm:$0xff]
        %v1282 = vld [vmem:[#allocation2 + $0x700] sm:$0xff]
        %v1283 = vld [vmem:[#allocation2 + $0x708] sm:$0xff]
        %v1284 = vld [vmem:[#allocation2 + $0x710] sm:$0xff]
        %v1285 = vld [vmem:[#allocation2 + $0x718] sm:$0xff]
        %v1286 = vld [vmem:[#allocation2 + $0x720] sm:$0xff]
        %v1287 = vld [vmem:[#allocation2 + $0x728] sm:$0xff]
        %v1288 = vld [vmem:[#allocation2 + $0x730] sm:$0xff]
        %v1289 = vld [vmem:[#allocation2 + $0x738] sm:$0xff]
        %v1290 = vld [vmem:[#allocation2 + $0x740] sm:$0xff]
        %v1291 = vld [vmem:[#allocation2 + $0x748] sm:$0xff]
        %v1292 = vld [vmem:[#allocation2 + $0x750] sm:$0xff]
        %v1293 = vld [vmem:[#allocation2 + $0x758] sm:$0xff]
        %v1294 = vld [vmem:[#allocation2 + $0x760] sm:$0xff]
        %v1295 = vld [vmem:[#allocation2 + $0x768] sm:$0xff]
        %v1296 = vld [vmem:[#allocation2 + $0x770] sm:$0xff]
        %v1297 = vld [vmem:[#allocation2 + $0x778] sm:$0xff]
        %v1298 = vld [vmem:[#allocation2 + $0x780] sm:$0xff]
        %v1299 = vld [vmem:[#allocation2 + $0x788] sm:$0xff]
        %v1300 = vld [vmem:[#allocation2 + $0x790] sm:$0xff]
        %v1301 = vld [vmem:[#allocation2 + $0x798] sm:$0xff]
        %v1302 = vld [vmem:[#allocation2 + $0x7a0] sm:$0xff]
        %v1303 = vld [vmem:[#allocation2 + $0x7a8] sm:$0xff]
        %v1304 = vld [vmem:[#allocation2 + $0x7b0] sm:$0xff]
        %v1305 = vld [vmem:[#allocation2 + $0x7b8] sm:$0xff]
        %v1306 = vld [vmem:[#allocation2 + $0x7c0] sm:$0xff]
        %v1307 = vld [vmem:[#allocation2 + $0x7c8] sm:$0xff]
        %v1308 = vld [vmem:[#allocation2 + $0x7d0] sm:$0xff]
        %v1309 = vld [vmem:[#allocation2 + $0x7d8] sm:$0xff]
        %v1310 = vld [vmem:[#allocation2 + $0x7e0] sm:$0xff]
        %v1311 = vld [vmem:[#allocation2 + $0x7e8] sm:$0xff]
        %v1312 = vld [vmem:[#allocation2 + $0x7f0] sm:$0xff]
        %v1313 = vld [vmem:[#allocation2 + $0x7f8] sm:$0xff]
        %v1314 = vld [vmem:[#allocation2 + $0x800] sm:$0xff]
        %v1315 = vld [vmem:[#allocation2 + $0x808] sm:$0xff]
        %v1316 = vld [vmem:[#allocation2 + $0x810] sm:$0xff]
        %v1317 = vld [vmem:[#allocation2 + $0x818] sm:$0xff]
        %v1318 = vld [vmem:[#allocation2 + $0x820] sm:$0xff]
        %v1319 = vld [vmem:[#allocation2 + $0x828] sm:$0xff]
        %v1320 = vld [vmem:[#allocation2 + $0x830] sm:$0xff]
        %v1321 = vld [vmem:[#allocation2 + $0x838] sm:$0xff]
        %v1322 = vld [vmem:[#allocation2 + $0x840] sm:$0xff]
        %v1323 = vld [vmem:[#allocation2 + $0x848] sm:$0xff]
        %v1324 = vld [vmem:[#allocation2 + $0x850] sm:$0xff]
        %v1325 = vld [vmem:[#allocation2 + $0x858] sm:$0xff]
        %v1326 = vld [vmem:[#allocation2 + $0x860] sm:$0xff]
        %v1327 = vld [vmem:[#allocation2 + $0x868] sm:$0xff]
        %v1328 = vld [vmem:[#allocation2 + $0x870] sm:$0xff]
        %v1329 = vld [vmem:[#allocation2 + $0x878] sm:$0xff]
        %v1330 = vld [vmem:[#allocation2 + $0x880] sm:$0xff]
        %v1331 = vld [vmem:[#allocation2 + $0x888] sm:$0xff]
        %v1332 = vld [vmem:[#allocation2 + $0x890] sm:$0xff]
        %v1333 = vld [vmem:[#allocation2 + $0x898] sm:$0xff]
        %v1334 = vld [vmem:[#allocation2 + $0x8a0] sm:$0xff]
        %v1335 = vld [vmem:[#allocation2 + $0x8a8] sm:$0xff]
        %v1336 = vld [vmem:[#allocation2 + $0x8b0] sm:$0xff]
        %v1337 = vld [vmem:[#allocation2 + $0x8b8] sm:$0xff]
        %v1338 = vld [vmem:[#allocation2 + $0x8c0] sm:$0xff]
        %v1339 = vld [vmem:[#allocation2 + $0x8c8] sm:$0xff]
        %v1340 = vld [vmem:[#allocation2 + $0x8d0] sm:$0xff]
        %v1341 = vld [vmem:[#allocation2 + $0x8d8] sm:$0xff]
        %v1342 = vld [vmem:[#allocation2 + $0x8e0] sm:$0xff]
        %v1343 = vld [vmem:[#allocation2 + $0x8e8] sm:$0xff]
        %v1344 = vld [vmem:[#allocation2 + $0x8f0] sm:$0xff]
        %v1345 = vld [vmem:[#allocation2 + $0x8f8] sm:$0xff]
        %v1346 = vpack.c.bf16 %v1067, %v1058
        %v1347 = vpack.c.bf16 %v1068, %v1059
        %v1348 = vpack.c.bf16 %v1069, %v1060
        %v1349 = vpack.c.bf16 %v1070, %v1061
        %v1350 = vpack.c.bf16 %v1071, %v1062
        %v1351 = vpack.c.bf16 %v1072, %v1063
        %v1352 = vpack.c.bf16 %v1073, %v1064
        %v1353 = vpack.c.bf16 %v1074, %v1065
        %v1354 = vpack.c.bf16 %v1075, %v1066
        %v1355 = vpack.c.bf16 %v1085, %v1076
        %v1356 = vpack.c.bf16 %v1086, %v1077
        %v1357 = vpack.c.bf16 %v1087, %v1078
        %v1358 = vpack.c.bf16 %v1088, %v1079
        %v1359 = vpack.c.bf16 %v1089, %v1080
        %v1360 = vpack.c.bf16 %v1090, %v1081
        %v1361 = vpack.c.bf16 %v1091, %v1082
        %v1362 = vpack.c.bf16 %v1092, %v1083
        %v1363 = vpack.c.bf16 %v1093, %v1084
        %v1364 = vpack.c.bf16 %v1103, %v1094
        %v1365 = vpack.c.bf16 %v1104, %v1095
        %v1366 = vpack.c.bf16 %v1105, %v1096
        %v1367 = vpack.c.bf16 %v1106, %v1097
        %v1368 = vpack.c.bf16 %v1107, %v1098
        %v1369 = vpack.c.bf16 %v1108, %v1099
        %v1370 = vpack.c.bf16 %v1109, %v1100
        %v1371 = vpack.c.bf16 %v1110, %v1101
        %v1372 = vpack.c.bf16 %v1111, %v1102
        %v1373 = vpack.c.bf16 %v1121, %v1112
        %v1374 = vpack.c.bf16 %v1122, %v1113
        %v1375 = vpack.c.bf16 %v1123, %v1114
        %v1376 = vpack.c.bf16 %v1124, %v1115
        %v1377 = vpack.c.bf16 %v1125, %v1116
        %v1378 = vpack.c.bf16 %v1126, %v1117
        %v1379 = vpack.c.bf16 %v1127, %v1118
        %v1380 = vpack.c.bf16 %v1128, %v1119
        %v1381 = vpack.c.bf16 %v1129, %v1120
        %v1382 = vpack.c.bf16 %v1139, %v1130
        %v1383 = vpack.c.bf16 %v1140, %v1131
        %v1384 = vpack.c.bf16 %v1141, %v1132
        %v1385 = vpack.c.bf16 %v1142, %v1133
        %v1386 = vpack.c.bf16 %v1143, %v1134
        %v1387 = vpack.c.bf16 %v1144, %v1135
        %v1388 = vpack.c.bf16 %v1145, %v1136
        %v1389 = vpack.c.bf16 %v1146, %v1137
        %v1390 = vpack.c.bf16 %v1147, %v1138
        %v1391 = vpack.c.bf16 %v1157, %v1148
        %v1392 = vpack.c.bf16 %v1158, %v1149
        %v1393 = vpack.c.bf16 %v1159, %v1150
        %v1394 = vpack.c.bf16 %v1160, %v1151
        %v1395 = vpack.c.bf16 %v1161, %v1152
        %v1396 = vpack.c.bf16 %v1162, %v1153
        %v1397 = vpack.c.bf16 %v1163, %v1154
        %v1398 = vpack.c.bf16 %v1164, %v1155
        %v1399 = vpack.c.bf16 %v1165, %v1156
        %v1400 = vpack.c.bf16 %v1175, %v1166
        %v1401 = vpack.c.bf16 %v1176, %v1167
        %v1402 = vpack.c.bf16 %v1177, %v1168
        %v1403 = vpack.c.bf16 %v1178, %v1169
        %v1404 = vpack.c.bf16 %v1179, %v1170
        %v1405 = vpack.c.bf16 %v1180, %v1171
        %v1406 = vpack.c.bf16 %v1181, %v1172
        %v1407 = vpack.c.bf16 %v1182, %v1173
        %v1408 = vpack.c.bf16 %v1183, %v1174
        %v1409 = vpack.c.bf16 %v1193, %v1184
        %v1410 = vpack.c.bf16 %v1194, %v1185
        %v1411 = vpack.c.bf16 %v1195, %v1186
        %v1412 = vpack.c.bf16 %v1196, %v1187
        %v1413 = vpack.c.bf16 %v1197, %v1188
        %v1414 = vpack.c.bf16 %v1198, %v1189
        %v1415 = vpack.c.bf16 %v1199, %v1190
        %v1416 = vpack.c.bf16 %v1200, %v1191
        %v1417 = vpack.c.bf16 %v1201, %v1192
        %v1418 = vpack.c.bf16 %v1211, %v1202
        %v1419 = vpack.c.bf16 %v1212, %v1203
        %v1420 = vpack.c.bf16 %v1213, %v1204
        %v1421 = vpack.c.bf16 %v1214, %v1205
        %v1422 = vpack.c.bf16 %v1215, %v1206
        %v1423 = vpack.c.bf16 %v1216, %v1207
        %v1424 = vpack.c.bf16 %v1217, %v1208
        %v1425 = vpack.c.bf16 %v1218, %v1209
        %v1426 = vpack.c.bf16 %v1219, %v1210
        %v1427 = vpack.c.bf16 %v1229, %v1220
        %v1428 = vpack.c.bf16 %v1230, %v1221
        %v1429 = vpack.c.bf16 %v1231, %v1222
        %v1430 = vpack.c.bf16 %v1232, %v1223
        %v1431 = vpack.c.bf16 %v1233, %v1224
        %v1432 = vpack.c.bf16 %v1234, %v1225
        %v1433 = vpack.c.bf16 %v1235, %v1226
        %v1434 = vpack.c.bf16 %v1236, %v1227
        %v1435 = vpack.c.bf16 %v1237, %v1228
        %v1436 = vpack.c.bf16 %v1247, %v1238
        %v1437 = vpack.c.bf16 %v1248, %v1239
        %v1438 = vpack.c.bf16 %v1249, %v1240
        %v1439 = vpack.c.bf16 %v1250, %v1241
        %v1440 = vpack.c.bf16 %v1251, %v1242
        %v1441 = vpack.c.bf16 %v1252, %v1243
        %v1442 = vpack.c.bf16 %v1253, %v1244
        %v1443 = vpack.c.bf16 %v1254, %v1245
        %v1444 = vpack.c.bf16 %v1255, %v1246
        %v1445 = vpack.c.bf16 %v1265, %v1256
        %v1446 = vpack.c.bf16 %v1266, %v1257
        %v1447 = vpack.c.bf16 %v1267, %v1258
        %v1448 = vpack.c.bf16 %v1268, %v1259
        %v1449 = vpack.c.bf16 %v1269, %v1260
        %v1450 = vpack.c.bf16 %v1270, %v1261
        %v1451 = vpack.c.bf16 %v1271, %v1262
        %v1452 = vpack.c.bf16 %v1272, %v1263
        %v1453 = vpack.c.bf16 %v1273, %v1264
        %v1454 = vpack.c.bf16 %v1283, %v1274
        %v1455 = vpack.c.bf16 %v1284, %v1275
        %v1456 = vpack.c.bf16 %v1285, %v1276
        %v1457 = vpack.c.bf16 %v1286, %v1277
        %v1458 = vpack.c.bf16 %v1287, %v1278
        %v1459 = vpack.c.bf16 %v1288, %v1279
        %v1460 = vpack.c.bf16 %v1289, %v1280
        %v1461 = vpack.c.bf16 %v1290, %v1281
        %v1462 = vpack.c.bf16 %v1291, %v1282
        %v1463 = vpack.c.bf16 %v1301, %v1292
        %v1464 = vpack.c.bf16 %v1302, %v1293
        %v1465 = vpack.c.bf16 %v1303, %v1294
        %v1466 = vpack.c.bf16 %v1304, %v1295
        %v1467 = vpack.c.bf16 %v1305, %v1296
        %v1468 = vpack.c.bf16 %v1306, %v1297
        %v1469 = vpack.c.bf16 %v1307, %v1298
        %v1470 = vpack.c.bf16 %v1308, %v1299
        %v1471 = vpack.c.bf16 %v1309, %v1300
        %v1472 = vpack.c.bf16 %v1319, %v1310
        %v1473 = vpack.c.bf16 %v1320, %v1311
        %v1474 = vpack.c.bf16 %v1321, %v1312
        %v1475 = vpack.c.bf16 %v1322, %v1313
        %v1476 = vpack.c.bf16 %v1323, %v1314
        %v1477 = vpack.c.bf16 %v1324, %v1315
        %v1478 = vpack.c.bf16 %v1325, %v1316
        %v1479 = vpack.c.bf16 %v1326, %v1317
        %v1480 = vpack.c.bf16 %v1327, %v1318
        %v1481 = vpack.c.bf16 %v1337, %v1328
        %v1482 = vpack.c.bf16 %v1338, %v1329
        %v1483 = vpack.c.bf16 %v1339, %v1330
        %v1484 = vpack.c.bf16 %v1340, %v1331
        %v1485 = vpack.c.bf16 %v1341, %v1332
        %v1486 = vpack.c.bf16 %v1342, %v1333
        %v1487 = vpack.c.bf16 %v1343, %v1334
        %v1488 = vpack.c.bf16 %v1344, %v1335
        %v1489 = vpack.c.bf16 %v1345, %v1336
        %v1490 = vld [vmem:[#allocation6] sm:$0xf]
        %v1491 = vld [vmem:[#allocation6 + $0x4] sm:$0xf]
        %v1492 = vld [vmem:[#allocation6 + $0x8] sm:$0xf]
        %v1493 = vld [vmem:[#allocation6 + $0xc] sm:$0xf]
        %v1494 = vld [vmem:[#allocation6 + $0x10] sm:$0xf]
        %v1495 = vld [vmem:[#allocation6 + $0x14] sm:$0xf]
        %v1496 = vld [vmem:[#allocation6 + $0x18] sm:$0xf]
        %v1497 = vld [vmem:[#allocation6 + $0x1c] sm:$0xf]
        %v1498 = vld [vmem:[#allocation6 + $0x20] sm:$0xf]
        %v1499 = vld [vmem:[#allocation6 + $0x24] sm:$0xf]
        %v1500 = vld [vmem:[#allocation6 + $0x28] sm:$0xf]
        %v1501 = vld [vmem:[#allocation6 + $0x2c] sm:$0xf]
        %v1502 = vld [vmem:[#allocation6 + $0x30] sm:$0xf]
        %v1503 = vld [vmem:[#allocation6 + $0x34] sm:$0xf]
        %v1504 = vld [vmem:[#allocation6 + $0x38] sm:$0xf]
        %v1505 = vld [vmem:[#allocation6 + $0x3c] sm:$0xf]
        %v1506 = vld [vmem:[#allocation6 + $0x40] sm:$0xf]
        %v1507 = vld [vmem:[#allocation6 + $0x44] sm:$0xf]
        %v1508 = vld [vmem:[#allocation6 + $0x48] sm:$0xf]
        %v1509 = vld [vmem:[#allocation6 + $0x4c] sm:$0xf]
        %v1510 = vld [vmem:[#allocation6 + $0x50] sm:$0xf]
        %v1511 = vld [vmem:[#allocation6 + $0x54] sm:$0xf]
        %v1512 = vld [vmem:[#allocation6 + $0x58] sm:$0xf]
        %v1513 = vld [vmem:[#allocation6 + $0x5c] sm:$0xf]
        %v1514 = vld [vmem:[#allocation6 + $0x60] sm:$0xf]
        %v1515 = vld [vmem:[#allocation6 + $0x64] sm:$0xf]
        %v1516 = vld [vmem:[#allocation6 + $0x68] sm:$0xf]
        %v1517 = vld [vmem:[#allocation6 + $0x6c] sm:$0xf]
        %v1518 = vld [vmem:[#allocation6 + $0x70] sm:$0xf]
        %v1519 = vld [vmem:[#allocation6 + $0x74] sm:$0xf]
        %v1520 = vld [vmem:[#allocation6 + $0x78] sm:$0xf]
        %v1521 = vld [vmem:[#allocation6 + $0x7c] sm:$0xf]
        %v1522 = vld [vmem:[#allocation6 + $0x80] sm:$0xf]
        %v1523 = vld [vmem:[#allocation6 + $0x84] sm:$0xf]
        %v1524 = vld [vmem:[#allocation6 + $0x88] sm:$0xf]
        %v1525 = vld [vmem:[#allocation6 + $0x8c] sm:$0xf]
        %v1526 = vld [vmem:[#allocation6 + $0x90] sm:$0xf]
        %v1527 = vld [vmem:[#allocation6 + $0x94] sm:$0xf]
        %v1528 = vld [vmem:[#allocation6 + $0x98] sm:$0xf]
        %v1529 = vld [vmem:[#allocation6 + $0x9c] sm:$0xf]
        %v1530 = vld [vmem:[#allocation6 + $0xa0] sm:$0xf]
        %v1531 = vld [vmem:[#allocation6 + $0xa4] sm:$0xf]
        %v1532 = vld [vmem:[#allocation6 + $0xa8] sm:$0xf]
        %v1533 = vld [vmem:[#allocation6 + $0xac] sm:$0xf]
        %v1534 = vld [vmem:[#allocation6 + $0xb0] sm:$0xf]
        %v1535 = vld [vmem:[#allocation6 + $0xb4] sm:$0xf]
        %v1536 = vld [vmem:[#allocation6 + $0xb8] sm:$0xf]
        %v1537 = vld [vmem:[#allocation6 + $0xbc] sm:$0xf]
        %v1538 = vld [vmem:[#allocation6 + $0xc0] sm:$0xf]
        %v1539 = vld [vmem:[#allocation6 + $0xc4] sm:$0xf]
        %v1540 = vld [vmem:[#allocation6 + $0xc8] sm:$0xf]
        %v1541 = vld [vmem:[#allocation6 + $0xcc] sm:$0xf]
        %v1542 = vld [vmem:[#allocation6 + $0xd0] sm:$0xf]
        %v1543 = vld [vmem:[#allocation6 + $0xd4] sm:$0xf]
        %v1544 = vld [vmem:[#allocation6 + $0xd8] sm:$0xf]
        %v1545 = vld [vmem:[#allocation6 + $0xdc] sm:$0xf]
        %v1546 = vld [vmem:[#allocation6 + $0xe0] sm:$0xf]
        %v1547 = vld [vmem:[#allocation6 + $0xe4] sm:$0xf]
        %v1548 = vld [vmem:[#allocation6 + $0xe8] sm:$0xf]
        %v1549 = vld [vmem:[#allocation6 + $0xec] sm:$0xf]
        %v1550 = vld [vmem:[#allocation6 + $0xf0] sm:$0xf]
        %v1551 = vld [vmem:[#allocation6 + $0xf4] sm:$0xf]
        %v1552 = vld [vmem:[#allocation6 + $0xf8] sm:$0xf]
        %v1553 = vld [vmem:[#allocation6 + $0xfc] sm:$0xf]
        %v1554 = vld [vmem:[#allocation6 + $0x100] sm:$0xf]
        %v1555 = vld [vmem:[#allocation6 + $0x104] sm:$0xf]
        %v1556 = vld [vmem:[#allocation6 + $0x108] sm:$0xf]
        %v1557 = vld [vmem:[#allocation6 + $0x10c] sm:$0xf]
        %v1558 = vld [vmem:[#allocation6 + $0x110] sm:$0xf]
        %v1559 = vld [vmem:[#allocation6 + $0x114] sm:$0xf]
        %v1560 = vld [vmem:[#allocation6 + $0x118] sm:$0xf]
        %v1561 = vld [vmem:[#allocation6 + $0x11c] sm:$0xf]
        %v1562 = vld [vmem:[#allocation6 + $0x120] sm:$0xf]
        %v1563 = vld [vmem:[#allocation6 + $0x124] sm:$0xf]
        %v1564 = vld [vmem:[#allocation6 + $0x128] sm:$0xf]
        %v1565 = vld [vmem:[#allocation6 + $0x12c] sm:$0xf]
        %v1566 = vld [vmem:[#allocation6 + $0x130] sm:$0xf]
        %v1567 = vld [vmem:[#allocation6 + $0x134] sm:$0xf]
        %v1568 = vld [vmem:[#allocation6 + $0x138] sm:$0xf]
        %v1569 = vld [vmem:[#allocation6 + $0x13c] sm:$0xf]
        %v1570 = vld [vmem:[#allocation6 + $0x140] sm:$0xf]
        %v1571 = vld [vmem:[#allocation6 + $0x144] sm:$0xf]
        %v1572 = vld [vmem:[#allocation6 + $0x148] sm:$0xf]
        %v1573 = vld [vmem:[#allocation6 + $0x14c] sm:$0xf]
        %v1574 = vld [vmem:[#allocation6 + $0x150] sm:$0xf]
        %v1575 = vld [vmem:[#allocation6 + $0x154] sm:$0xf]
        %v1576 = vld [vmem:[#allocation6 + $0x158] sm:$0xf]
        %v1577 = vld [vmem:[#allocation6 + $0x15c] sm:$0xf]
        %v1578 = vld [vmem:[#allocation6 + $0x160] sm:$0xf]
        %v1579 = vld [vmem:[#allocation6 + $0x164] sm:$0xf]
        %v1580 = vld [vmem:[#allocation6 + $0x168] sm:$0xf]
        %v1581 = vld [vmem:[#allocation6 + $0x16c] sm:$0xf]
        %v1582 = vld [vmem:[#allocation6 + $0x170] sm:$0xf]
        %v1583 = vld [vmem:[#allocation6 + $0x174] sm:$0xf]
        %v1584 = vld [vmem:[#allocation6 + $0x178] sm:$0xf]
        %v1585 = vld [vmem:[#allocation6 + $0x17c] sm:$0xf]
        %v1586 = vld [vmem:[#allocation6 + $0x180] sm:$0xf]
        %v1587 = vld [vmem:[#allocation6 + $0x184] sm:$0xf]
        %v1588 = vld [vmem:[#allocation6 + $0x188] sm:$0xf]
        %v1589 = vld [vmem:[#allocation6 + $0x18c] sm:$0xf]
        %v1590 = vld [vmem:[#allocation6 + $0x190] sm:$0xf]
        %v1591 = vld [vmem:[#allocation6 + $0x194] sm:$0xf]
        %v1592 = vld [vmem:[#allocation6 + $0x198] sm:$0xf]
        %v1593 = vld [vmem:[#allocation6 + $0x19c] sm:$0xf]
        %v1594 = vld [vmem:[#allocation6 + $0x1a0] sm:$0xf]
        %v1595 = vld [vmem:[#allocation6 + $0x1a4] sm:$0xf]
        %v1596 = vld [vmem:[#allocation6 + $0x1a8] sm:$0xf]
        %v1597 = vld [vmem:[#allocation6 + $0x1ac] sm:$0xf]
        %v1598 = vld [vmem:[#allocation6 + $0x1b0] sm:$0xf]
        %v1599 = vld [vmem:[#allocation6 + $0x1b4] sm:$0xf]
        %v1600 = vld [vmem:[#allocation6 + $0x1b8] sm:$0xf]
        %v1601 = vld [vmem:[#allocation6 + $0x1bc] sm:$0xf]
        %v1602 = vld [vmem:[#allocation6 + $0x1c0] sm:$0xf]
        %v1603 = vld [vmem:[#allocation6 + $0x1c4] sm:$0xf]
        %v1604 = vld [vmem:[#allocation6 + $0x1c8] sm:$0xf]
        %v1605 = vld [vmem:[#allocation6 + $0x1cc] sm:$0xf]
        %v1606 = vld [vmem:[#allocation6 + $0x1d0] sm:$0xf]
        %v1607 = vld [vmem:[#allocation6 + $0x1d4] sm:$0xf]
        %v1608 = vld [vmem:[#allocation6 + $0x1d8] sm:$0xf]
        %v1609 = vld [vmem:[#allocation6 + $0x1dc] sm:$0xf]
        %v1610 = vld [vmem:[#allocation6 + $0x1e0] sm:$0xf]
        %v1611 = vld [vmem:[#allocation6 + $0x1e4] sm:$0xf]
        %v1612 = vld [vmem:[#allocation6 + $0x1e8] sm:$0xf]
        %v1613 = vld [vmem:[#allocation6 + $0x1ec] sm:$0xf]
        %v1614 = vld [vmem:[#allocation6 + $0x1f0] sm:$0xf]
        %v1615 = vld [vmem:[#allocation6 + $0x1f4] sm:$0xf]
        %v1616 = vld [vmem:[#allocation6 + $0x1f8] sm:$0xf]
        %v1617 = vld [vmem:[#allocation6 + $0x1fc] sm:$0xf]
        %v1618 = vld [vmem:[#allocation6 + $0x200] sm:$0xf]
        %v1619 = vld [vmem:[#allocation6 + $0x204] sm:$0xf]
        %v1620 = vld [vmem:[#allocation6 + $0x208] sm:$0xf]
        %v1621 = vld [vmem:[#allocation6 + $0x20c] sm:$0xf]
        %v1622 = vld [vmem:[#allocation6 + $0x210] sm:$0xf]
        %v1623 = vld [vmem:[#allocation6 + $0x214] sm:$0xf]
        %v1624 = vld [vmem:[#allocation6 + $0x218] sm:$0xf]
        %v1625 = vld [vmem:[#allocation6 + $0x21c] sm:$0xf]
        %v1626 = vld [vmem:[#allocation6 + $0x220] sm:$0xf]
        %v1627 = vld [vmem:[#allocation6 + $0x224] sm:$0xf]
        %v1628 = vld [vmem:[#allocation6 + $0x228] sm:$0xf]
        %v1629 = vld [vmem:[#allocation6 + $0x22c] sm:$0xf]
        %v1630 = vld [vmem:[#allocation6 + $0x230] sm:$0xf]
        %v1631 = vld [vmem:[#allocation6 + $0x234] sm:$0xf]
        %v1632 = vld [vmem:[#allocation6 + $0x238] sm:$0xf]
        %v1633 = vld [vmem:[#allocation6 + $0x23c] sm:$0xf]
        %v1634 = vld [vmem:[%s2] sm:$0x1]
        %v1636 = vlaneseq
        %v1637 = vshrl.u32 %v1636, 7
        %v1638 = vsub.s32 0, %v1637
        %v1639 = vrot.slane %v1634, %v1638
        %v1785 = vunpack.c.l.b16 %v1490
        %v1786 = vunpack.c.l.b16 %v1491
        %v1787 = vunpack.c.l.b16 %v1492
        %v1788 = vunpack.c.l.b16 %v1493
        %v1789 = vunpack.c.l.b16 %v1494
        %v1790 = vunpack.c.l.b16 %v1495
        %v1791 = vunpack.c.l.b16 %v1496
        %v1792 = vunpack.c.l.b16 %v1497
        %v1793 = vunpack.c.l.b16 %v1498
        %v1794 = vunpack.c.l.b16 %v1499
        %v1795 = vunpack.c.l.b16 %v1500
        %v1796 = vunpack.c.l.b16 %v1501
        %v1797 = vunpack.c.l.b16 %v1502
        %v1798 = vunpack.c.l.b16 %v1503
        %v1799 = vunpack.c.l.b16 %v1504
        %v1800 = vunpack.c.l.b16 %v1505
        %v1801 = vunpack.c.l.b16 %v1506
        %v1802 = vunpack.c.l.b16 %v1507
        %v1803 = vunpack.c.l.b16 %v1508
        %v1804 = vunpack.c.l.b16 %v1509
        %v1805 = vunpack.c.l.b16 %v1510
        %v1806 = vunpack.c.l.b16 %v1511
        %v1807 = vunpack.c.l.b16 %v1512
        %v1808 = vunpack.c.l.b16 %v1513
        %v1809 = vunpack.c.l.b16 %v1514
        %v1810 = vunpack.c.l.b16 %v1515
        %v1811 = vunpack.c.l.b16 %v1516
        %v1812 = vunpack.c.l.b16 %v1517
        %v1813 = vunpack.c.l.b16 %v1518
        %v1814 = vunpack.c.l.b16 %v1519
        %v1815 = vunpack.c.l.b16 %v1520
        %v1816 = vunpack.c.l.b16 %v1521
        %v1817 = vunpack.c.l.b16 %v1522
        %v1818 = vunpack.c.l.b16 %v1523
        %v1819 = vunpack.c.l.b16 %v1524
        %v1820 = vunpack.c.l.b16 %v1525
        %v1821 = vunpack.c.l.b16 %v1526
        %v1822 = vunpack.c.l.b16 %v1527
        %v1823 = vunpack.c.l.b16 %v1528
        %v1824 = vunpack.c.l.b16 %v1529
        %v1825 = vunpack.c.l.b16 %v1530
        %v1826 = vunpack.c.l.b16 %v1531
        %v1827 = vunpack.c.l.b16 %v1532
        %v1828 = vunpack.c.l.b16 %v1533
        %v1829 = vunpack.c.l.b16 %v1534
        %v1830 = vunpack.c.l.b16 %v1535
        %v1831 = vunpack.c.l.b16 %v1536
        %v1832 = vunpack.c.l.b16 %v1537
        %v1833 = vunpack.c.l.b16 %v1538
        %v1834 = vunpack.c.l.b16 %v1539
        %v1835 = vunpack.c.l.b16 %v1540
        %v1836 = vunpack.c.l.b16 %v1541
        %v1837 = vunpack.c.l.b16 %v1542
        %v1838 = vunpack.c.l.b16 %v1543
        %v1839 = vunpack.c.l.b16 %v1544
        %v1840 = vunpack.c.l.b16 %v1545
        %v1841 = vunpack.c.l.b16 %v1546
        %v1842 = vunpack.c.l.b16 %v1547
        %v1843 = vunpack.c.l.b16 %v1548
        %v1844 = vunpack.c.l.b16 %v1549
        %v1845 = vunpack.c.l.b16 %v1550
        %v1846 = vunpack.c.l.b16 %v1551
        %v1847 = vunpack.c.l.b16 %v1552
        %v1848 = vunpack.c.l.b16 %v1553
        %v1849 = vunpack.c.l.b16 %v1554
        %v1850 = vunpack.c.l.b16 %v1555
        %v1851 = vunpack.c.l.b16 %v1556
        %v1852 = vunpack.c.l.b16 %v1557
        %v1853 = vunpack.c.l.b16 %v1558
        %v1854 = vunpack.c.l.b16 %v1559
        %v1855 = vunpack.c.l.b16 %v1560
        %v1856 = vunpack.c.l.b16 %v1561
        %v1857 = vunpack.c.l.b16 %v1562
        %v1858 = vunpack.c.l.b16 %v1563
        %v1859 = vunpack.c.l.b16 %v1564
        %v1860 = vunpack.c.l.b16 %v1565
        %v1861 = vunpack.c.l.b16 %v1566
        %v1862 = vunpack.c.l.b16 %v1567
        %v1863 = vunpack.c.l.b16 %v1568
        %v1864 = vunpack.c.l.b16 %v1569
        %v1865 = vunpack.c.l.b16 %v1570
        %v1866 = vunpack.c.l.b16 %v1571
        %v1867 = vunpack.c.l.b16 %v1572
        %v1868 = vunpack.c.l.b16 %v1573
        %v1869 = vunpack.c.l.b16 %v1574
        %v1870 = vunpack.c.l.b16 %v1575
        %v1871 = vunpack.c.l.b16 %v1576
        %v1872 = vunpack.c.l.b16 %v1577
        %v1873 = vunpack.c.l.b16 %v1578
        %v1874 = vunpack.c.l.b16 %v1579
        %v1875 = vunpack.c.l.b16 %v1580
        %v1876 = vunpack.c.l.b16 %v1581
        %v1877 = vunpack.c.l.b16 %v1582
        %v1878 = vunpack.c.l.b16 %v1583
        %v1879 = vunpack.c.l.b16 %v1584
        %v1880 = vunpack.c.l.b16 %v1585
        %v1881 = vunpack.c.l.b16 %v1586
        %v1882 = vunpack.c.l.b16 %v1587
        %v1883 = vunpack.c.l.b16 %v1588
        %v1884 = vunpack.c.l.b16 %v1589
        %v1885 = vunpack.c.l.b16 %v1590
        %v1886 = vunpack.c.l.b16 %v1591
        %v1887 = vunpack.c.l.b16 %v1592
        %v1888 = vunpack.c.l.b16 %v1593
        %v1889 = vunpack.c.l.b16 %v1594
        %v1890 = vunpack.c.l.b16 %v1595
        %v1891 = vunpack.c.l.b16 %v1596
        %v1892 = vunpack.c.l.b16 %v1597
        %v1893 = vunpack.c.l.b16 %v1598
        %v1894 = vunpack.c.l.b16 %v1599
        %v1895 = vunpack.c.l.b16 %v1600
        %v1896 = vunpack.c.l.b16 %v1601
        %v1897 = vunpack.c.l.b16 %v1602
        %v1898 = vunpack.c.l.b16 %v1603
        %v1899 = vunpack.c.l.b16 %v1604
        %v1900 = vunpack.c.l.b16 %v1605
        %v1901 = vunpack.c.l.b16 %v1606
        %v1902 = vunpack.c.l.b16 %v1607
        %v1903 = vunpack.c.l.b16 %v1608
        %v1904 = vunpack.c.l.b16 %v1609
        %v1905 = vunpack.c.l.b16 %v1610
        %v1906 = vunpack.c.l.b16 %v1611
        %v1907 = vunpack.c.l.b16 %v1612
        %v1908 = vunpack.c.l.b16 %v1613
        %v1909 = vunpack.c.l.b16 %v1614
        %v1910 = vunpack.c.l.b16 %v1615
        %v1911 = vunpack.c.l.b16 %v1616
        %v1912 = vunpack.c.l.b16 %v1617
        %v1913 = vunpack.c.l.b16 %v1618
        %v1914 = vunpack.c.l.b16 %v1619
        %v1915 = vunpack.c.l.b16 %v1620
        %v1916 = vunpack.c.l.b16 %v1621
        %v1917 = vunpack.c.l.b16 %v1622
        %v1918 = vunpack.c.l.b16 %v1623
        %v1919 = vunpack.c.l.b16 %v1624
        %v1920 = vunpack.c.l.b16 %v1625
        %v1921 = vunpack.c.l.b16 %v1626
        %v1922 = vunpack.c.l.b16 %v1627
        %v1923 = vunpack.c.l.b16 %v1628
        %v1924 = vunpack.c.l.b16 %v1629
        %v1925 = vunpack.c.l.b16 %v1630
        %v1926 = vunpack.c.l.b16 %v1631
        %v1927 = vunpack.c.l.b16 %v1632
        %v1928 = vunpack.c.l.b16 %v1633
        %v1929 = vpack.c.b16 %v1786, %v1785
        %v1930 = vpack.c.b16 %v1788, %v1787
        %v1931 = vpack.c.b16 %v1790, %v1789
        %v1932 = vpack.c.b16 %v1792, %v1791
        %v1933 = vpack.c.b16 %v1794, %v1793
        %v1934 = vpack.c.b16 %v1796, %v1795
        %v1935 = vpack.c.b16 %v1798, %v1797
        %v1936 = vpack.c.b16 %v1800, %v1799
        %v1937 = vpack.c.b16 %v1802, %v1801
        %v1938 = vpack.c.b16 %v1804, %v1803
        %v1939 = vpack.c.b16 %v1806, %v1805
        %v1940 = vpack.c.b16 %v1808, %v1807
        %v1941 = vpack.c.b16 %v1810, %v1809
        %v1942 = vpack.c.b16 %v1812, %v1811
        %v1943 = vpack.c.b16 %v1814, %v1813
        %v1944 = vpack.c.b16 %v1816, %v1815
        %v1945 = vpack.c.b16 %v1818, %v1817
        %v1946 = vpack.c.b16 %v1820, %v1819
        %v1947 = vpack.c.b16 %v1822, %v1821
        %v1948 = vpack.c.b16 %v1824, %v1823
        %v1949 = vpack.c.b16 %v1826, %v1825
        %v1950 = vpack.c.b16 %v1828, %v1827
        %v1951 = vpack.c.b16 %v1830, %v1829
        %v1952 = vpack.c.b16 %v1832, %v1831
        %v1953 = vpack.c.b16 %v1834, %v1833
        %v1954 = vpack.c.b16 %v1836, %v1835
        %v1955 = vpack.c.b16 %v1838, %v1837
        %v1956 = vpack.c.b16 %v1840, %v1839
        %v1957 = vpack.c.b16 %v1842, %v1841
        %v1958 = vpack.c.b16 %v1844, %v1843
        %v1959 = vpack.c.b16 %v1846, %v1845
        %v1960 = vpack.c.b16 %v1848, %v1847
        %v1961 = vpack.c.b16 %v1850, %v1849
        %v1962 = vpack.c.b16 %v1852, %v1851
        %v1963 = vpack.c.b16 %v1854, %v1853
        %v1964 = vpack.c.b16 %v1856, %v1855
        %v1965 = vpack.c.b16 %v1858, %v1857
        %v1966 = vpack.c.b16 %v1860, %v1859
        %v1967 = vpack.c.b16 %v1862, %v1861
        %v1968 = vpack.c.b16 %v1864, %v1863
        %v1969 = vpack.c.b16 %v1866, %v1865
        %v1970 = vpack.c.b16 %v1868, %v1867
        %v1971 = vpack.c.b16 %v1870, %v1869
        %v1972 = vpack.c.b16 %v1872, %v1871
        %v1973 = vpack.c.b16 %v1874, %v1873
        %v1974 = vpack.c.b16 %v1876, %v1875
        %v1975 = vpack.c.b16 %v1878, %v1877
        %v1976 = vpack.c.b16 %v1880, %v1879
        %v1977 = vpack.c.b16 %v1882, %v1881
        %v1978 = vpack.c.b16 %v1884, %v1883
        %v1979 = vpack.c.b16 %v1886, %v1885
        %v1980 = vpack.c.b16 %v1888, %v1887
        %v1981 = vpack.c.b16 %v1890, %v1889
        %v1982 = vpack.c.b16 %v1892, %v1891
        %v1983 = vpack.c.b16 %v1894, %v1893
        %v1984 = vpack.c.b16 %v1896, %v1895
        %v1985 = vpack.c.b16 %v1898, %v1897
        %v1986 = vpack.c.b16 %v1900, %v1899
        %v1987 = vpack.c.b16 %v1902, %v1901
        %v1988 = vpack.c.b16 %v1904, %v1903
        %v1989 = vpack.c.b16 %v1906, %v1905
        %v1990 = vpack.c.b16 %v1908, %v1907
        %v1991 = vpack.c.b16 %v1910, %v1909
        %v1992 = vpack.c.b16 %v1912, %v1911
        %v1993 = vpack.c.b16 %v1914, %v1913
        %v1994 = vpack.c.b16 %v1916, %v1915
        %v1995 = vpack.c.b16 %v1918, %v1917
        %v1996 = vpack.c.b16 %v1920, %v1919
        %v1997 = vpack.c.b16 %v1922, %v1921
        %v1998 = vpack.c.b16 %v1924, %v1923
        %v1999 = vpack.c.b16 %v1926, %v1925
        %v2000 = vpack.c.b16 %v1928, %v1927
        %2073 = vmatprep.subr.bf16.mxu0 0
        %2074 = vmatpush1.bf16.msra.mxu0 %v1929
        %2075 = vmatprep.subr.bf16.mxu0 0
        %2076 = vmatpush1.bf16.msra.mxu0 %v1930
        %2077 = vmatprep.subr.bf16.mxu0 0
        %2078 = vmatpush1.bf16.msra.mxu0 %v1931
        %2079 = vmatprep.subr.bf16.mxu0 0
        %2080 = vmatpush1.bf16.msra.mxu0 %v1932
        %2081 = vmatprep.subr.bf16.mxu0 0
        %2082 = vmatpush1.bf16.msra.mxu0 %v1933
        %2083 = vmatprep.subr.bf16.mxu0 0
        %2084 = vmatpush1.bf16.msra.mxu0 %v1934
        %2085 = vmatprep.subr.bf16.mxu0 0
        %2086 = vmatpush1.bf16.msra.mxu0 %v1935
        %2087 = vmatprep.subr.bf16.mxu0 0
        %2088 = vmatpush1.bf16.msra.mxu0 %v1936
        %2089 = vmatprep.subr.bf16.mxu0 0
        %2090 = vmatpush1.bf16.msra.mxu0 %v1937
        %2091 = vmatprep.subr.bf16.mxu0 0
        %2092 = vmatpush1.bf16.msra.mxu0 %v1938
        %2093 = vmatprep.subr.bf16.mxu0 0
        %2094 = vmatpush1.bf16.msra.mxu0 %v1939
        %2095 = vmatprep.subr.bf16.mxu0 0
        %2096 = vmatpush1.bf16.msra.mxu0 %v1940
        %2097 = vmatprep.subr.bf16.mxu0 0
        %2098 = vmatpush1.bf16.msra.mxu0 %v1941
        %2099 = vmatprep.subr.bf16.mxu0 0
        %2100 = vmatpush1.bf16.msra.mxu0 %v1942
        %2101 = vmatprep.subr.bf16.mxu0 0
        %2102 = vmatpush1.bf16.msra.mxu0 %v1943
        %2103 = vmatprep.subr.bf16.mxu0 0
        %2104 = vmatpush1.bf16.msra.mxu0 %v1944
        %2105 = vmatprep.mubr.bf16.mxu0 %v1347
        %2106 = vmatmul.mubr.bf16.gmra.mrb[0].mxu0 %v1346
        %v2107 = vpop.f32.mrb[0].mxu0
        %v2108 = vadd.f32 %v1639, %v2107
        %v2109 = vpop.f32.mrb[0].mxu0
        %v2110 = vpop.f32.mrb[0].mxu0
        %v2111 = vadd.f32 %v1639, %v2110
        %v2112 = vpop.f32.mrb[0].mxu0
        %2113 = vmatprep.mubr.bf16.mxu0 %v1356
        %2114 = vmatmul.mubr.bf16.gmra.mrb[0].mxu0 %v1355
        %v2115 = vpop.f32.mrb[0].mxu0
        %v2116 = vadd.f32 %v1639, %v2115
        %v2117 = vpop.f32.mrb[0].mxu0
        %v2118 = vpop.f32.mrb[0].mxu0
        %v2119 = vadd.f32 %v1639, %v2118
        %v2120 = vpop.f32.mrb[0].mxu0
        %2121 = vmatprep.mubr.bf16.mxu0 %v1365
        %2122 = vmatmul.mubr.bf16.gmra.mrb[0].mxu0 %v1364
        %v2123 = vpop.f32.mrb[0].mxu0
        %v2124 = vadd.f32 %v1639, %v2123
        %v2125 = vpop.f32.mrb[0].mxu0
        %v2126 = vpop.f32.mrb[0].mxu0
        %v2127 = vadd.f32 %v1639, %v2126
        %v2128 = vpop.f32.mrb[0].mxu0
        %2129 = vmatprep.mubr.bf16.mxu0 %v1374
        %2130 = vmatmul.mubr.bf16.gmra.mrb[0].mxu0 %v1373
        %v2131 = vpop.f32.mrb[0].mxu0
        %v2132 = vadd.f32 %v1639, %v2131
        %v2133 = vpop.f32.mrb[0].mxu0
        %v2134 = vpop.f32.mrb[0].mxu0
        %v2135 = vadd.f32 %v1639, %v2134
        %v2136 = vpop.f32.mrb[0].mxu0
        %2137 = vmatprep.mubr.bf16.mxu0 %v1383
        %2138 = vmatmul.mubr.bf16.gmra.mrb[0].mxu0 %v1382
        %v2139 = vpop.f32.mrb[0].mxu0
        %v2140 = vadd.f32 %v1639, %v2139
        %v2141 = vpop.f32.mrb[0].mxu0
        %v2142 = vpop.f32.mrb[0].mxu0
        %v2143 = vadd.f32 %v1639, %v2142
        %v2144 = vpop.f32.mrb[0].mxu0
        %2145 = vmatprep.mubr.bf16.mxu0 %v1392
        %2146 = vmatmul.mubr.bf16.gmra.mrb[0].mxu0 %v1391
        %v2147 = vpop.f32.mrb[0].mxu0
        %v2148 = vadd.f32 %v1639, %v2147
        %v2149 = vpop.f32.mrb[0].mxu0
        %v2150 = vpop.f32.mrb[0].mxu0
        %v2151 = vadd.f32 %v1639, %v2150
        %v2152 = vpop.f32.mrb[0].mxu0
        %2153 = vmatprep.mubr.bf16.mxu0 %v1401
        %2154 = vmatmul.mubr.bf16.gmra.mrb[0].mxu0 %v1400
        %v2155 = vpop.f32.mrb[0].mxu0
        %v2156 = vadd.f32 %v1639, %v2155
        %v2157 = vpop.f32.mrb[0].mxu0
        %v2158 = vpop.f32.mrb[0].mxu0
        %v2159 = vadd.f32 %v1639, %v2158
        %v2160 = vpop.f32.mrb[0].mxu0
        %2161 = vmatprep.mubr.bf16.mxu0 %v1410
        %2162 = vmatmul.mubr.bf16.gmra.mrb[0].mxu0 %v1409
        %v2163 = vpop.f32.mrb[0].mxu0
        %v2164 = vadd.f32 %v1639, %v2163
        %v2165 = vpop.f32.mrb[0].mxu0
        %v2166 = vpop.f32.mrb[0].mxu0
        %v2167 = vadd.f32 %v1639, %v2166
        %v2168 = vpop.f32.mrb[0].mxu0
        %2169 = vmatprep.mubr.bf16.mxu0 %v1419
        %2170 = vmatmul.mubr.bf16.gmra.mrb[0].mxu0 %v1418
        %v2171 = vpop.f32.mrb[0].mxu0
        %v2172 = vadd.f32 %v1639, %v2171
        %v2173 = vpop.f32.mrb[0].mxu0
        %v2174 = vpop.f32.mrb[0].mxu0
        %v2175 = vadd.f32 %v1639, %v2174
        %v2176 = vpop.f32.mrb[0].mxu0
        %2177 = vmatprep.mubr.bf16.mxu0 %v1428
        %2178 = vmatmul.mubr.bf16.gmra.mrb[0].mxu0 %v1427
        %v2179 = vpop.f32.mrb[0].mxu0
        %v2180 = vadd.f32 %v1639, %v2179
        %v2181 = vpop.f32.mrb[0].mxu0
        %v2182 = vpop.f32.mrb[0].mxu0
        %v2183 = vadd.f32 %v1639, %v2182
        %v2184 = vpop.f32.mrb[0].mxu0
        %2185 = vmatprep.mubr.bf16.mxu0 %v1437
        %2186 = vmatmul.mubr.bf16.gmra.mrb[0].mxu0 %v1436
        %v2187 = vpop.f32.mrb[0].mxu0
        %v2188 = vadd.f32 %v1639, %v2187
        %v2189 = vpop.f32.mrb[0].mxu0
        %v2190 = vpop.f32.mrb[0].mxu0
        %v2191 = vadd.f32 %v1639, %v2190
        %v2192 = vpop.f32.mrb[0].mxu0
        %2193 = vmatprep.mubr.bf16.mxu0 %v1446
        %2194 = vmatmul.mubr.bf16.gmra.mrb[0].mxu0 %v1445
        %v2195 = vpop.f32.mrb[0].mxu0
        %v2196 = vadd.f32 %v1639, %v2195
        %v2197 = vpop.f32.mrb[0].mxu0
        %v2198 = vpop.f32.mrb[0].mxu0
        %v2199 = vadd.f32 %v1639, %v2198
        %v2200 = vpop.f32.mrb[0].mxu0
        %2201 = vmatprep.mubr.bf16.mxu0 %v1455
        %2202 = vmatmul.mubr.bf16.gmra.mrb[0].mxu0 %v1454
        %v2203 = vpop.f32.mrb[0].mxu0
        %v2204 = vadd.f32 %v1639, %v2203
        %v2205 = vpop.f32.mrb[0].mxu0
        %v2206 = vpop.f32.mrb[0].mxu0
        %v2207 = vadd.f32 %v1639, %v2206
        %v2208 = vpop.f32.mrb[0].mxu0
        %2209 = vmatprep.mubr.bf16.mxu0 %v1464
        %2210 = vmatmul.mubr.bf16.gmra.mrb[0].mxu0 %v1463
        %v2211 = vpop.f32.mrb[0].mxu0
        %v2212 = vadd.f32 %v1639, %v2211
        %v2213 = vpop.f32.mrb[0].mxu0
        %v2214 = vpop.f32.mrb[0].mxu0
        %v2215 = vadd.f32 %v1639, %v2214
        %v2216 = vpop.f32.mrb[0].mxu0
        %2217 = vmatprep.mubr.bf16.mxu0 %v1473
        %2218 = vmatmul.mubr.bf16.gmra.mrb[0].mxu0 %v1472
        %v2219 = vpop.f32.mrb[0].mxu0
        %v2220 = vadd.f32 %v1639, %v2219
        %v2221 = vpop.f32.mrb[0].mxu0
        %v2222 = vpop.f32.mrb[0].mxu0
        %v2223 = vadd.f32 %v1639, %v2222
        %v2224 = vpop.f32.mrb[0].mxu0
        %2225 = vmatprep.mubr.bf16.mxu0 %v1482
        %2226 = vmatmul.mubr.bf16.gmra.mrb[0].mxu0 %v1481
        %v2227 = vpop.f32.mrb[0].mxu0
        %v2228 = vadd.f32 %v1639, %v2227
        %v2229 = vpop.f32.mrb[0].mxu0
        %v2230 = vpop.f32.mrb[0].mxu0
        %v2231 = vadd.f32 %v1639, %v2230
        %v2232 = vpop.f32.mrb[0].mxu0
        %2233 = vdwg.mxu0
        %2234 = vmatprep.subr.bf16.mxu0 0
        %2235 = vmatpush1.bf16.msra.mxu0 %v1945
        %2236 = vmatprep.subr.bf16.mxu0 0
        %2237 = vmatpush1.bf16.msra.mxu0 %v1946
        %2238 = vmatprep.subr.bf16.mxu0 0
        %2239 = vmatpush1.bf16.msra.mxu0 %v1947
        %2240 = vmatprep.subr.bf16.mxu0 0
        %2241 = vmatpush1.bf16.msra.mxu0 %v1948
        %2242 = vmatprep.subr.bf16.mxu0 0
        %2243 = vmatpush1.bf16.msra.mxu0 %v1949
        %2244 = vmatprep.subr.bf16.mxu0 0
        %2245 = vmatpush1.bf16.msra.mxu0 %v1950
        %2246 = vmatprep.subr.bf16.mxu0 0
        %2247 = vmatpush1.bf16.msra.mxu0 %v1951
        %2248 = vmatprep.subr.bf16.mxu0 0
        %2249 = vmatpush1.bf16.msra.mxu0 %v1952
        %2250 = vmatprep.subr.bf16.mxu0 0
        %2251 = vmatpush1.bf16.msra.mxu0 %v1953
        %2252 = vmatprep.subr.bf16.mxu0 0
        %2253 = vmatpush1.bf16.msra.mxu0 %v1954
        %2254 = vmatprep.subr.bf16.mxu0 0
        %2255 = vmatpush1.bf16.msra.mxu0 %v1955
        %2256 = vmatprep.subr.bf16.mxu0 0
        %2257 = vmatpush1.bf16.msra.mxu0 %v1956
        %2258 = vmatprep.subr.bf16.mxu0 0
        %2259 = vmatpush1.bf16.msra.mxu0 %v1957
        %2260 = vmatprep.subr.bf16.mxu0 0
        %2261 = vmatpush1.bf16.msra.mxu0 %v1958
        %2262 = vmatprep.subr.bf16.mxu0 0
        %2263 = vmatpush1.bf16.msra.mxu0 %v1959
        %2264 = vmatprep.subr.bf16.mxu0 0
        %2265 = vmatpush1.bf16.msra.mxu0 %v1960
        %2266 = vmatprep.mubr.bf16.mxu0 %v1349
        %2267 = vmatmul.mubr.bf16.gmra.mrb[0].mxu0 %v1348
        %v2268 = vpop.f32.mrb[0].mxu0
        %v2269 = vadd.f32 %v2108, %v2268
        %v2270 = vpop.f32.mrb[0].mxu0
        %v2271 = vpop.f32.mrb[0].mxu0
        %v2272 = vadd.f32 %v2111, %v2271
        %v2273 = vpop.f32.mrb[0].mxu0
        %2274 = vmatprep.mubr.bf16.mxu0 %v1358
        %2275 = vmatmul.mubr.bf16.gmra.mrb[0].mxu0 %v1357
        %v2276 = vpop.f32.mrb[0].mxu0
        %v2277 = vadd.f32 %v2116, %v2276
        %v2278 = vpop.f32.mrb[0].mxu0
        %v2279 = vpop.f32.mrb[0].mxu0
        %v2280 = vadd.f32 %v2119, %v2279
        %v2281 = vpop.f32.mrb[0].mxu0
        %2282 = vmatprep.mubr.bf16.mxu0 %v1367
        %2283 = vmatmul.mubr.bf16.gmra.mrb[0].mxu0 %v1366
        %v2284 = vpop.f32.mrb[0].mxu0
        %v2285 = vadd.f32 %v2124, %v2284
        %v2286 = vpop.f32.mrb[0].mxu0
        %v2287 = vpop.f32.mrb[0].mxu0
        %v2288 = vadd.f32 %v2127, %v2287
        %v2289 = vpop.f32.mrb[0].mxu0
        %2290 = vmatprep.mubr.bf16.mxu0 %v1376
        %2291 = vmatmul.mubr.bf16.gmra.mrb[0].mxu0 %v1375
        %v2292 = vpop.f32.mrb[0].mxu0
        %v2293 = vadd.f32 %v2132, %v2292
        %v2294 = vpop.f32.mrb[0].mxu0
        %v2295 = vpop.f32.mrb[0].mxu0
        %v2296 = vadd.f32 %v2135, %v2295
        %v2297 = vpop.f32.mrb[0].mxu0
        %2298 = vmatprep.mubr.bf16.mxu0 %v1385
        %2299 = vmatmul.mubr.bf16.gmra.mrb[0].mxu0 %v1384
        %v2300 = vpop.f32.mrb[0].mxu0
        %v2301 = vadd.f32 %v2140, %v2300
        %v2302 = vpop.f32.mrb[0].mxu0
        %v2303 = vpop.f32.mrb[0].mxu0
        %v2304 = vadd.f32 %v2143, %v2303
        %v2305 = vpop.f32.mrb[0].mxu0
        %2306 = vmatprep.mubr.bf16.mxu0 %v1394
        %2307 = vmatmul.mubr.bf16.gmra.mrb[0].mxu0 %v1393
        %v2308 = vpop.f32.mrb[0].mxu0
        %v2309 = vadd.f32 %v2148, %v2308
        %v2310 = vpop.f32.mrb[0].mxu0
        %v2311 = vpop.f32.mrb[0].mxu0
        %v2312 = vadd.f32 %v2151, %v2311
        %v2313 = vpop.f32.mrb[0].mxu0
        %2314 = vmatprep.mubr.bf16.mxu0 %v1403
        %2315 = vmatmul.mubr.bf16.gmra.mrb[0].mxu0 %v1402
        %v2316 = vpop.f32.mrb[0].mxu0
        %v2317 = vadd.f32 %v2156, %v2316
        %v2318 = vpop.f32.mrb[0].mxu0
        %v2319 = vpop.f32.mrb[0].mxu0
        %v2320 = vadd.f32 %v2159, %v2319
        %v2321 = vpop.f32.mrb[0].mxu0
        %2322 = vmatprep.mubr.bf16.mxu0 %v1412
        %2323 = vmatmul.mubr.bf16.gmra.mrb[0].mxu0 %v1411
        %v2324 = vpop.f32.mrb[0].mxu0
        %v2325 = vadd.f32 %v2164, %v2324
        %v2326 = vpop.f32.mrb[0].mxu0
        %v2327 = vpop.f32.mrb[0].mxu0
        %v2328 = vadd.f32 %v2167, %v2327
        %v2329 = vpop.f32.mrb[0].mxu0
        %2330 = vmatprep.mubr.bf16.mxu0 %v1421
        %2331 = vmatmul.mubr.bf16.gmra.mrb[0].mxu0 %v1420
        %v2332 = vpop.f32.mrb[0].mxu0
        %v2333 = vadd.f32 %v2172, %v2332
        %v2334 = vpop.f32.mrb[0].mxu0
        %v2335 = vpop.f32.mrb[0].mxu0
        %v2336 = vadd.f32 %v2175, %v2335
        %v2337 = vpop.f32.mrb[0].mxu0
        %2338 = vmatprep.mubr.bf16.mxu0 %v1430
        %2339 = vmatmul.mubr.bf16.gmra.mrb[0].mxu0 %v1429
        %v2340 = vpop.f32.mrb[0].mxu0
        %v2341 = vadd.f32 %v2180, %v2340
        %v2342 = vpop.f32.mrb[0].mxu0
        %v2343 = vpop.f32.mrb[0].mxu0
        %v2344 = vadd.f32 %v2183, %v2343
        %v2345 = vpop.f32.mrb[0].mxu0
        %2346 = vmatprep.mubr.bf16.mxu0 %v1439
        %2347 = vmatmul.mubr.bf16.gmra.mrb[0].mxu0 %v1438
        %v2348 = vpop.f32.mrb[0].mxu0
        %v2349 = vadd.f32 %v2188, %v2348
        %v2350 = vpop.f32.mrb[0].mxu0
        %v2351 = vpop.f32.mrb[0].mxu0
        %v2352 = vadd.f32 %v2191, %v2351
        %v2353 = vpop.f32.mrb[0].mxu0
        %2354 = vmatprep.mubr.bf16.mxu0 %v1448
        %2355 = vmatmul.mubr.bf16.gmra.mrb[0].mxu0 %v1447
        %v2356 = vpop.f32.mrb[0].mxu0
        %v2357 = vadd.f32 %v2196, %v2356
        %v2358 = vpop.f32.mrb[0].mxu0
        %v2359 = vpop.f32.mrb[0].mxu0
        %v2360 = vadd.f32 %v2199, %v2359
        %v2361 = vpop.f32.mrb[0].mxu0
        %2362 = vmatprep.mubr.bf16.mxu0 %v1457
        %2363 = vmatmul.mubr.bf16.gmra.mrb[0].mxu0 %v1456
        %v2364 = vpop.f32.mrb[0].mxu0
        %v2365 = vadd.f32 %v2204, %v2364
        %v2366 = vpop.f32.mrb[0].mxu0
        %v2367 = vpop.f32.mrb[0].mxu0
        %v2368 = vadd.f32 %v2207, %v2367
        %v2369 = vpop.f32.mrb[0].mxu0
        %2370 = vmatprep.mubr.bf16.mxu0 %v1466
        %2371 = vmatmul.mubr.bf16.gmra.mrb[0].mxu0 %v1465
        %v2372 = vpop.f32.mrb[0].mxu0
        %v2373 = vadd.f32 %v2212, %v2372
        %v2374 = vpop.f32.mrb[0].mxu0
        %v2375 = vpop.f32.mrb[0].mxu0
        %v2376 = vadd.f32 %v2215, %v2375
        %v2377 = vpop.f32.mrb[0].mxu0
        %2378 = vmatprep.mubr.bf16.mxu0 %v1475
        %2379 = vmatmul.mubr.bf16.gmra.mrb[0].mxu0 %v1474
        %v2380 = vpop.f32.mrb[0].mxu0
        %v2381 = vadd.f32 %v2220, %v2380
        %v2382 = vpop.f32.mrb[0].mxu0
        %v2383 = vpop.f32.mrb[0].mxu0
        %v2384 = vadd.f32 %v2223, %v2383
        %v2385 = vpop.f32.mrb[0].mxu0
        %2386 = vmatprep.mubr.bf16.mxu0 %v1484
        %2387 = vmatmul.mubr.bf16.gmra.mrb[0].mxu0 %v1483
        %v2388 = vpop.f32.mrb[0].mxu0
        %v2389 = vadd.f32 %v2228, %v2388
        %v2390 = vpop.f32.mrb[0].mxu0
        %v2391 = vpop.f32.mrb[0].mxu0
        %v2392 = vadd.f32 %v2231, %v2391
        %v2393 = vpop.f32.mrb[0].mxu0
        %2394 = vdwg.mxu0
        %2395 = vmatprep.subr.bf16.mxu0 0
        %2396 = vmatpush1.bf16.msra.mxu0 %v1961
        %2397 = vmatprep.subr.bf16.mxu0 0
        %2398 = vmatpush1.bf16.msra.mxu0 %v1962
        %2399 = vmatprep.subr.bf16.mxu0 0
        %2400 = vmatpush1.bf16.msra.mxu0 %v1963
        %2401 = vmatprep.subr.bf16.mxu0 0
        %2402 = vmatpush1.bf16.msra.mxu0 %v1964
        %2403 = vmatprep.subr.bf16.mxu0 0
        %2404 = vmatpush1.bf16.msra.mxu0 %v1965
        %2405 = vmatprep.subr.bf16.mxu0 0
        %2406 = vmatpush1.bf16.msra.mxu0 %v1966
        %2407 = vmatprep.subr.bf16.mxu0 0
        %2408 = vmatpush1.bf16.msra.mxu0 %v1967
        %2409 = vmatprep.subr.bf16.mxu0 0
        %2410 = vmatpush1.bf16.msra.mxu0 %v1968
        %2411 = vmatprep.subr.bf16.mxu0 0
        %2412 = vmatpush1.bf16.msra.mxu0 %v1969
        %2413 = vmatprep.subr.bf16.mxu0 0
        %2414 = vmatpush1.bf16.msra.mxu0 %v1970
        %2415 = vmatprep.subr.bf16.mxu0 0
        %2416 = vmatpush1.bf16.msra.mxu0 %v1971
        %2417 = vmatprep.subr.bf16.mxu0 0
        %2418 = vmatpush1.bf16.msra.mxu0 %v1972
        %2419 = vmatprep.subr.bf16.mxu0 0
        %2420 = vmatpush1.bf16.msra.mxu0 %v1973
        %2421 = vmatprep.subr.bf16.mxu0 0
        %2422 = vmatpush1.bf16.msra.mxu0 %v1974
        %2423 = vmatprep.subr.bf16.mxu0 0
        %2424 = vmatpush1.bf16.msra.mxu0 %v1975
        %2425 = vmatprep.subr.bf16.mxu0 0
        %2426 = vmatpush1.bf16.msra.mxu0 %v1976
        %2427 = vmatprep.mubr.bf16.mxu0 %v1351
        %2428 = vmatmul.mubr.bf16.gmra.mrb[0].mxu0 %v1350
        %v2429 = vpop.f32.mrb[0].mxu0
        %v2430 = vadd.f32 %v2269, %v2429
        %v2431 = vpop.f32.mrb[0].mxu0
        %v2432 = vpop.f32.mrb[0].mxu0
        %v2433 = vadd.f32 %v2272, %v2432
        %v2434 = vpop.f32.mrb[0].mxu0
        %2435 = vmatprep.mubr.bf16.mxu0 %v1360
        %2436 = vmatmul.mubr.bf16.gmra.mrb[0].mxu0 %v1359
        %v2437 = vpop.f32.mrb[0].mxu0
        %v2438 = vadd.f32 %v2277, %v2437
        %v2439 = vpop.f32.mrb[0].mxu0
        %v2440 = vpop.f32.mrb[0].mxu0
        %v2441 = vadd.f32 %v2280, %v2440
        %v2442 = vpop.f32.mrb[0].mxu0
        %2443 = vmatprep.mubr.bf16.mxu0 %v1369
        %2444 = vmatmul.mubr.bf16.gmra.mrb[0].mxu0 %v1368
        %v2445 = vpop.f32.mrb[0].mxu0
        %v2446 = vadd.f32 %v2285, %v2445
        %v2447 = vpop.f32.mrb[0].mxu0
        %v2448 = vpop.f32.mrb[0].mxu0
        %v2449 = vadd.f32 %v2288, %v2448
        %v2450 = vpop.f32.mrb[0].mxu0
        %2451 = vmatprep.mubr.bf16.mxu0 %v1378
        %2452 = vmatmul.mubr.bf16.gmra.mrb[0].mxu0 %v1377
        %v2453 = vpop.f32.mrb[0].mxu0
        %v2454 = vadd.f32 %v2293, %v2453
        %v2455 = vpop.f32.mrb[0].mxu0
        %v2456 = vpop.f32.mrb[0].mxu0
        %v2457 = vadd.f32 %v2296, %v2456
        %v2458 = vpop.f32.mrb[0].mxu0
        %2459 = vmatprep.mubr.bf16.mxu0 %v1387
        %2460 = vmatmul.mubr.bf16.gmra.mrb[0].mxu0 %v1386
        %v2461 = vpop.f32.mrb[0].mxu0
        %v2462 = vadd.f32 %v2301, %v2461
        %v2463 = vpop.f32.mrb[0].mxu0
        %v2464 = vpop.f32.mrb[0].mxu0
        %v2465 = vadd.f32 %v2304, %v2464
        %v2466 = vpop.f32.mrb[0].mxu0
        %2467 = vmatprep.mubr.bf16.mxu0 %v1396
        %2468 = vmatmul.mubr.bf16.gmra.mrb[0].mxu0 %v1395
        %v2469 = vpop.f32.mrb[0].mxu0
        %v2470 = vadd.f32 %v2309, %v2469
        %v2471 = vpop.f32.mrb[0].mxu0
        %v2472 = vpop.f32.mrb[0].mxu0
        %v2473 = vadd.f32 %v2312, %v2472
        %v2474 = vpop.f32.mrb[0].mxu0
        %2475 = vmatprep.mubr.bf16.mxu0 %v1405
        %2476 = vmatmul.mubr.bf16.gmra.mrb[0].mxu0 %v1404
        %v2477 = vpop.f32.mrb[0].mxu0
        %v2478 = vadd.f32 %v2317, %v2477
        %v2479 = vpop.f32.mrb[0].mxu0
        %v2480 = vpop.f32.mrb[0].mxu0
        %v2481 = vadd.f32 %v2320, %v2480
        %v2482 = vpop.f32.mrb[0].mxu0
        %2483 = vmatprep.mubr.bf16.mxu0 %v1414
        %2484 = vmatmul.mubr.bf16.gmra.mrb[0].mxu0 %v1413
        %v2485 = vpop.f32.mrb[0].mxu0
        %v2486 = vadd.f32 %v2325, %v2485
        %v2487 = vpop.f32.mrb[0].mxu0
        %v2488 = vpop.f32.mrb[0].mxu0
        %v2489 = vadd.f32 %v2328, %v2488
        %v2490 = vpop.f32.mrb[0].mxu0
        %2491 = vmatprep.mubr.bf16.mxu0 %v1423
        %2492 = vmatmul.mubr.bf16.gmra.mrb[0].mxu0 %v1422
        %v2493 = vpop.f32.mrb[0].mxu0
        %v2494 = vadd.f32 %v2333, %v2493
        %v2495 = vpop.f32.mrb[0].mxu0
        %v2496 = vpop.f32.mrb[0].mxu0
        %v2497 = vadd.f32 %v2336, %v2496
        %v2498 = vpop.f32.mrb[0].mxu0
        %2499 = vmatprep.mubr.bf16.mxu0 %v1432
        %2500 = vmatmul.mubr.bf16.gmra.mrb[0].mxu0 %v1431
        %v2501 = vpop.f32.mrb[0].mxu0
        %v2502 = vadd.f32 %v2341, %v2501
        %v2503 = vpop.f32.mrb[0].mxu0
        %v2504 = vpop.f32.mrb[0].mxu0
        %v2505 = vadd.f32 %v2344, %v2504
        %v2506 = vpop.f32.mrb[0].mxu0
        %2507 = vmatprep.mubr.bf16.mxu0 %v1441
        %2508 = vmatmul.mubr.bf16.gmra.mrb[0].mxu0 %v1440
        %v2509 = vpop.f32.mrb[0].mxu0
        %v2510 = vadd.f32 %v2349, %v2509
        %v2511 = vpop.f32.mrb[0].mxu0
        %v2512 = vpop.f32.mrb[0].mxu0
        %v2513 = vadd.f32 %v2352, %v2512
        %v2514 = vpop.f32.mrb[0].mxu0
        %2515 = vmatprep.mubr.bf16.mxu0 %v1450
        %2516 = vmatmul.mubr.bf16.gmra.mrb[0].mxu0 %v1449
        %v2517 = vpop.f32.mrb[0].mxu0
        %v2518 = vadd.f32 %v2357, %v2517
        %v2519 = vpop.f32.mrb[0].mxu0
        %v2520 = vpop.f32.mrb[0].mxu0
        %v2521 = vadd.f32 %v2360, %v2520
        %v2522 = vpop.f32.mrb[0].mxu0
        %2523 = vmatprep.mubr.bf16.mxu0 %v1459
        %2524 = vmatmul.mubr.bf16.gmra.mrb[0].mxu0 %v1458
        %v2525 = vpop.f32.mrb[0].mxu0
        %v2526 = vadd.f32 %v2365, %v2525
        %v2527 = vpop.f32.mrb[0].mxu0
        %v2528 = vpop.f32.mrb[0].mxu0
        %v2529 = vadd.f32 %v2368, %v2528
        %v2530 = vpop.f32.mrb[0].mxu0
        %2531 = vmatprep.mubr.bf16.mxu0 %v1468
        %2532 = vmatmul.mubr.bf16.gmra.mrb[0].mxu0 %v1467
        %v2533 = vpop.f32.mrb[0].mxu0
        %v2534 = vadd.f32 %v2373, %v2533
        %v2535 = vpop.f32.mrb[0].mxu0
        %v2536 = vpop.f32.mrb[0].mxu0
        %v2537 = vadd.f32 %v2376, %v2536
        %v2538 = vpop.f32.mrb[0].mxu0
        %2539 = vmatprep.mubr.bf16.mxu0 %v1477
        %2540 = vmatmul.mubr.bf16.gmra.mrb[0].mxu0 %v1476
        %v2541 = vpop.f32.mrb[0].mxu0
        %v2542 = vadd.f32 %v2381, %v2541
        %v2543 = vpop.f32.mrb[0].mxu0
        %v2544 = vpop.f32.mrb[0].mxu0
        %v2545 = vadd.f32 %v2384, %v2544
        %v2546 = vpop.f32.mrb[0].mxu0
        %2547 = vmatprep.mubr.bf16.mxu0 %v1486
        %2548 = vmatmul.mubr.bf16.gmra.mrb[0].mxu0 %v1485
        %v2549 = vpop.f32.mrb[0].mxu0
        %v2550 = vadd.f32 %v2389, %v2549
        %v2551 = vpop.f32.mrb[0].mxu0
        %v2552 = vpop.f32.mrb[0].mxu0
        %v2553 = vadd.f32 %v2392, %v2552
        %v2554 = vpop.f32.mrb[0].mxu0
        %2555 = vdwg.mxu0
        %2556 = vmatprep.subr.bf16.mxu0 0
        %2557 = vmatpush1.bf16.msra.mxu0 %v1977
        %2558 = vmatprep.subr.bf16.mxu0 0
        %2559 = vmatpush1.bf16.msra.mxu0 %v1978
        %2560 = vmatprep.subr.bf16.mxu0 0
        %2561 = vmatpush1.bf16.msra.mxu0 %v1979
        %2562 = vmatprep.subr.bf16.mxu0 0
        %2563 = vmatpush1.bf16.msra.mxu0 %v1980
        %2564 = vmatprep.subr.bf16.mxu0 0
        %2565 = vmatpush1.bf16.msra.mxu0 %v1981
        %2566 = vmatprep.subr.bf16.mxu0 0
        %2567 = vmatpush1.bf16.msra.mxu0 %v1982
        %2568 = vmatprep.subr.bf16.mxu0 0
        %2569 = vmatpush1.bf16.msra.mxu0 %v1983
        %2570 = vmatprep.subr.bf16.mxu0 0
        %2571 = vmatpush1.bf16.msra.mxu0 %v1984
        %2572 = vmatprep.subr.bf16.mxu0 0
        %2573 = vmatpush1.bf16.msra.mxu0 %v1985
        %2574 = vmatprep.subr.bf16.mxu0 0
        %2575 = vmatpush1.bf16.msra.mxu0 %v1986
        %2576 = vmatprep.subr.bf16.mxu0 0
        %2577 = vmatpush1.bf16.msra.mxu0 %v1987
        %2578 = vmatprep.subr.bf16.mxu0 0
        %2579 = vmatpush1.bf16.msra.mxu0 %v1988
        %2580 = vmatprep.subr.bf16.mxu0 0
        %2581 = vmatpush1.bf16.msra.mxu0 %v1989
        %2582 = vmatprep.subr.bf16.mxu0 0
        %2583 = vmatpush1.bf16.msra.mxu0 %v1990
        %2584 = vmatprep.subr.bf16.mxu0 0
        %2585 = vmatpush1.bf16.msra.mxu0 %v1991
        %2586 = vmatprep.subr.bf16.mxu0 0
        %2587 = vmatpush1.bf16.msra.mxu0 %v1992
        %2588 = vmatprep.mubr.bf16.mxu0 %v1353
        %2589 = vmatmul.mubr.bf16.gmra.mrb[0].mxu0 %v1352
        %v2590 = vpop.f32.mrb[0].mxu0
        %v2591 = vadd.f32 %v2430, %v2590
        %v2592 = vpop.f32.mrb[0].mxu0
        %v2593 = vpop.f32.mrb[0].mxu0
        %v2594 = vadd.f32 %v2433, %v2593
        %v2595 = vpop.f32.mrb[0].mxu0
        %2596 = vmatprep.mubr.bf16.mxu0 %v1362
        %2597 = vmatmul.mubr.bf16.gmra.mrb[0].mxu0 %v1361
        %v2598 = vpop.f32.mrb[0].mxu0
        %v2599 = vadd.f32 %v2438, %v2598
        %v2600 = vpop.f32.mrb[0].mxu0
        %v2601 = vpop.f32.mrb[0].mxu0
        %v2602 = vadd.f32 %v2441, %v2601
        %v2603 = vpop.f32.mrb[0].mxu0
        %2604 = vmatprep.mubr.bf16.mxu0 %v1371
        %2605 = vmatmul.mubr.bf16.gmra.mrb[0].mxu0 %v1370
        %v2606 = vpop.f32.mrb[0].mxu0
        %v2607 = vadd.f32 %v2446, %v2606
        %v2608 = vpop.f32.mrb[0].mxu0
        %v2609 = vpop.f32.mrb[0].mxu0
        %v2610 = vadd.f32 %v2449, %v2609
        %v2611 = vpop.f32.mrb[0].mxu0
        %2612 = vmatprep.mubr.bf16.mxu0 %v1380
        %2613 = vmatmul.mubr.bf16.gmra.mrb[0].mxu0 %v1379
        %v2614 = vpop.f32.mrb[0].mxu0
        %v2615 = vadd.f32 %v2454, %v2614
        %v2616 = vpop.f32.mrb[0].mxu0
        %v2617 = vpop.f32.mrb[0].mxu0
        %v2618 = vadd.f32 %v2457, %v2617
        %v2619 = vpop.f32.mrb[0].mxu0
        %2620 = vmatprep.mubr.bf16.mxu0 %v1389
        %2621 = vmatmul.mubr.bf16.gmra.mrb[0].mxu0 %v1388
        %v2622 = vpop.f32.mrb[0].mxu0
        %v2623 = vadd.f32 %v2462, %v2622
        %v2624 = vpop.f32.mrb[0].mxu0
        %v2625 = vpop.f32.mrb[0].mxu0
        %v2626 = vadd.f32 %v2465, %v2625
        %v2627 = vpop.f32.mrb[0].mxu0
        %2628 = vmatprep.mubr.bf16.mxu0 %v1398
        %2629 = vmatmul.mubr.bf16.gmra.mrb[0].mxu0 %v1397
        %v2630 = vpop.f32.mrb[0].mxu0
        %v2631 = vadd.f32 %v2470, %v2630
        %v2632 = vpop.f32.mrb[0].mxu0
        %v2633 = vpop.f32.mrb[0].mxu0
        %v2634 = vadd.f32 %v2473, %v2633
        %v2635 = vpop.f32.mrb[0].mxu0
        %2636 = vmatprep.mubr.bf16.mxu0 %v1407
        %2637 = vmatmul.mubr.bf16.gmra.mrb[0].mxu0 %v1406
        %v2638 = vpop.f32.mrb[0].mxu0
        %v2639 = vadd.f32 %v2478, %v2638
        %v2640 = vpop.f32.mrb[0].mxu0
        %v2641 = vpop.f32.mrb[0].mxu0
        %v2642 = vadd.f32 %v2481, %v2641
        %v2643 = vpop.f32.mrb[0].mxu0
        %2644 = vmatprep.mubr.bf16.mxu0 %v1416
        %2645 = vmatmul.mubr.bf16.gmra.mrb[0].mxu0 %v1415
        %v2646 = vpop.f32.mrb[0].mxu0
        %v2647 = vadd.f32 %v2486, %v2646
        %v2648 = vpop.f32.mrb[0].mxu0
        %v2649 = vpop.f32.mrb[0].mxu0
        %v2650 = vadd.f32 %v2489, %v2649
        %v2651 = vpop.f32.mrb[0].mxu0
        %2652 = vmatprep.mubr.bf16.mxu0 %v1425
        %2653 = vmatmul.mubr.bf16.gmra.mrb[0].mxu0 %v1424
        %v2654 = vpop.f32.mrb[0].mxu0
        %v2655 = vadd.f32 %v2494, %v2654
        %v2656 = vpop.f32.mrb[0].mxu0
        %v2657 = vpop.f32.mrb[0].mxu0
        %v2658 = vadd.f32 %v2497, %v2657
        %v2659 = vpop.f32.mrb[0].mxu0
        %2660 = vmatprep.mubr.bf16.mxu0 %v1434
        %2661 = vmatmul.mubr.bf16.gmra.mrb[0].mxu0 %v1433
        %v2662 = vpop.f32.mrb[0].mxu0
        %v2663 = vadd.f32 %v2502, %v2662
        %v2664 = vpop.f32.mrb[0].mxu0
        %v2665 = vpop.f32.mrb[0].mxu0
        %v2666 = vadd.f32 %v2505, %v2665
        %v2667 = vpop.f32.mrb[0].mxu0
        %2668 = vmatprep.mubr.bf16.mxu0 %v1443
        %2669 = vmatmul.mubr.bf16.gmra.mrb[0].mxu0 %v1442
        %v2670 = vpop.f32.mrb[0].mxu0
        %v2671 = vadd.f32 %v2510, %v2670
        %v2672 = vpop.f32.mrb[0].mxu0
        %v2673 = vpop.f32.mrb[0].mxu0
        %v2674 = vadd.f32 %v2513, %v2673
        %v2675 = vpop.f32.mrb[0].mxu0
        %2676 = vmatprep.mubr.bf16.mxu0 %v1452
        %2677 = vmatmul.mubr.bf16.gmra.mrb[0].mxu0 %v1451
        %v2678 = vpop.f32.mrb[0].mxu0
        %v2679 = vadd.f32 %v2518, %v2678
        %v2680 = vpop.f32.mrb[0].mxu0
        %v2681 = vpop.f32.mrb[0].mxu0
        %v2682 = vadd.f32 %v2521, %v2681
        %v2683 = vpop.f32.mrb[0].mxu0
        %2684 = vmatprep.mubr.bf16.mxu0 %v1461
        %2685 = vmatmul.mubr.bf16.gmra.mrb[0].mxu0 %v1460
        %v2686 = vpop.f32.mrb[0].mxu0
        %v2687 = vadd.f32 %v2526, %v2686
        %v2688 = vpop.f32.mrb[0].mxu0
        %v2689 = vpop.f32.mrb[0].mxu0
        %v2690 = vadd.f32 %v2529, %v2689
        %v2691 = vpop.f32.mrb[0].mxu0
        %2692 = vmatprep.mubr.bf16.mxu0 %v1470
        %2693 = vmatmul.mubr.bf16.gmra.mrb[0].mxu0 %v1469
        %v2694 = vpop.f32.mrb[0].mxu0
        %v2695 = vadd.f32 %v2534, %v2694
        %v2696 = vpop.f32.mrb[0].mxu0
        %v2697 = vpop.f32.mrb[0].mxu0
        %v2698 = vadd.f32 %v2537, %v2697
        %v2699 = vpop.f32.mrb[0].mxu0
        %2700 = vmatprep.mubr.bf16.mxu0 %v1479
        %2701 = vmatmul.mubr.bf16.gmra.mrb[0].mxu0 %v1478
        %v2702 = vpop.f32.mrb[0].mxu0
        %v2703 = vadd.f32 %v2542, %v2702
        %v2704 = vpop.f32.mrb[0].mxu0
        %v2705 = vpop.f32.mrb[0].mxu0
        %v2706 = vadd.f32 %v2545, %v2705
        %v2707 = vpop.f32.mrb[0].mxu0
        %2708 = vmatprep.mubr.bf16.mxu0 %v1488
        %2709 = vmatmul.mubr.bf16.gmra.mrb[0].mxu0 %v1487
        %v2710 = vpop.f32.mrb[0].mxu0
        %v2711 = vadd.f32 %v2550, %v2710
        %v2712 = vpop.f32.mrb[0].mxu0
        %v2713 = vpop.f32.mrb[0].mxu0
        %v2714 = vadd.f32 %v2553, %v2713
        %v2715 = vpop.f32.mrb[0].mxu0
        %2716 = vdwg.mxu0
        %2717 = vmatprep.subr.bf16.mxu0 0
        %2718 = vmatpush1.bf16.msra.mxu0 %v1993
        %2719 = vmatprep.subr.bf16.mxu0 0
        %2720 = vmatpush1.bf16.msra.mxu0 %v1994
        %2721 = vmatprep.subr.bf16.mxu0 0
        %2722 = vmatpush1.bf16.msra.mxu0 %v1995
        %2723 = vmatprep.subr.bf16.mxu0 0
        %2724 = vmatpush1.bf16.msra.mxu0 %v1996
        %2725 = vmatprep.subr.bf16.mxu0 0
        %2726 = vmatpush1.bf16.msra.mxu0 %v1997
        %2727 = vmatprep.subr.bf16.mxu0 0
        %2728 = vmatpush1.bf16.msra.mxu0 %v1998
        %2729 = vmatprep.subr.bf16.mxu0 0
        %2730 = vmatpush1.bf16.msra.mxu0 %v1999
        %2731 = vmatprep.subr.bf16.mxu0 0
        %2732 = vmatpush1.bf16.msra.mxu0 %v2000
        %2733 = vmatprep.subr.bf16.mxu0 0
        %2734 = vmatpush1.bf16.msra.mxu0 0
        %2735 = vmatprep.subr.bf16.mxu0 0
        %2736 = vmatpush1.bf16.msra.mxu0 0
        %2737 = vmatprep.subr.bf16.mxu0 0
        %2738 = vmatpush1.bf16.msra.mxu0 0
        %2739 = vmatprep.subr.bf16.mxu0 0
        %2740 = vmatpush1.bf16.msra.mxu0 0
        %2741 = vmatprep.subr.bf16.mxu0 0
        %2742 = vmatpush1.bf16.msra.mxu0 0
        %2743 = vmatprep.subr.bf16.mxu0 0
        %2744 = vmatpush1.bf16.msra.mxu0 0
        %2745 = vmatprep.subr.bf16.mxu0 0
        %2746 = vmatpush1.bf16.msra.mxu0 0
        %2747 = vmatprep.subr.bf16.mxu0 0
        %2748 = vmatpush1.bf16.msra.mxu0 0
        %2749 = vmatprep.mubr.bf16.mxu0 0
        %2750 = vmatmul.mubr.bf16.gmra.mrb[0].mxu0 %v1354
        %v2751 = vpop.f32.mrb[0].mxu0
        %v2752 = vadd.f32 %v2591, %v2751
        %v2753 = vpop.f32.mrb[0].mxu0
        %v2754 = vpop.f32.mrb[0].mxu0
        %v2755 = vadd.f32 %v2594, %v2754
        %v2756 = vpop.f32.mrb[0].mxu0
        %2757 = vmatprep.mubr.bf16.mxu0 0
        %2758 = vmatmul.mubr.bf16.gmra.mrb[0].mxu0 %v1363
        %v2759 = vpop.f32.mrb[0].mxu0
        %v2760 = vadd.f32 %v2599, %v2759
        %v2761 = vpop.f32.mrb[0].mxu0
        %v2762 = vpop.f32.mrb[0].mxu0
        %v2763 = vadd.f32 %v2602, %v2762
        %v2764 = vpop.f32.mrb[0].mxu0
        %2765 = vmatprep.mubr.bf16.mxu0 0
        %2766 = vmatmul.mubr.bf16.gmra.mrb[0].mxu0 %v1372
        %v2767 = vpop.f32.mrb[0].mxu0
        %v2768 = vadd.f32 %v2607, %v2767
        %v2769 = vpop.f32.mrb[0].mxu0
        %v2770 = vpop.f32.mrb[0].mxu0
        %v2771 = vadd.f32 %v2610, %v2770
        %v2772 = vpop.f32.mrb[0].mxu0
        %2773 = vmatprep.mubr.bf16.mxu0 0
        %2774 = vmatmul.mubr.bf16.gmra.mrb[0].mxu0 %v1381
        %v2775 = vpop.f32.mrb[0].mxu0
        %v2776 = vadd.f32 %v2615, %v2775
        %v2777 = vpop.f32.mrb[0].mxu0
        %v2778 = vpop.f32.mrb[0].mxu0
        %v2779 = vadd.f32 %v2618, %v2778
        %v2780 = vpop.f32.mrb[0].mxu0
        %2781 = vmatprep.mubr.bf16.mxu0 0
        %2782 = vmatmul.mubr.bf16.gmra.mrb[0].mxu0 %v1390
        %v2783 = vpop.f32.mrb[0].mxu0
        %v2784 = vadd.f32 %v2623, %v2783
        %v2785 = vpop.f32.mrb[0].mxu0
        %v2786 = vpop.f32.mrb[0].mxu0
        %v2787 = vadd.f32 %v2626, %v2786
        %v2788 = vpop.f32.mrb[0].mxu0
        %2789 = vmatprep.mubr.bf16.mxu0 0
        %2790 = vmatmul.mubr.bf16.gmra.mrb[0].mxu0 %v1399
        %v2791 = vpop.f32.mrb[0].mxu0
        %v2792 = vadd.f32 %v2631, %v2791
        %v2793 = vpop.f32.mrb[0].mxu0
        %v2794 = vpop.f32.mrb[0].mxu0
        %v2795 = vadd.f32 %v2634, %v2794
        %v2796 = vpop.f32.mrb[0].mxu0
        %2797 = vmatprep.mubr.bf16.mxu0 0
        %2798 = vmatmul.mubr.bf16.gmra.mrb[0].mxu0 %v1408
        %v2799 = vpop.f32.mrb[0].mxu0
        %v2800 = vadd.f32 %v2639, %v2799
        %v2801 = vpop.f32.mrb[0].mxu0
        %v2802 = vpop.f32.mrb[0].mxu0
        %v2803 = vadd.f32 %v2642, %v2802
        %v2804 = vpop.f32.mrb[0].mxu0
        %2805 = vmatprep.mubr.bf16.mxu0 0
        %2806 = vmatmul.mubr.bf16.gmra.mrb[0].mxu0 %v1417
        %v2807 = vpop.f32.mrb[0].mxu0
        %v2808 = vadd.f32 %v2647, %v2807
        %v2809 = vpop.f32.mrb[0].mxu0
        %v2810 = vpop.f32.mrb[0].mxu0
        %v2811 = vadd.f32 %v2650, %v2810
        %v2812 = vpop.f32.mrb[0].mxu0
        %2813 = vmatprep.mubr.bf16.mxu0 0
        %2814 = vmatmul.mubr.bf16.gmra.mrb[0].mxu0 %v1426
        %v2815 = vpop.f32.mrb[0].mxu0
        %v2816 = vadd.f32 %v2655, %v2815
        %v2817 = vpop.f32.mrb[0].mxu0
        %v2818 = vpop.f32.mrb[0].mxu0
        %v2819 = vadd.f32 %v2658, %v2818
        %v2820 = vpop.f32.mrb[0].mxu0
        %2821 = vmatprep.mubr.bf16.mxu0 0
        %2822 = vmatmul.mubr.bf16.gmra.mrb[0].mxu0 %v1435
        %v2823 = vpop.f32.mrb[0].mxu0
        %v2824 = vadd.f32 %v2663, %v2823
        %v2825 = vpop.f32.mrb[0].mxu0
        %v2826 = vpop.f32.mrb[0].mxu0
        %v2827 = vadd.f32 %v2666, %v2826
        %v2828 = vpop.f32.mrb[0].mxu0
        %2829 = vmatprep.mubr.bf16.mxu0 0
        %2830 = vmatmul.mubr.bf16.gmra.mrb[0].mxu0 %v1444
        %v2831 = vpop.f32.mrb[0].mxu0
        %v2832 = vadd.f32 %v2671, %v2831
        %v2833 = vpop.f32.mrb[0].mxu0
        %v2834 = vpop.f32.mrb[0].mxu0
        %v2835 = vadd.f32 %v2674, %v2834
        %v2836 = vpop.f32.mrb[0].mxu0
        %2837 = vmatprep.mubr.bf16.mxu0 0
        %2838 = vmatmul.mubr.bf16.gmra.mrb[0].mxu0 %v1453
        %v2839 = vpop.f32.mrb[0].mxu0
        %v2840 = vadd.f32 %v2679, %v2839
        %v2841 = vpop.f32.mrb[0].mxu0
        %v2842 = vpop.f32.mrb[0].mxu0
        %v2843 = vadd.f32 %v2682, %v2842
        %v2844 = vpop.f32.mrb[0].mxu0
        %2845 = vmatprep.mubr.bf16.mxu0 0
        %2846 = vmatmul.mubr.bf16.gmra.mrb[0].mxu0 %v1462
        %v2847 = vpop.f32.mrb[0].mxu0
        %v2848 = vadd.f32 %v2687, %v2847
        %v2849 = vpop.f32.mrb[0].mxu0
        %v2850 = vpop.f32.mrb[0].mxu0
        %v2851 = vadd.f32 %v2690, %v2850
        %v2852 = vpop.f32.mrb[0].mxu0
        %2853 = vmatprep.mubr.bf16.mxu0 0
        %2854 = vmatmul.mubr.bf16.gmra.mrb[0].mxu0 %v1471
        %v2855 = vpop.f32.mrb[0].mxu0
        %v2856 = vadd.f32 %v2695, %v2855
        %v2857 = vpop.f32.mrb[0].mxu0
        %v2858 = vpop.f32.mrb[0].mxu0
        %v2859 = vadd.f32 %v2698, %v2858
        %v2860 = vpop.f32.mrb[0].mxu0
        %2861 = vmatprep.mubr.bf16.mxu0 0
        %2862 = vmatmul.mubr.bf16.gmra.mrb[0].mxu0 %v1480
        %v2863 = vpop.f32.mrb[0].mxu0
        %v2864 = vadd.f32 %v2703, %v2863
        %v2865 = vpop.f32.mrb[0].mxu0
        %v2866 = vpop.f32.mrb[0].mxu0
        %v2867 = vadd.f32 %v2706, %v2866
        %v2868 = vpop.f32.mrb[0].mxu0
        %2869 = vmatprep.mubr.bf16.mxu0 0
        %2870 = vmatmul.mubr.bf16.gmra.mrb[0].mxu0 %v1489
        %v2871 = vpop.f32.mrb[0].mxu0
        %v2872 = vadd.f32 %v2711, %v2871
        %v2873 = vpop.f32.mrb[0].mxu0
        %v2874 = vpop.f32.mrb[0].mxu0
        %v2875 = vadd.f32 %v2714, %v2874
        %v2876 = vpop.f32.mrb[0].mxu0
        %2877 = vdwg.mxu0
        %v2878 = vmax.f32 %v2752, 0.0
        %v2879 = vmax.f32 %v2755, 0.0
        %v2880 = vmax.f32 %v2760, 0.0
        %v2881 = vmax.f32 %v2763, 0.0
        %v2882 = vmax.f32 %v2768, 0.0
        %v2883 = vmax.f32 %v2771, 0.0
        %v2884 = vmax.f32 %v2776, 0.0
        %v2885 = vmax.f32 %v2779, 0.0
        %v2886 = vmax.f32 %v2784, 0.0
        %v2887 = vmax.f32 %v2787, 0.0
        %v2888 = vmax.f32 %v2792, 0.0
        %v2889 = vmax.f32 %v2795, 0.0
        %v2890 = vmax.f32 %v2800, 0.0
        %v2891 = vmax.f32 %v2803, 0.0
        %v2892 = vmax.f32 %v2808, 0.0
        %v2893 = vmax.f32 %v2811, 0.0
        %v2894 = vmax.f32 %v2816, 0.0
        %v2895 = vmax.f32 %v2819, 0.0
        %v2896 = vmax.f32 %v2824, 0.0
        %v2897 = vmax.f32 %v2827, 0.0
        %v2898 = vmax.f32 %v2832, 0.0
        %v2899 = vmax.f32 %v2835, 0.0
        %v2900 = vmax.f32 %v2840, 0.0
        %v2901 = vmax.f32 %v2843, 0.0
        %v2902 = vmax.f32 %v2848, 0.0
        %v2903 = vmax.f32 %v2851, 0.0
        %v2904 = vmax.f32 %v2856, 0.0
        %v2905 = vmax.f32 %v2859, 0.0
        %v2906 = vmax.f32 %v2864, 0.0
        %v2907 = vmax.f32 %v2867, 0.0
        %v2908 = vmax.f32 %v2872, 0.0
        %v2909 = vmax.f32 %v2875, 0.0
        %v2938 = vrot.slane %v2878, 7
        %v2939 = vrot.slane %v2879, 7
        %v2940 = vrot.slane %v2880, 7
        %v2941 = vrot.slane %v2881, 7
        %v2942 = vrot.slane %v2882, 7
        %v2943 = vrot.slane %v2883, 7
        %v2944 = vrot.slane %v2884, 7
        %v2945 = vrot.slane %v2886, 7
        %v2946 = vrot.slane %v2887, 7
        %v2947 = vrot.slane %v2888, 7
        %v2948 = vrot.slane %v2889, 7
        %v2949 = vrot.slane %v2890, 7
        %v2950 = vrot.slane %v2891, 7
        %v2951 = vrot.slane %v2892, 7
        %v2952 = vrot.slane %v2894, 7
        %v2953 = vrot.slane %v2895, 7
        %v2954 = vrot.slane %v2896, 7
        %v2955 = vrot.slane %v2897, 7
        %v2956 = vrot.slane %v2898, 7
        %v2957 = vrot.slane %v2899, 7
        %v2958 = vrot.slane %v2900, 7
        %v2959 = vrot.slane %v2902, 7
        %v2960 = vrot.slane %v2903, 7
        %v2961 = vrot.slane %v2904, 7
        %v2962 = vrot.slane %v2905, 7
        %v2963 = vrot.slane %v2906, 7
        %v2964 = vrot.slane %v2907, 7
        %v2965 = vrot.slane %v2908, 7
        %2994 = vst [vmem:[%s717] sm:$0xfe] %v2938
        %2995 = vst [vmem:[%s717 + $0x48] sm:$0xfe] %v2939
        %2996 = vst [vmem:[%s717 + $0x90] sm:$0xfe] %v2940
        %2997 = vst [vmem:[%s717 + $0xd8] sm:$0xfe] %v2941
        %2998 = vst [vmem:[%s717 + $0x120] sm:$0xfe] %v2942
        %2999 = vst [vmem:[%s717 + $0x168] sm:$0xfe] %v2943
        %3000 = vst [vmem:[%s717 + $0x1b0] sm:$0xfe] %v2944
        %3001 = vst [vmem:[%s717 + $0x240] sm:$0xfe] %v2945
        %3002 = vst [vmem:[%s717 + $0x288] sm:$0xfe] %v2946
        %3003 = vst [vmem:[%s717 + $0x2d0] sm:$0xfe] %v2947
        %3004 = vst [vmem:[%s717 + $0x318] sm:$0xfe] %v2948
        %3005 = vst [vmem:[%s717 + $0x360] sm:$0xfe] %v2949
        %3006 = vst [vmem:[%s717 + $0x3a8] sm:$0xfe] %v2950
        %3007 = vst [vmem:[%s717 + $0x3f0] sm:$0xfe] %v2951
        %3008 = vst [vmem:[%s717 + $0x480] sm:$0xfe] %v2952
        %3009 = vst [vmem:[%s717 + $0x4c8] sm:$0xfe] %v2953
        %3010 = vst [vmem:[%s717 + $0x510] sm:$0xfe] %v2954
        %3011 = vst [vmem:[%s717 + $0x558] sm:$0xfe] %v2955
        %3012 = vst [vmem:[%s717 + $0x5a0] sm:$0xfe] %v2956
        %3013 = vst [vmem:[%s717 + $0x5e8] sm:$0xfe] %v2957
        %3014 = vst [vmem:[%s717 + $0x630] sm:$0xfe] %v2958
        %3015 = vst [vmem:[%s717 + $0x6c0] sm:$0xfe] %v2959
        %3016 = vst [vmem:[%s717 + $0x708] sm:$0xfe] %v2960
        %3017 = vst [vmem:[%s717 + $0x750] sm:$0xfe] %v2961
        %3018 = vst [vmem:[%s717 + $0x798] sm:$0xfe] %v2962
        %3019 = vst [vmem:[%s717 + $0x7e0] sm:$0xfe] %v2963
        %3020 = vst [vmem:[%s717 + $0x828] sm:$0xfe] %v2964
        %3021 = vst [vmem:[%s717 + $0x870] sm:$0xfe] %v2965
        %3022 = vst [vmem:[%s717 + $0x8] sm:$0xff] %v2878
        %3023 = vst [vmem:[%s717 + $0x50] sm:$0xff] %v2879
        %3024 = vst [vmem:[%s717 + $0x98] sm:$0xff] %v2880
        %3025 = vst [vmem:[%s717 + $0xe0] sm:$0xff] %v2881
        %3026 = vst [vmem:[%s717 + $0x128] sm:$0xff] %v2882
        %3027 = vst [vmem:[%s717 + $0x170] sm:$0xff] %v2883
        %3028 = vst [vmem:[%s717 + $0x1b8] sm:$0xff] %v2884
        %3029 = vst [vmem:[%s717 + $0x248] sm:$0xff] %v2886
        %3030 = vst [vmem:[%s717 + $0x290] sm:$0xff] %v2887
        %3031 = vst [vmem:[%s717 + $0x2d8] sm:$0xff] %v2888
        %3032 = vst [vmem:[%s717 + $0x320] sm:$0xff] %v2889
        %3033 = vst [vmem:[%s717 + $0x368] sm:$0xff] %v2890
        %3034 = vst [vmem:[%s717 + $0x3b0] sm:$0xff] %v2891
        %3035 = vst [vmem:[%s717 + $0x3f8] sm:$0xff] %v2892
        %3036 = vst [vmem:[%s717 + $0x488] sm:$0xff] %v2894
        %3037 = vst [vmem:[%s717 + $0x4d0] sm:$0xff] %v2895
        %3038 = vst [vmem:[%s717 + $0x518] sm:$0xff] %v2896
        %3039 = vst [vmem:[%s717 + $0x560] sm:$0xff] %v2897
        %3040 = vst [vmem:[%s717 + $0x5a8] sm:$0xff] %v2898
        %3041 = vst [vmem:[%s717 + $0x5f0] sm:$0xff] %v2899
        %3042 = vst [vmem:[%s717 + $0x638] sm:$0xff] %v2900
        %3043 = vst [vmem:[%s717 + $0x6c8] sm:$0xff] %v2902
        %3044 = vst [vmem:[%s717 + $0x710] sm:$0xff] %v2903
        %3045 = vst [vmem:[%s717 + $0x758] sm:$0xff] %v2904
        %3046 = vst [vmem:[%s717 + $0x7a0] sm:$0xff] %v2905
        %3047 = vst [vmem:[%s717 + $0x7e8] sm:$0xff] %v2906
        %3048 = vst [vmem:[%s717 + $0x830] sm:$0xff] %v2907
        %3049 = vst [vmem:[%s717 + $0x878] sm:$0xff] %v2908
        %v3050 = vrot.slane %v2878, 1
        %v3051 = vrot.slane %v2879, 1
        %v3052 = vrot.slane %v2880, 1
        %v3053 = vrot.slane %v2881, 1
        %v3054 = vrot.slane %v2882, 1
        %v3055 = vrot.slane %v2883, 1
        %v3056 = vrot.slane %v2884, 1
        %v3057 = vrot.slane %v2886, 1
        %v3058 = vrot.slane %v2887, 1
        %v3059 = vrot.slane %v2888, 1
        %v3060 = vrot.slane %v2889, 1
        %v3061 = vrot.slane %v2890, 1
        %v3062 = vrot.slane %v2891, 1
        %v3063 = vrot.slane %v2892, 1
        %v3064 = vrot.slane %v2894, 1
        %v3065 = vrot.slane %v2895, 1
        %v3066 = vrot.slane %v2896, 1
        %v3067 = vrot.slane %v2897, 1
        %v3068 = vrot.slane %v2898, 1
        %v3069 = vrot.slane %v2899, 1
        %v3070 = vrot.slane %v2900, 1
        %v3071 = vrot.slane %v2902, 1
        %v3072 = vrot.slane %v2903, 1
        %v3073 = vrot.slane %v2904, 1
        %v3074 = vrot.slane %v2905, 1
        %v3075 = vrot.slane %v2906, 1
        %v3076 = vrot.slane %v2907, 1
        %v3077 = vrot.slane %v2908, 1
        %3106 = vst [vmem:[%s717 + $0x10] sm:$0x7f] %v3050
        %3107 = vst [vmem:[%s717 + $0x58] sm:$0x7f] %v3051
        %3108 = vst [vmem:[%s717 + $0xa0] sm:$0x7f] %v3052
        %3109 = vst [vmem:[%s717 + $0xe8] sm:$0x7f] %v3053
        %3110 = vst [vmem:[%s717 + $0x130] sm:$0x7f] %v3054
        %3111 = vst [vmem:[%s717 + $0x178] sm:$0x7f] %v3055
        %3112 = vst [vmem:[%s717 + $0x1c0] sm:$0x7f] %v3056
        %3113 = vst [vmem:[%s717 + $0x250] sm:$0x7f] %v3057
        %3114 = vst [vmem:[%s717 + $0x298] sm:$0x7f] %v3058
        %3115 = vst [vmem:[%s717 + $0x2e0] sm:$0x7f] %v3059
        %3116 = vst [vmem:[%s717 + $0x328] sm:$0x7f] %v3060
        %3117 = vst [vmem:[%s717 + $0x370] sm:$0x7f] %v3061
        %3118 = vst [vmem:[%s717 + $0x3b8] sm:$0x7f] %v3062
        %3119 = vst [vmem:[%s717 + $0x400] sm:$0x7f] %v3063
        %3120 = vst [vmem:[%s717 + $0x490] sm:$0x7f] %v3064
        %3121 = vst [vmem:[%s717 + $0x4d8] sm:$0x7f] %v3065
        %3122 = vst [vmem:[%s717 + $0x520] sm:$0x7f] %v3066
        %3123 = vst [vmem:[%s717 + $0x568] sm:$0x7f] %v3067
        %3124 = vst [vmem:[%s717 + $0x5b0] sm:$0x7f] %v3068
        %3125 = vst [vmem:[%s717 + $0x5f8] sm:$0x7f] %v3069
        %3126 = vst [vmem:[%s717 + $0x640] sm:$0x7f] %v3070
        %3127 = vst [vmem:[%s717 + $0x6d0] sm:$0x7f] %v3071
        %3128 = vst [vmem:[%s717 + $0x718] sm:$0x7f] %v3072
        %3129 = vst [vmem:[%s717 + $0x760] sm:$0x7f] %v3073
        %3130 = vst [vmem:[%s717 + $0x7a8] sm:$0x7f] %v3074
        %3131 = vst [vmem:[%s717 + $0x7f0] sm:$0x7f] %v3075
        %3132 = vst [vmem:[%s717 + $0x838] sm:$0x7f] %v3076
        %3133 = vst [vmem:[%s717 + $0x880] sm:$0x7f] %v3077
        %v3138 = vrot.slane %v2885, 7
        %v3139 = vrot.slane %v2893, 7
        %v3140 = vrot.slane %v2901, 7
        %v3141 = vrot.slane %v2909, 7
        %3146 = vst [vmem:[#allocation2 + $0x18] sm:$0xfe] %v2938
        %3147 = vst [vmem:[#allocation2 + $0x60] sm:$0xfe] %v2939
        %3148 = vst [vmem:[#allocation2 + $0xa8] sm:$0xfe] %v2940
        %3149 = vst [vmem:[#allocation2 + $0xf0] sm:$0xfe] %v2941
        %3150 = vst [vmem:[#allocation2 + $0x138] sm:$0xfe] %v2942
        %3151 = vst [vmem:[#allocation2 + $0x180] sm:$0xfe] %v2943
        %3152 = vst [vmem:[#allocation2 + $0x1c8] sm:$0xfe] %v2944
        %3153 = vst [vmem:[#allocation2 + $0x210] sm:$0xfe] %v3138
        %3154 = vst [vmem:[#allocation2 + $0x258] sm:$0xfe] %v2945
        %3155 = vst [vmem:[#allocation2 + $0x2a0] sm:$0xfe] %v2946
        %3156 = vst [vmem:[#allocation2 + $0x2e8] sm:$0xfe] %v2947
        %3157 = vst [vmem:[#allocation2 + $0x330] sm:$0xfe] %v2948
        %3158 = vst [vmem:[#allocation2 + $0x378] sm:$0xfe] %v2949
        %3159 = vst [vmem:[#allocation2 + $0x3c0] sm:$0xfe] %v2950
        %3160 = vst [vmem:[#allocation2 + $0x408] sm:$0xfe] %v2951
        %3161 = vst [vmem:[#allocation2 + $0x450] sm:$0xfe] %v3139
        %3162 = vst [vmem:[#allocation2 + $0x498] sm:$0xfe] %v2952
        %3163 = vst [vmem:[#allocation2 + $0x4e0] sm:$0xfe] %v2953
        %3164 = vst [vmem:[#allocation2 + $0x528] sm:$0xfe] %v2954
        %3165 = vst [vmem:[#allocation2 + $0x570] sm:$0xfe] %v2955
        %3166 = vst [vmem:[#allocation2 + $0x5b8] sm:$0xfe] %v2956
        %3167 = vst [vmem:[#allocation2 + $0x600] sm:$0xfe] %v2957
        %3168 = vst [vmem:[#allocation2 + $0x648] sm:$0xfe] %v2958
        %3169 = vst [vmem:[#allocation2 + $0x690] sm:$0xfe] %v3140
        %3170 = vst [vmem:[#allocation2 + $0x6d8] sm:$0xfe] %v2959
        %3171 = vst [vmem:[#allocation2 + $0x720] sm:$0xfe] %v2960
        %3172 = vst [vmem:[#allocation2 + $0x768] sm:$0xfe] %v2961
        %3173 = vst [vmem:[#allocation2 + $0x7b0] sm:$0xfe] %v2962
        %3174 = vst [vmem:[#allocation2 + $0x7f8] sm:$0xfe] %v2963
        %3175 = vst [vmem:[#allocation2 + $0x840] sm:$0xfe] %v2964
        %3176 = vst [vmem:[#allocation2 + $0x888] sm:$0xfe] %v2965
        %3177 = vst [vmem:[#allocation2 + $0x8d0] sm:$0xfe] %v3141
        %3178 = vst [vmem:[#allocation2 + $0x20] sm:$0xff] %v2878
        %3179 = vst [vmem:[#allocation2 + $0x68] sm:$0xff] %v2879
        %3180 = vst [vmem:[#allocation2 + $0xb0] sm:$0xff] %v2880
        %3181 = vst [vmem:[#allocation2 + $0xf8] sm:$0xff] %v2881
        %3182 = vst [vmem:[#allocation2 + $0x140] sm:$0xff] %v2882
        %3183 = vst [vmem:[#allocation2 + $0x188] sm:$0xff] %v2883
        %3184 = vst [vmem:[#allocation2 + $0x1d0] sm:$0xff] %v2884
        %3185 = vst [vmem:[#allocation2 + $0x218] sm:$0xff] %v2885
        %3186 = vst [vmem:[#allocation2 + $0x260] sm:$0xff] %v2886
        %3187 = vst [vmem:[#allocation2 + $0x2a8] sm:$0xff] %v2887
        %3188 = vst [vmem:[#allocation2 + $0x2f0] sm:$0xff] %v2888
        %3189 = vst [vmem:[#allocation2 + $0x338] sm:$0xff] %v2889
        %3190 = vst [vmem:[#allocation2 + $0x380] sm:$0xff] %v2890
        %3191 = vst [vmem:[#allocation2 + $0x3c8] sm:$0xff] %v2891
        %3192 = vst [vmem:[#allocation2 + $0x410] sm:$0xff] %v2892
        %3193 = vst [vmem:[#allocation2 + $0x458] sm:$0xff] %v2893
        %3194 = vst [vmem:[#allocation2 + $0x4a0] sm:$0xff] %v2894
        %3195 = vst [vmem:[#allocation2 + $0x4e8] sm:$0xff] %v2895
        %3196 = vst [vmem:[#allocation2 + $0x530] sm:$0xff] %v2896
        %3197 = vst [vmem:[#allocation2 + $0x578] sm:$0xff] %v2897
        %3198 = vst [vmem:[#allocation2 + $0x5c0] sm:$0xff] %v2898
        %3199 = vst [vmem:[#allocation2 + $0x608] sm:$0xff] %v2899
        %3200 = vst [vmem:[#allocation2 + $0x650] sm:$0xff] %v2900
        %3201 = vst [vmem:[#allocation2 + $0x698] sm:$0xff] %v2901
        %3202 = vst [vmem:[#allocation2 + $0x6e0] sm:$0xff] %v2902
        %3203 = vst [vmem:[#allocation2 + $0x728] sm:$0xff] %v2903
        %3204 = vst [vmem:[#allocation2 + $0x770] sm:$0xff] %v2904
        %3205 = vst [vmem:[#allocation2 + $0x7b8] sm:$0xff] %v2905
        %3206 = vst [vmem:[#allocation2 + $0x800] sm:$0xff] %v2906
        %3207 = vst [vmem:[#allocation2 + $0x848] sm:$0xff] %v2907
        %3208 = vst [vmem:[#allocation2 + $0x890] sm:$0xff] %v2908
        %3209 = vst [vmem:[#allocation2 + $0x8d8] sm:$0xff] %v2909
        %v3210 = vrot.slane %v2885, 1
        %v3211 = vrot.slane %v2893, 1
        %v3212 = vrot.slane %v2901, 1
        %v3213 = vrot.slane %v2909, 1
        %3218 = vst [vmem:[#allocation2 + $0x28] sm:$0x7f] %v3050
        %3219 = vst [vmem:[#allocation2 + $0x70] sm:$0x7f] %v3051
        %3220 = vst [vmem:[#allocation2 + $0xb8] sm:$0x7f] %v3052
        %3221 = vst [vmem:[#allocation2 + $0x100] sm:$0x7f] %v3053
        %3222 = vst [vmem:[#allocation2 + $0x148] sm:$0x7f] %v3054
        %3223 = vst [vmem:[#allocation2 + $0x190] sm:$0x7f] %v3055
        %3224 = vst [vmem:[#allocation2 + $0x1d8] sm:$0x7f] %v3056
        %3225 = vst [vmem:[#allocation2 + $0x220] sm:$0x7f] %v3210
        %3226 = vst [vmem:[#allocation2 + $0x268] sm:$0x7f] %v3057
        %3227 = vst [vmem:[#allocation2 + $0x2b0] sm:$0x7f] %v3058
        %3228 = vst [vmem:[#allocation2 + $0x2f8] sm:$0x7f] %v3059
        %3229 = vst [vmem:[#allocation2 + $0x340] sm:$0x7f] %v3060
        %3230 = vst [vmem:[#allocation2 + $0x388] sm:$0x7f] %v3061
        %3231 = vst [vmem:[#allocation2 + $0x3d0] sm:$0x7f] %v3062
        %3232 = vst [vmem:[#allocation2 + $0x418] sm:$0x7f] %v3063
        %3233 = vst [vmem:[#allocation2 + $0x460] sm:$0x7f] %v3211
        %3234 = vst [vmem:[#allocation2 + $0x4a8] sm:$0x7f] %v3064
        %3235 = vst [vmem:[#allocation2 + $0x4f0] sm:$0x7f] %v3065
        %3236 = vst [vmem:[#allocation2 + $0x538] sm:$0x7f] %v3066
        %3237 = vst [vmem:[#allocation2 + $0x580] sm:$0x7f] %v3067
        %3238 = vst [vmem:[#allocation2 + $0x5c8] sm:$0x7f] %v3068
        %3239 = vst [vmem:[#allocation2 + $0x610] sm:$0x7f] %v3069
        %3240 = vst [vmem:[#allocation2 + $0x658] sm:$0x7f] %v3070
        %3241 = vst [vmem:[#allocation2 + $0x6a0] sm:$0x7f] %v3212
        %3242 = vst [vmem:[#allocation2 + $0x6e8] sm:$0x7f] %v3071
        %3243 = vst [vmem:[#allocation2 + $0x730] sm:$0x7f] %v3072
        %3244 = vst [vmem:[#allocation2 + $0x778] sm:$0x7f] %v3073
        %3245 = vst [vmem:[#allocation2 + $0x7c0] sm:$0x7f] %v3074
        %3246 = vst [vmem:[#allocation2 + $0x808] sm:$0x7f] %v3075
        %3247 = vst [vmem:[#allocation2 + $0x850] sm:$0x7f] %v3076
        %3248 = vst [vmem:[#allocation2 + $0x898] sm:$0x7f] %v3077
        %3249 = vst [vmem:[#allocation2 + $0x8e0] sm:$0x7f] %v3213
        %3250 = vst [vmem:[#allocation2 + $0x30] sm:$0xfe] %v2939
        %3251 = vst [vmem:[#allocation2 + $0x78] sm:$0xfe] %v2940
        %3252 = vst [vmem:[#allocation2 + $0xc0] sm:$0xfe] %v2941
        %3253 = vst [vmem:[#allocation2 + $0x108] sm:$0xfe] %v2942
        %3254 = vst [vmem:[#allocation2 + $0x150] sm:$0xfe] %v2943
        %3255 = vst [vmem:[#allocation2 + $0x198] sm:$0xfe] %v2944
        %3256 = vst [vmem:[#allocation2 + $0x1e0] sm:$0xfe] %v3138
        %3257 = vst [vmem:[#allocation2 + $0x270] sm:$0xfe] %v2946
        %3258 = vst [vmem:[#allocation2 + $0x2b8] sm:$0xfe] %v2947
        %3259 = vst [vmem:[#allocation2 + $0x300] sm:$0xfe] %v2948
        %3260 = vst [vmem:[#allocation2 + $0x348] sm:$0xfe] %v2949
        %3261 = vst [vmem:[#allocation2 + $0x390] sm:$0xfe] %v2950
        %3262 = vst [vmem:[#allocation2 + $0x3d8] sm:$0xfe] %v2951
        %3263 = vst [vmem:[#allocation2 + $0x420] sm:$0xfe] %v3139
        %3264 = vst [vmem:[#allocation2 + $0x4b0] sm:$0xfe] %v2953
        %3265 = vst [vmem:[#allocation2 + $0x4f8] sm:$0xfe] %v2954
        %3266 = vst [vmem:[#allocation2 + $0x540] sm:$0xfe] %v2955
        %3267 = vst [vmem:[#allocation2 + $0x588] sm:$0xfe] %v2956
        %3268 = vst [vmem:[#allocation2 + $0x5d0] sm:$0xfe] %v2957
        %3269 = vst [vmem:[#allocation2 + $0x618] sm:$0xfe] %v2958
        %3270 = vst [vmem:[#allocation2 + $0x660] sm:$0xfe] %v3140
        %3271 = vst [vmem:[#allocation2 + $0x6f0] sm:$0xfe] %v2960
        %3272 = vst [vmem:[#allocation2 + $0x738] sm:$0xfe] %v2961
        %3273 = vst [vmem:[#allocation2 + $0x780] sm:$0xfe] %v2962
        %3274 = vst [vmem:[#allocation2 + $0x7c8] sm:$0xfe] %v2963
        %3275 = vst [vmem:[#allocation2 + $0x810] sm:$0xfe] %v2964
        %3276 = vst [vmem:[#allocation2 + $0x858] sm:$0xfe] %v2965
        %3277 = vst [vmem:[#allocation2 + $0x8a0] sm:$0xfe] %v3141
        %3278 = vst [vmem:[#allocation2 + $0x38] sm:$0xff] %v2879
        %3279 = vst [vmem:[#allocation2 + $0x80] sm:$0xff] %v2880
        %3280 = vst [vmem:[#allocation2 + $0xc8] sm:$0xff] %v2881
        %3281 = vst [vmem:[#allocation2 + $0x110] sm:$0xff] %v2882
        %3282 = vst [vmem:[#allocation2 + $0x158] sm:$0xff] %v2883
        %3283 = vst [vmem:[#allocation2 + $0x1a0] sm:$0xff] %v2884
        %3284 = vst [vmem:[#allocation2 + $0x1e8] sm:$0xff] %v2885
        %3285 = vst [vmem:[#allocation2 + $0x278] sm:$0xff] %v2887
        %3286 = vst [vmem:[#allocation2 + $0x2c0] sm:$0xff] %v2888
        %3287 = vst [vmem:[#allocation2 + $0x308] sm:$0xff] %v2889
        %3288 = vst [vmem:[#allocation2 + $0x350] sm:$0xff] %v2890
        %3289 = vst [vmem:[#allocation2 + $0x398] sm:$0xff] %v2891
        %3290 = vst [vmem:[#allocation2 + $0x3e0] sm:$0xff] %v2892
        %3291 = vst [vmem:[#allocation2 + $0x428] sm:$0xff] %v2893
        %3292 = vst [vmem:[#allocation2 + $0x4b8] sm:$0xff] %v2895
        %3293 = vst [vmem:[#allocation2 + $0x500] sm:$0xff] %v2896
        %3294 = vst [vmem:[#allocation2 + $0x548] sm:$0xff] %v2897
        %3295 = vst [vmem:[#allocation2 + $0x590] sm:$0xff] %v2898
        %3296 = vst [vmem:[#allocation2 + $0x5d8] sm:$0xff] %v2899
        %3297 = vst [vmem:[#allocation2 + $0x620] sm:$0xff] %v2900
        %3298 = vst [vmem:[#allocation2 + $0x668] sm:$0xff] %v2901
        %3299 = vst [vmem:[#allocation2 + $0x6f8] sm:$0xff] %v2903
        %3300 = vst [vmem:[#allocation2 + $0x740] sm:$0xff] %v2904
        %3301 = vst [vmem:[#allocation2 + $0x788] sm:$0xff] %v2905
        %3302 = vst [vmem:[#allocation2 + $0x7d0] sm:$0xff] %v2906
        %3303 = vst [vmem:[#allocation2 + $0x818] sm:$0xff] %v2907
        %3304 = vst [vmem:[#allocation2 + $0x860] sm:$0xff] %v2908
        %3305 = vst [vmem:[#allocation2 + $0x8a8] sm:$0xff] %v2909
        %3306 = vst [vmem:[#allocation2 + $0x40] sm:$0x7f] %v3051
        %3307 = vst [vmem:[#allocation2 + $0x88] sm:$0x7f] %v3052
        %3308 = vst [vmem:[#allocation2 + $0xd0] sm:$0x7f] %v3053
        %3309 = vst [vmem:[#allocation2 + $0x118] sm:$0x7f] %v3054
        %3310 = vst [vmem:[#allocation2 + $0x160] sm:$0x7f] %v3055
        %3311 = vst [vmem:[#allocation2 + $0x1a8] sm:$0x7f] %v3056
        %3312 = vst [vmem:[#allocation2 + $0x1f0] sm:$0x7f] %v3210
        %3313 = vst [vmem:[#allocation2 + $0x280] sm:$0x7f] %v3058
        %3314 = vst [vmem:[#allocation2 + $0x2c8] sm:$0x7f] %v3059
        %3315 = vst [vmem:[#allocation2 + $0x310] sm:$0x7f] %v3060
        %3316 = vst [vmem:[#allocation2 + $0x358] sm:$0x7f] %v3061
        %3317 = vst [vmem:[#allocation2 + $0x3a0] sm:$0x7f] %v3062
        %3318 = vst [vmem:[#allocation2 + $0x3e8] sm:$0x7f] %v3063
        %3319 = vst [vmem:[#allocation2 + $0x430] sm:$0x7f] %v3211
        %3320 = vst [vmem:[#allocation2 + $0x4c0] sm:$0x7f] %v3065
        %3321 = vst [vmem:[#allocation2 + $0x508] sm:$0x7f] %v3066
        %3322 = vst [vmem:[#allocation2 + $0x550] sm:$0x7f] %v3067
        %3323 = vst [vmem:[#allocation2 + $0x598] sm:$0x7f] %v3068
        %3324 = vst [vmem:[#allocation2 + $0x5e0] sm:$0x7f] %v3069
        %3325 = vst [vmem:[#allocation2 + $0x628] sm:$0x7f] %v3070
        %3326 = vst [vmem:[#allocation2 + $0x670] sm:$0x7f] %v3212
        %3327 = vst [vmem:[#allocation2 + $0x700] sm:$0x7f] %v3072
        %3328 = vst [vmem:[#allocation2 + $0x748] sm:$0x7f] %v3073
        %3329 = vst [vmem:[#allocation2 + $0x790] sm:$0x7f] %v3074
        %3330 = vst [vmem:[#allocation2 + $0x7d8] sm:$0x7f] %v3075
        %3331 = vst [vmem:[#allocation2 + $0x820] sm:$0x7f] %v3076
        %3332 = vst [vmem:[#allocation2 + $0x868] sm:$0x7f] %v3077
        %3333 = vst [vmem:[#allocation2 + $0x8b0] sm:$0x7f] %v3213
        %v3334 = vld [vmem:[#allocation2] sm:$0xff]
        %v3335 = vld [vmem:[#allocation2 + $0x8] sm:$0xff]
        %v3336 = vld [vmem:[#allocation2 + $0x10] sm:$0xff]
        %v3337 = vld [vmem:[#allocation2 + $0x18] sm:$0xff]
        %v3338 = vld [vmem:[#allocation2 + $0x20] sm:$0xff]
        %v3339 = vld [vmem:[#allocation2 + $0x28] sm:$0xff]
        %v3340 = vld [vmem:[#allocation2 + $0x30] sm:$0xff]
        %v3341 = vld [vmem:[#allocation2 + $0x38] sm:$0xff]
        %v3342 = vld [vmem:[#allocation2 + $0x40] sm:$0xff]
        %v3343 = vld [vmem:[#allocation2 + $0x48] sm:$0xff]
        %v3344 = vld [vmem:[#allocation2 + $0x50] sm:$0xff]
        %v3345 = vld [vmem:[#allocation2 + $0x58] sm:$0xff]
        %v3346 = vld [vmem:[#allocation2 + $0x60] sm:$0xff]
        %v3347 = vld [vmem:[#allocation2 + $0x68] sm:$0xff]
        %v3348 = vld [vmem:[#allocation2 + $0x70] sm:$0xff]
        %v3349 = vld [vmem:[#allocation2 + $0x78] sm:$0xff]
        %v3350 = vld [vmem:[#allocation2 + $0x80] sm:$0xff]
        %v3351 = vld [vmem:[#allocation2 + $0x88] sm:$0xff]
        %v3352 = vld [vmem:[#allocation2 + $0x90] sm:$0xff]
        %v3353 = vld [vmem:[#allocation2 + $0x98] sm:$0xff]
        %v3354 = vld [vmem:[#allocation2 + $0xa0] sm:$0xff]
        %v3355 = vld [vmem:[#allocation2 + $0xa8] sm:$0xff]
        %v3356 = vld [vmem:[#allocation2 + $0xb0] sm:$0xff]
        %v3357 = vld [vmem:[#allocation2 + $0xb8] sm:$0xff]
        %v3358 = vld [vmem:[#allocation2 + $0xc0] sm:$0xff]
        %v3359 = vld [vmem:[#allocation2 + $0xc8] sm:$0xff]
        %v3360 = vld [vmem:[#allocation2 + $0xd0] sm:$0xff]
        %v3361 = vld [vmem:[#allocation2 + $0xd8] sm:$0xff]
        %v3362 = vld [vmem:[#allocation2 + $0xe0] sm:$0xff]
        %v3363 = vld [vmem:[#allocation2 + $0xe8] sm:$0xff]
        %v3364 = vld [vmem:[#allocation2 + $0xf0] sm:$0xff]
        %v3365 = vld [vmem:[#allocation2 + $0xf8] sm:$0xff]
        %v3366 = vld [vmem:[#allocation2 + $0x100] sm:$0xff]
        %v3367 = vld [vmem:[#allocation2 + $0x108] sm:$0xff]
        %v3368 = vld [vmem:[#allocation2 + $0x110] sm:$0xff]
        %v3369 = vld [vmem:[#allocation2 + $0x118] sm:$0xff]
        %v3370 = vld [vmem:[#allocation2 + $0x120] sm:$0xff]
        %v3371 = vld [vmem:[#allocation2 + $0x128] sm:$0xff]
        %v3372 = vld [vmem:[#allocation2 + $0x130] sm:$0xff]
        %v3373 = vld [vmem:[#allocation2 + $0x138] sm:$0xff]
        %v3374 = vld [vmem:[#allocation2 + $0x140] sm:$0xff]
        %v3375 = vld [vmem:[#allocation2 + $0x148] sm:$0xff]
        %v3376 = vld [vmem:[#allocation2 + $0x150] sm:$0xff]
        %v3377 = vld [vmem:[#allocation2 + $0x158] sm:$0xff]
        %v3378 = vld [vmem:[#allocation2 + $0x160] sm:$0xff]
        %v3379 = vld [vmem:[#allocation2 + $0x168] sm:$0xff]
        %v3380 = vld [vmem:[#allocation2 + $0x170] sm:$0xff]
        %v3381 = vld [vmem:[#allocation2 + $0x178] sm:$0xff]
        %v3382 = vld [vmem:[#allocation2 + $0x180] sm:$0xff]
        %v3383 = vld [vmem:[#allocation2 + $0x188] sm:$0xff]
        %v3384 = vld [vmem:[#allocation2 + $0x190] sm:$0xff]
        %v3385 = vld [vmem:[#allocation2 + $0x198] sm:$0xff]
        %v3386 = vld [vmem:[#allocation2 + $0x1a0] sm:$0xff]
        %v3387 = vld [vmem:[#allocation2 + $0x1a8] sm:$0xff]
        %v3388 = vld [vmem:[#allocation2 + $0x1b0] sm:$0xff]
        %v3389 = vld [vmem:[#allocation2 + $0x1b8] sm:$0xff]
        %v3390 = vld [vmem:[#allocation2 + $0x1c0] sm:$0xff]
        %v3391 = vld [vmem:[#allocation2 + $0x1c8] sm:$0xff]
        %v3392 = vld [vmem:[#allocation2 + $0x1d0] sm:$0xff]
        %v3393 = vld [vmem:[#allocation2 + $0x1d8] sm:$0xff]
        %v3394 = vld [vmem:[#allocation2 + $0x1e0] sm:$0xff]
        %v3395 = vld [vmem:[#allocation2 + $0x1e8] sm:$0xff]
        %v3396 = vld [vmem:[#allocation2 + $0x1f0] sm:$0xff]
        %v3397 = vld [vmem:[#allocation2 + $0x1f8] sm:$0xff]
        %v3398 = vld [vmem:[#allocation2 + $0x200] sm:$0xff]
        %v3399 = vld [vmem:[#allocation2 + $0x208] sm:$0xff]
        %v3400 = vld [vmem:[#allocation2 + $0x210] sm:$0xff]
        %v3401 = vld [vmem:[#allocation2 + $0x218] sm:$0xff]
        %v3402 = vld [vmem:[#allocation2 + $0x220] sm:$0xff]
        %v3403 = vld [vmem:[#allocation2 + $0x228] sm:$0xff]
        %v3404 = vld [vmem:[#allocation2 + $0x230] sm:$0xff]
        %v3405 = vld [vmem:[#allocation2 + $0x238] sm:$0xff]
        %v3406 = vld [vmem:[#allocation2 + $0x240] sm:$0xff]
        %v3407 = vld [vmem:[#allocation2 + $0x248] sm:$0xff]
        %v3408 = vld [vmem:[#allocation2 + $0x250] sm:$0xff]
        %v3409 = vld [vmem:[#allocation2 + $0x258] sm:$0xff]
        %v3410 = vld [vmem:[#allocation2 + $0x260] sm:$0xff]
        %v3411 = vld [vmem:[#allocation2 + $0x268] sm:$0xff]
        %v3412 = vld [vmem:[#allocation2 + $0x270] sm:$0xff]
        %v3413 = vld [vmem:[#allocation2 + $0x278] sm:$0xff]
        %v3414 = vld [vmem:[#allocation2 + $0x280] sm:$0xff]
        %v3415 = vld [vmem:[#allocation2 + $0x288] sm:$0xff]
        %v3416 = vld [vmem:[#allocation2 + $0x290] sm:$0xff]
        %v3417 = vld [vmem:[#allocation2 + $0x298] sm:$0xff]
        %v3418 = vld [vmem:[#allocation2 + $0x2a0] sm:$0xff]
        %v3419 = vld [vmem:[#allocation2 + $0x2a8] sm:$0xff]
        %v3420 = vld [vmem:[#allocation2 + $0x2b0] sm:$0xff]
        %v3421 = vld [vmem:[#allocation2 + $0x2b8] sm:$0xff]
        %v3422 = vld [vmem:[#allocation2 + $0x2c0] sm:$0xff]
        %v3423 = vld [vmem:[#allocation2 + $0x2c8] sm:$0xff]
        %v3424 = vld [vmem:[#allocation2 + $0x2d0] sm:$0xff]
        %v3425 = vld [vmem:[#allocation2 + $0x2d8] sm:$0xff]
        %v3426 = vld [vmem:[#allocation2 + $0x2e0] sm:$0xff]
        %v3427 = vld [vmem:[#allocation2 + $0x2e8] sm:$0xff]
        %v3428 = vld [vmem:[#allocation2 + $0x2f0] sm:$0xff]
        %v3429 = vld [vmem:[#allocation2 + $0x2f8] sm:$0xff]
        %v3430 = vld [vmem:[#allocation2 + $0x300] sm:$0xff]
        %v3431 = vld [vmem:[#allocation2 + $0x308] sm:$0xff]
        %v3432 = vld [vmem:[#allocation2 + $0x310] sm:$0xff]
        %v3433 = vld [vmem:[#allocation2 + $0x318] sm:$0xff]
        %v3434 = vld [vmem:[#allocation2 + $0x320] sm:$0xff]
        %v3435 = vld [vmem:[#allocation2 + $0x328] sm:$0xff]
        %v3436 = vld [vmem:[#allocation2 + $0x330] sm:$0xff]
        %v3437 = vld [vmem:[#allocation2 + $0x338] sm:$0xff]
        %v3438 = vld [vmem:[#allocation2 + $0x340] sm:$0xff]
        %v3439 = vld [vmem:[#allocation2 + $0x348] sm:$0xff]
        %v3440 = vld [vmem:[#allocation2 + $0x350] sm:$0xff]
        %v3441 = vld [vmem:[#allocation2 + $0x358] sm:$0xff]
        %v3442 = vld [vmem:[#allocation2 + $0x360] sm:$0xff]
        %v3443 = vld [vmem:[#allocation2 + $0x368] sm:$0xff]
        %v3444 = vld [vmem:[#allocation2 + $0x370] sm:$0xff]
        %v3445 = vld [vmem:[#allocation2 + $0x378] sm:$0xff]
        %v3446 = vld [vmem:[#allocation2 + $0x380] sm:$0xff]
        %v3447 = vld [vmem:[#allocation2 + $0x388] sm:$0xff]
        %v3448 = vld [vmem:[#allocation2 + $0x390] sm:$0xff]
        %v3449 = vld [vmem:[#allocation2 + $0x398] sm:$0xff]
        %v3450 = vld [vmem:[#allocation2 + $0x3a0] sm:$0xff]
        %v3451 = vld [vmem:[#allocation2 + $0x3a8] sm:$0xff]
        %v3452 = vld [vmem:[#allocation2 + $0x3b0] sm:$0xff]
        %v3453 = vld [vmem:[#allocation2 + $0x3b8] sm:$0xff]
        %v3454 = vld [vmem:[#allocation2 + $0x3c0] sm:$0xff]
        %v3455 = vld [vmem:[#allocation2 + $0x3c8] sm:$0xff]
        %v3456 = vld [vmem:[#allocation2 + $0x3d0] sm:$0xff]
        %v3457 = vld [vmem:[#allocation2 + $0x3d8] sm:$0xff]
        %v3458 = vld [vmem:[#allocation2 + $0x3e0] sm:$0xff]
        %v3459 = vld [vmem:[#allocation2 + $0x3e8] sm:$0xff]
        %v3460 = vld [vmem:[#allocation2 + $0x3f0] sm:$0xff]
        %v3461 = vld [vmem:[#allocation2 + $0x3f8] sm:$0xff]
        %v3462 = vld [vmem:[#allocation2 + $0x400] sm:$0xff]
        %v3463 = vld [vmem:[#allocation2 + $0x408] sm:$0xff]
        %v3464 = vld [vmem:[#allocation2 + $0x410] sm:$0xff]
        %v3465 = vld [vmem:[#allocation2 + $0x418] sm:$0xff]
        %v3466 = vld [vmem:[#allocation2 + $0x420] sm:$0xff]
        %v3467 = vld [vmem:[#allocation2 + $0x428] sm:$0xff]
        %v3468 = vld [vmem:[#allocation2 + $0x430] sm:$0xff]
        %v3469 = vld [vmem:[#allocation2 + $0x438] sm:$0xff]
        %v3470 = vld [vmem:[#allocation2 + $0x440] sm:$0xff]
        %v3471 = vld [vmem:[#allocation2 + $0x448] sm:$0xff]
        %v3472 = vld [vmem:[#allocation2 + $0x450] sm:$0xff]
        %v3473 = vld [vmem:[#allocation2 + $0x458] sm:$0xff]
        %v3474 = vld [vmem:[#allocation2 + $0x460] sm:$0xff]
        %v3475 = vld [vmem:[#allocation2 + $0x468] sm:$0xff]
        %v3476 = vld [vmem:[#allocation2 + $0x470] sm:$0xff]
        %v3477 = vld [vmem:[#allocation2 + $0x478] sm:$0xff]
        %v3478 = vld [vmem:[#allocation2 + $0x480] sm:$0xff]
        %v3479 = vld [vmem:[#allocation2 + $0x488] sm:$0xff]
        %v3480 = vld [vmem:[#allocation2 + $0x490] sm:$0xff]
        %v3481 = vld [vmem:[#allocation2 + $0x498] sm:$0xff]
        %v3482 = vld [vmem:[#allocation2 + $0x4a0] sm:$0xff]
        %v3483 = vld [vmem:[#allocation2 + $0x4a8] sm:$0xff]
        %v3484 = vld [vmem:[#allocation2 + $0x4b0] sm:$0xff]
        %v3485 = vld [vmem:[#allocation2 + $0x4b8] sm:$0xff]
        %v3486 = vld [vmem:[#allocation2 + $0x4c0] sm:$0xff]
        %v3487 = vld [vmem:[#allocation2 + $0x4c8] sm:$0xff]
        %v3488 = vld [vmem:[#allocation2 + $0x4d0] sm:$0xff]
        %v3489 = vld [vmem:[#allocation2 + $0x4d8] sm:$0xff]
        %v3490 = vld [vmem:[#allocation2 + $0x4e0] sm:$0xff]
        %v3491 = vld [vmem:[#allocation2 + $0x4e8] sm:$0xff]
        %v3492 = vld [vmem:[#allocation2 + $0x4f0] sm:$0xff]
        %v3493 = vld [vmem:[#allocation2 + $0x4f8] sm:$0xff]
        %v3494 = vld [vmem:[#allocation2 + $0x500] sm:$0xff]
        %v3495 = vld [vmem:[#allocation2 + $0x508] sm:$0xff]
        %v3496 = vld [vmem:[#allocation2 + $0x510] sm:$0xff]
        %v3497 = vld [vmem:[#allocation2 + $0x518] sm:$0xff]
        %v3498 = vld [vmem:[#allocation2 + $0x520] sm:$0xff]
        %v3499 = vld [vmem:[#allocation2 + $0x528] sm:$0xff]
        %v3500 = vld [vmem:[#allocation2 + $0x530] sm:$0xff]
        %v3501 = vld [vmem:[#allocation2 + $0x538] sm:$0xff]
        %v3502 = vld [vmem:[#allocation2 + $0x540] sm:$0xff]
        %v3503 = vld [vmem:[#allocation2 + $0x548] sm:$0xff]
        %v3504 = vld [vmem:[#allocation2 + $0x550] sm:$0xff]
        %v3505 = vld [vmem:[#allocation2 + $0x558] sm:$0xff]
        %v3506 = vld [vmem:[#allocation2 + $0x560] sm:$0xff]
        %v3507 = vld [vmem:[#allocation2 + $0x568] sm:$0xff]
        %v3508 = vld [vmem:[#allocation2 + $0x570] sm:$0xff]
        %v3509 = vld [vmem:[#allocation2 + $0x578] sm:$0xff]
        %v3510 = vld [vmem:[#allocation2 + $0x580] sm:$0xff]
        %v3511 = vld [vmem:[#allocation2 + $0x588] sm:$0xff]
        %v3512 = vld [vmem:[#allocation2 + $0x590] sm:$0xff]
        %v3513 = vld [vmem:[#allocation2 + $0x598] sm:$0xff]
        %v3514 = vld [vmem:[#allocation2 + $0x5a0] sm:$0xff]
        %v3515 = vld [vmem:[#allocation2 + $0x5a8] sm:$0xff]
        %v3516 = vld [vmem:[#allocation2 + $0x5b0] sm:$0xff]
        %v3517 = vld [vmem:[#allocation2 + $0x5b8] sm:$0xff]
        %v3518 = vld [vmem:[#allocation2 + $0x5c0] sm:$0xff]
        %v3519 = vld [vmem:[#allocation2 + $0x5c8] sm:$0xff]
        %v3520 = vld [vmem:[#allocation2 + $0x5d0] sm:$0xff]
        %v3521 = vld [vmem:[#allocation2 + $0x5d8] sm:$0xff]
        %v3522 = vld [vmem:[#allocation2 + $0x5e0] sm:$0xff]
        %v3523 = vld [vmem:[#allocation2 + $0x5e8] sm:$0xff]
        %v3524 = vld [vmem:[#allocation2 + $0x5f0] sm:$0xff]
        %v3525 = vld [vmem:[#allocation2 + $0x5f8] sm:$0xff]
        %v3526 = vld [vmem:[#allocation2 + $0x600] sm:$0xff]
        %v3527 = vld [vmem:[#allocation2 + $0x608] sm:$0xff]
        %v3528 = vld [vmem:[#allocation2 + $0x610] sm:$0xff]
        %v3529 = vld [vmem:[#allocation2 + $0x618] sm:$0xff]
        %v3530 = vld [vmem:[#allocation2 + $0x620] sm:$0xff]
        %v3531 = vld [vmem:[#allocation2 + $0x628] sm:$0xff]
        %v3532 = vld [vmem:[#allocation2 + $0x630] sm:$0xff]
        %v3533 = vld [vmem:[#allocation2 + $0x638] sm:$0xff]
        %v3534 = vld [vmem:[#allocation2 + $0x640] sm:$0xff]
        %v3535 = vld [vmem:[#allocation2 + $0x648] sm:$0xff]
        %v3536 = vld [vmem:[#allocation2 + $0x650] sm:$0xff]
        %v3537 = vld [vmem:[#allocation2 + $0x658] sm:$0xff]
        %v3538 = vld [vmem:[#allocation2 + $0x660] sm:$0xff]
        %v3539 = vld [vmem:[#allocation2 + $0x668] sm:$0xff]
        %v3540 = vld [vmem:[#allocation2 + $0x670] sm:$0xff]
        %v3541 = vld [vmem:[#allocation2 + $0x678] sm:$0xff]
        %v3542 = vld [vmem:[#allocation2 + $0x680] sm:$0xff]
        %v3543 = vld [vmem:[#allocation2 + $0x688] sm:$0xff]
        %v3544 = vld [vmem:[#allocation2 + $0x690] sm:$0xff]
        %v3545 = vld [vmem:[#allocation2 + $0x698] sm:$0xff]
        %v3546 = vld [vmem:[#allocation2 + $0x6a0] sm:$0xff]
        %v3547 = vld [vmem:[#allocation2 + $0x6a8] sm:$0xff]
        %v3548 = vld [vmem:[#allocation2 + $0x6b0] sm:$0xff]
        %v3549 = vld [vmem:[#allocation2 + $0x6b8] sm:$0xff]
        %v3550 = vld [vmem:[#allocation2 + $0x6c0] sm:$0xff]
        %v3551 = vld [vmem:[#allocation2 + $0x6c8] sm:$0xff]
        %v3552 = vld [vmem:[#allocation2 + $0x6d0] sm:$0xff]
        %v3553 = vld [vmem:[#allocation2 + $0x6d8] sm:$0xff]
        %v3554 = vld [vmem:[#allocation2 + $0x6e0] sm:$0xff]
        %v3555 = vld [vmem:[#allocation2 + $0x6e8] sm:$0xff]
        %v3556 = vld [vmem:[#allocation2 + $0x6f0] sm:$0xff]
        %v3557 = vld [vmem:[#allocation2 + $0x6f8] sm:$0xff]
        %v3558 = vld [vmem:[#allocation2 + $0x700] sm:$0xff]
        %v3559 = vld [vmem:[#allocation2 + $0x708] sm:$0xff]
        %v3560 = vld [vmem:[#allocation2 + $0x710] sm:$0xff]
        %v3561 = vld [vmem:[#allocation2 + $0x718] sm:$0xff]
        %v3562 = vld [vmem:[#allocation2 + $0x720] sm:$0xff]
        %v3563 = vld [vmem:[#allocation2 + $0x728] sm:$0xff]
        %v3564 = vld [vmem:[#allocation2 + $0x730] sm:$0xff]
        %v3565 = vld [vmem:[#allocation2 + $0x738] sm:$0xff]
        %v3566 = vld [vmem:[#allocation2 + $0x740] sm:$0xff]
        %v3567 = vld [vmem:[#allocation2 + $0x748] sm:$0xff]
        %v3568 = vld [vmem:[#allocation2 + $0x750] sm:$0xff]
        %v3569 = vld [vmem:[#allocation2 + $0x758] sm:$0xff]
        %v3570 = vld [vmem:[#allocation2 + $0x760] sm:$0xff]
        %v3571 = vld [vmem:[#allocation2 + $0x768] sm:$0xff]
        %v3572 = vld [vmem:[#allocation2 + $0x770] sm:$0xff]
        %v3573 = vld [vmem:[#allocation2 + $0x778] sm:$0xff]
        %v3574 = vld [vmem:[#allocation2 + $0x780] sm:$0xff]
        %v3575 = vld [vmem:[#allocation2 + $0x788] sm:$0xff]
        %v3576 = vld [vmem:[#allocation2 + $0x790] sm:$0xff]
        %v3577 = vld [vmem:[#allocation2 + $0x798] sm:$0xff]
        %v3578 = vld [vmem:[#allocation2 + $0x7a0] sm:$0xff]
        %v3579 = vld [vmem:[#allocation2 + $0x7a8] sm:$0xff]
        %v3580 = vld [vmem:[#allocation2 + $0x7b0] sm:$0xff]
        %v3581 = vld [vmem:[#allocation2 + $0x7b8] sm:$0xff]
        %v3582 = vld [vmem:[#allocation2 + $0x7c0] sm:$0xff]
        %v3583 = vld [vmem:[#allocation2 + $0x7c8] sm:$0xff]
        %v3584 = vld [vmem:[#allocation2 + $0x7d0] sm:$0xff]
        %v3585 = vld [vmem:[#allocation2 + $0x7d8] sm:$0xff]
        %v3586 = vld [vmem:[#allocation2 + $0x7e0] sm:$0xff]
        %v3587 = vld [vmem:[#allocation2 + $0x7e8] sm:$0xff]
        %v3588 = vld [vmem:[#allocation2 + $0x7f0] sm:$0xff]
        %v3589 = vld [vmem:[#allocation2 + $0x7f8] sm:$0xff]
        %v3590 = vld [vmem:[#allocation2 + $0x800] sm:$0xff]
        %v3591 = vld [vmem:[#allocation2 + $0x808] sm:$0xff]
        %v3592 = vld [vmem:[#allocation2 + $0x810] sm:$0xff]
        %v3593 = vld [vmem:[#allocation2 + $0x818] sm:$0xff]
        %v3594 = vld [vmem:[#allocation2 + $0x820] sm:$0xff]
        %v3595 = vld [vmem:[#allocation2 + $0x828] sm:$0xff]
        %v3596 = vld [vmem:[#allocation2 + $0x830] sm:$0xff]
        %v3597 = vld [vmem:[#allocation2 + $0x838] sm:$0xff]
        %v3598 = vld [vmem:[#allocation2 + $0x840] sm:$0xff]
        %v3599 = vld [vmem:[#allocation2 + $0x848] sm:$0xff]
        %v3600 = vld [vmem:[#allocation2 + $0x850] sm:$0xff]
        %v3601 = vld [vmem:[#allocation2 + $0x858] sm:$0xff]
        %v3602 = vld [vmem:[#allocation2 + $0x860] sm:$0xff]
        %v3603 = vld [vmem:[#allocation2 + $0x868] sm:$0xff]
        %v3604 = vld [vmem:[#allocation2 + $0x870] sm:$0xff]
        %v3605 = vld [vmem:[#allocation2 + $0x878] sm:$0xff]
        %v3606 = vld [vmem:[#allocation2 + $0x880] sm:$0xff]
        %v3607 = vld [vmem:[#allocation2 + $0x888] sm:$0xff]
        %v3608 = vld [vmem:[#allocation2 + $0x890] sm:$0xff]
        %v3609 = vld [vmem:[#allocation2 + $0x898] sm:$0xff]
        %v3610 = vld [vmem:[#allocation2 + $0x8a0] sm:$0xff]
        %v3611 = vld [vmem:[#allocation2 + $0x8a8] sm:$0xff]
        %v3612 = vld [vmem:[#allocation2 + $0x8b0] sm:$0xff]
        %v3613 = vld [vmem:[#allocation2 + $0x8b8] sm:$0xff]
        %v3614 = vld [vmem:[#allocation2 + $0x8c0] sm:$0xff]
        %v3615 = vld [vmem:[#allocation2 + $0x8c8] sm:$0xff]
        %v3616 = vld [vmem:[#allocation2 + $0x8d0] sm:$0xff]
        %v3617 = vld [vmem:[#allocation2 + $0x8d8] sm:$0xff]
        %v3618 = vld [vmem:[#allocation2 + $0x8e0] sm:$0xff]
        %v3619 = vld [vmem:[#allocation2 + $0x8e8] sm:$0xff]
        %v3620 = vld [vmem:[#allocation2 + $0x8f0] sm:$0xff]
        %v3621 = vld [vmem:[#allocation2 + $0x8f8] sm:$0xff]
        %v3622 = vpack.c.bf16 %v3343, %v3334
        %v3623 = vpack.c.bf16 %v3344, %v3335
        %v3624 = vpack.c.bf16 %v3345, %v3336
        %v3625 = vpack.c.bf16 %v3346, %v3337
        %v3626 = vpack.c.bf16 %v3347, %v3338
        %v3627 = vpack.c.bf16 %v3348, %v3339
        %v3628 = vpack.c.bf16 %v3349, %v3340
        %v3629 = vpack.c.bf16 %v3350, %v3341
        %v3630 = vpack.c.bf16 %v3351, %v3342
        %v3631 = vpack.c.bf16 %v3361, %v3352
        %v3632 = vpack.c.bf16 %v3362, %v3353
        %v3633 = vpack.c.bf16 %v3363, %v3354
        %v3634 = vpack.c.bf16 %v3364, %v3355
        %v3635 = vpack.c.bf16 %v3365, %v3356
        %v3636 = vpack.c.bf16 %v3366, %v3357
        %v3637 = vpack.c.bf16 %v3367, %v3358
        %v3638 = vpack.c.bf16 %v3368, %v3359
        %v3639 = vpack.c.bf16 %v3369, %v3360
        %v3640 = vpack.c.bf16 %v3379, %v3370
        %v3641 = vpack.c.bf16 %v3380, %v3371
        %v3642 = vpack.c.bf16 %v3381, %v3372
        %v3643 = vpack.c.bf16 %v3382, %v3373
        %v3644 = vpack.c.bf16 %v3383, %v3374
        %v3645 = vpack.c.bf16 %v3384, %v3375
        %v3646 = vpack.c.bf16 %v3385, %v3376
        %v3647 = vpack.c.bf16 %v3386, %v3377
        %v3648 = vpack.c.bf16 %v3387, %v3378
        %v3649 = vpack.c.bf16 %v3397, %v3388
        %v3650 = vpack.c.bf16 %v3398, %v3389
        %v3651 = vpack.c.bf16 %v3399, %v3390
        %v3652 = vpack.c.bf16 %v3400, %v3391
        %v3653 = vpack.c.bf16 %v3401, %v3392
        %v3654 = vpack.c.bf16 %v3402, %v3393
        %v3655 = vpack.c.bf16 %v3403, %v3394
        %v3656 = vpack.c.bf16 %v3404, %v3395
        %v3657 = vpack.c.bf16 %v3405, %v3396
        %v3658 = vpack.c.bf16 %v3415, %v3406
        %v3659 = vpack.c.bf16 %v3416, %v3407
        %v3660 = vpack.c.bf16 %v3417, %v3408
        %v3661 = vpack.c.bf16 %v3418, %v3409
        %v3662 = vpack.c.bf16 %v3419, %v3410
        %v3663 = vpack.c.bf16 %v3420, %v3411
        %v3664 = vpack.c.bf16 %v3421, %v3412
        %v3665 = vpack.c.bf16 %v3422, %v3413
        %v3666 = vpack.c.bf16 %v3423, %v3414
        %v3667 = vpack.c.bf16 %v3433, %v3424
        %v3668 = vpack.c.bf16 %v3434, %v3425
        %v3669 = vpack.c.bf16 %v3435, %v3426
        %v3670 = vpack.c.bf16 %v3436, %v3427
        %v3671 = vpack.c.bf16 %v3437, %v3428
        %v3672 = vpack.c.bf16 %v3438, %v3429
        %v3673 = vpack.c.bf16 %v3439, %v3430
        %v3674 = vpack.c.bf16 %v3440, %v3431
        %v3675 = vpack.c.bf16 %v3441, %v3432
        %v3676 = vpack.c.bf16 %v3451, %v3442
        %v3677 = vpack.c.bf16 %v3452, %v3443
        %v3678 = vpack.c.bf16 %v3453, %v3444
        %v3679 = vpack.c.bf16 %v3454, %v3445
        %v3680 = vpack.c.bf16 %v3455, %v3446
        %v3681 = vpack.c.bf16 %v3456, %v3447
        %v3682 = vpack.c.bf16 %v3457, %v3448
        %v3683 = vpack.c.bf16 %v3458, %v3449
        %v3684 = vpack.c.bf16 %v3459, %v3450
        %v3685 = vpack.c.bf16 %v3469, %v3460
        %v3686 = vpack.c.bf16 %v3470, %v3461
        %v3687 = vpack.c.bf16 %v3471, %v3462
        %v3688 = vpack.c.bf16 %v3472, %v3463
        %v3689 = vpack.c.bf16 %v3473, %v3464
        %v3690 = vpack.c.bf16 %v3474, %v3465
        %v3691 = vpack.c.bf16 %v3475, %v3466
        %v3692 = vpack.c.bf16 %v3476, %v3467
        %v3693 = vpack.c.bf16 %v3477, %v3468
        %v3694 = vpack.c.bf16 %v3487, %v3478
        %v3695 = vpack.c.bf16 %v3488, %v3479
        %v3696 = vpack.c.bf16 %v3489, %v3480
        %v3697 = vpack.c.bf16 %v3490, %v3481
        %v3698 = vpack.c.bf16 %v3491, %v3482
        %v3699 = vpack.c.bf16 %v3492, %v3483
        %v3700 = vpack.c.bf16 %v3493, %v3484
        %v3701 = vpack.c.bf16 %v3494, %v3485
        %v3702 = vpack.c.bf16 %v3495, %v3486
        %v3703 = vpack.c.bf16 %v3505, %v3496
        %v3704 = vpack.c.bf16 %v3506, %v3497
        %v3705 = vpack.c.bf16 %v3507, %v3498
        %v3706 = vpack.c.bf16 %v3508, %v3499
        %v3707 = vpack.c.bf16 %v3509, %v3500
        %v3708 = vpack.c.bf16 %v3510, %v3501
        %v3709 = vpack.c.bf16 %v3511, %v3502
        %v3710 = vpack.c.bf16 %v3512, %v3503
        %v3711 = vpack.c.bf16 %v3513, %v3504
        %v3712 = vpack.c.bf16 %v3523, %v3514
        %v3713 = vpack.c.bf16 %v3524, %v3515
        %v3714 = vpack.c.bf16 %v3525, %v3516
        %v3715 = vpack.c.bf16 %v3526, %v3517
        %v3716 = vpack.c.bf16 %v3527, %v3518
        %v3717 = vpack.c.bf16 %v3528, %v3519
        %v3718 = vpack.c.bf16 %v3529, %v3520
        %v3719 = vpack.c.bf16 %v3530, %v3521
        %v3720 = vpack.c.bf16 %v3531, %v3522
        %v3721 = vpack.c.bf16 %v3541, %v3532
        %v3722 = vpack.c.bf16 %v3542, %v3533
        %v3723 = vpack.c.bf16 %v3543, %v3534
        %v3724 = vpack.c.bf16 %v3544, %v3535
        %v3725 = vpack.c.bf16 %v3545, %v3536
        %v3726 = vpack.c.bf16 %v3546, %v3537
        %v3727 = vpack.c.bf16 %v3547, %v3538
        %v3728 = vpack.c.bf16 %v3548, %v3539
        %v3729 = vpack.c.bf16 %v3549, %v3540
        %v3730 = vpack.c.bf16 %v3559, %v3550
        %v3731 = vpack.c.bf16 %v3560, %v3551
        %v3732 = vpack.c.bf16 %v3561, %v3552
        %v3733 = vpack.c.bf16 %v3562, %v3553
        %v3734 = vpack.c.bf16 %v3563, %v3554
        %v3735 = vpack.c.bf16 %v3564, %v3555
        %v3736 = vpack.c.bf16 %v3565, %v3556
        %v3737 = vpack.c.bf16 %v3566, %v3557
        %v3738 = vpack.c.bf16 %v3567, %v3558
        %v3739 = vpack.c.bf16 %v3577, %v3568
        %v3740 = vpack.c.bf16 %v3578, %v3569
        %v3741 = vpack.c.bf16 %v3579, %v3570
        %v3742 = vpack.c.bf16 %v3580, %v3571
        %v3743 = vpack.c.bf16 %v3581, %v3572
        %v3744 = vpack.c.bf16 %v3582, %v3573
        %v3745 = vpack.c.bf16 %v3583, %v3574
        %v3746 = vpack.c.bf16 %v3584, %v3575
        %v3747 = vpack.c.bf16 %v3585, %v3576
        %v3748 = vpack.c.bf16 %v3595, %v3586
        %v3749 = vpack.c.bf16 %v3596, %v3587
        %v3750 = vpack.c.bf16 %v3597, %v3588
        %v3751 = vpack.c.bf16 %v3598, %v3589
        %v3752 = vpack.c.bf16 %v3599, %v3590
        %v3753 = vpack.c.bf16 %v3600, %v3591
        %v3754 = vpack.c.bf16 %v3601, %v3592
        %v3755 = vpack.c.bf16 %v3602, %v3593
        %v3756 = vpack.c.bf16 %v3603, %v3594
        %v3757 = vpack.c.bf16 %v3613, %v3604
        %v3758 = vpack.c.bf16 %v3614, %v3605
        %v3759 = vpack.c.bf16 %v3615, %v3606
        %v3760 = vpack.c.bf16 %v3616, %v3607
        %v3761 = vpack.c.bf16 %v3617, %v3608
        %v3762 = vpack.c.bf16 %v3618, %v3609
        %v3763 = vpack.c.bf16 %v3619, %v3610
        %v3764 = vpack.c.bf16 %v3620, %v3611
        %v3765 = vpack.c.bf16 %v3621, %v3612
        %v3766 = vld [vmem:[#allocation8] sm:$0xf]
        %v3767 = vld [vmem:[#allocation8 + $0x4] sm:$0xf]
        %v3768 = vld [vmem:[#allocation8 + $0x8] sm:$0xf]
        %v3769 = vld [vmem:[#allocation8 + $0xc] sm:$0xf]
        %v3770 = vld [vmem:[#allocation8 + $0x10] sm:$0xf]
        %v3771 = vld [vmem:[#allocation8 + $0x14] sm:$0xf]
        %v3772 = vld [vmem:[#allocation8 + $0x18] sm:$0xf]
        %v3773 = vld [vmem:[#allocation8 + $0x1c] sm:$0xf]
        %v3774 = vld [vmem:[#allocation8 + $0x20] sm:$0xf]
        %v3775 = vld [vmem:[#allocation8 + $0x24] sm:$0xf]
        %v3776 = vld [vmem:[#allocation8 + $0x28] sm:$0xf]
        %v3777 = vld [vmem:[#allocation8 + $0x2c] sm:$0xf]
        %v3778 = vld [vmem:[#allocation8 + $0x30] sm:$0xf]
        %v3779 = vld [vmem:[#allocation8 + $0x34] sm:$0xf]
        %v3780 = vld [vmem:[#allocation8 + $0x38] sm:$0xf]
        %v3781 = vld [vmem:[#allocation8 + $0x3c] sm:$0xf]
        %v3782 = vld [vmem:[#allocation8 + $0x40] sm:$0xf]
        %v3783 = vld [vmem:[#allocation8 + $0x44] sm:$0xf]
        %v3784 = vld [vmem:[#allocation8 + $0x48] sm:$0xf]
        %v3785 = vld [vmem:[#allocation8 + $0x4c] sm:$0xf]
        %v3786 = vld [vmem:[#allocation8 + $0x50] sm:$0xf]
        %v3787 = vld [vmem:[#allocation8 + $0x54] sm:$0xf]
        %v3788 = vld [vmem:[#allocation8 + $0x58] sm:$0xf]
        %v3789 = vld [vmem:[#allocation8 + $0x5c] sm:$0xf]
        %v3790 = vld [vmem:[#allocation8 + $0x60] sm:$0xf]
        %v3791 = vld [vmem:[#allocation8 + $0x64] sm:$0xf]
        %v3792 = vld [vmem:[#allocation8 + $0x68] sm:$0xf]
        %v3793 = vld [vmem:[#allocation8 + $0x6c] sm:$0xf]
        %v3794 = vld [vmem:[#allocation8 + $0x70] sm:$0xf]
        %v3795 = vld [vmem:[#allocation8 + $0x74] sm:$0xf]
        %v3796 = vld [vmem:[#allocation8 + $0x78] sm:$0xf]
        %v3797 = vld [vmem:[#allocation8 + $0x7c] sm:$0xf]
        %v3798 = vld [vmem:[#allocation8 + $0x80] sm:$0xf]
        %v3799 = vld [vmem:[#allocation8 + $0x84] sm:$0xf]
        %v3800 = vld [vmem:[#allocation8 + $0x88] sm:$0xf]
        %v3801 = vld [vmem:[#allocation8 + $0x8c] sm:$0xf]
        %v3802 = vld [vmem:[#allocation8 + $0x90] sm:$0xf]
        %v3803 = vld [vmem:[#allocation8 + $0x94] sm:$0xf]
        %v3804 = vld [vmem:[#allocation8 + $0x98] sm:$0xf]
        %v3805 = vld [vmem:[#allocation8 + $0x9c] sm:$0xf]
        %v3806 = vld [vmem:[#allocation8 + $0xa0] sm:$0xf]
        %v3807 = vld [vmem:[#allocation8 + $0xa4] sm:$0xf]
        %v3808 = vld [vmem:[#allocation8 + $0xa8] sm:$0xf]
        %v3809 = vld [vmem:[#allocation8 + $0xac] sm:$0xf]
        %v3810 = vld [vmem:[#allocation8 + $0xb0] sm:$0xf]
        %v3811 = vld [vmem:[#allocation8 + $0xb4] sm:$0xf]
        %v3812 = vld [vmem:[#allocation8 + $0xb8] sm:$0xf]
        %v3813 = vld [vmem:[#allocation8 + $0xbc] sm:$0xf]
        %v3814 = vld [vmem:[#allocation8 + $0xc0] sm:$0xf]
        %v3815 = vld [vmem:[#allocation8 + $0xc4] sm:$0xf]
        %v3816 = vld [vmem:[#allocation8 + $0xc8] sm:$0xf]
        %v3817 = vld [vmem:[#allocation8 + $0xcc] sm:$0xf]
        %v3818 = vld [vmem:[#allocation8 + $0xd0] sm:$0xf]
        %v3819 = vld [vmem:[#allocation8 + $0xd4] sm:$0xf]
        %v3820 = vld [vmem:[#allocation8 + $0xd8] sm:$0xf]
        %v3821 = vld [vmem:[#allocation8 + $0xdc] sm:$0xf]
        %v3822 = vld [vmem:[#allocation8 + $0xe0] sm:$0xf]
        %v3823 = vld [vmem:[#allocation8 + $0xe4] sm:$0xf]
        %v3824 = vld [vmem:[#allocation8 + $0xe8] sm:$0xf]
        %v3825 = vld [vmem:[#allocation8 + $0xec] sm:$0xf]
        %v3826 = vld [vmem:[#allocation8 + $0xf0] sm:$0xf]
        %v3827 = vld [vmem:[#allocation8 + $0xf4] sm:$0xf]
        %v3828 = vld [vmem:[#allocation8 + $0xf8] sm:$0xf]
        %v3829 = vld [vmem:[#allocation8 + $0xfc] sm:$0xf]
        %v3830 = vld [vmem:[#allocation8 + $0x100] sm:$0xf]
        %v3831 = vld [vmem:[#allocation8 + $0x104] sm:$0xf]
        %v3832 = vld [vmem:[#allocation8 + $0x108] sm:$0xf]
        %v3833 = vld [vmem:[#allocation8 + $0x10c] sm:$0xf]
        %v3834 = vld [vmem:[#allocation8 + $0x110] sm:$0xf]
        %v3835 = vld [vmem:[#allocation8 + $0x114] sm:$0xf]
        %v3836 = vld [vmem:[#allocation8 + $0x118] sm:$0xf]
        %v3837 = vld [vmem:[#allocation8 + $0x11c] sm:$0xf]
        %v3838 = vld [vmem:[#allocation8 + $0x120] sm:$0xf]
        %v3839 = vld [vmem:[#allocation8 + $0x124] sm:$0xf]
        %v3840 = vld [vmem:[#allocation8 + $0x128] sm:$0xf]
        %v3841 = vld [vmem:[#allocation8 + $0x12c] sm:$0xf]
        %v3842 = vld [vmem:[#allocation8 + $0x130] sm:$0xf]
        %v3843 = vld [vmem:[#allocation8 + $0x134] sm:$0xf]
        %v3844 = vld [vmem:[#allocation8 + $0x138] sm:$0xf]
        %v3845 = vld [vmem:[#allocation8 + $0x13c] sm:$0xf]
        %v3846 = vld [vmem:[#allocation8 + $0x140] sm:$0xf]
        %v3847 = vld [vmem:[#allocation8 + $0x144] sm:$0xf]
        %v3848 = vld [vmem:[#allocation8 + $0x148] sm:$0xf]
        %v3849 = vld [vmem:[#allocation8 + $0x14c] sm:$0xf]
        %v3850 = vld [vmem:[#allocation8 + $0x150] sm:$0xf]
        %v3851 = vld [vmem:[#allocation8 + $0x154] sm:$0xf]
        %v3852 = vld [vmem:[#allocation8 + $0x158] sm:$0xf]
        %v3853 = vld [vmem:[#allocation8 + $0x15c] sm:$0xf]
        %v3854 = vld [vmem:[#allocation8 + $0x160] sm:$0xf]
        %v3855 = vld [vmem:[#allocation8 + $0x164] sm:$0xf]
        %v3856 = vld [vmem:[#allocation8 + $0x168] sm:$0xf]
        %v3857 = vld [vmem:[#allocation8 + $0x16c] sm:$0xf]
        %v3858 = vld [vmem:[#allocation8 + $0x170] sm:$0xf]
        %v3859 = vld [vmem:[#allocation8 + $0x174] sm:$0xf]
        %v3860 = vld [vmem:[#allocation8 + $0x178] sm:$0xf]
        %v3861 = vld [vmem:[#allocation8 + $0x17c] sm:$0xf]
        %v3862 = vld [vmem:[#allocation8 + $0x180] sm:$0xf]
        %v3863 = vld [vmem:[#allocation8 + $0x184] sm:$0xf]
        %v3864 = vld [vmem:[#allocation8 + $0x188] sm:$0xf]
        %v3865 = vld [vmem:[#allocation8 + $0x18c] sm:$0xf]
        %v3866 = vld [vmem:[#allocation8 + $0x190] sm:$0xf]
        %v3867 = vld [vmem:[#allocation8 + $0x194] sm:$0xf]
        %v3868 = vld [vmem:[#allocation8 + $0x198] sm:$0xf]
        %v3869 = vld [vmem:[#allocation8 + $0x19c] sm:$0xf]
        %v3870 = vld [vmem:[#allocation8 + $0x1a0] sm:$0xf]
        %v3871 = vld [vmem:[#allocation8 + $0x1a4] sm:$0xf]
        %v3872 = vld [vmem:[#allocation8 + $0x1a8] sm:$0xf]
        %v3873 = vld [vmem:[#allocation8 + $0x1ac] sm:$0xf]
        %v3874 = vld [vmem:[#allocation8 + $0x1b0] sm:$0xf]
        %v3875 = vld [vmem:[#allocation8 + $0x1b4] sm:$0xf]
        %v3876 = vld [vmem:[#allocation8 + $0x1b8] sm:$0xf]
        %v3877 = vld [vmem:[#allocation8 + $0x1bc] sm:$0xf]
        %v3878 = vld [vmem:[#allocation8 + $0x1c0] sm:$0xf]
        %v3879 = vld [vmem:[#allocation8 + $0x1c4] sm:$0xf]
        %v3880 = vld [vmem:[#allocation8 + $0x1c8] sm:$0xf]
        %v3881 = vld [vmem:[#allocation8 + $0x1cc] sm:$0xf]
        %v3882 = vld [vmem:[#allocation8 + $0x1d0] sm:$0xf]
        %v3883 = vld [vmem:[#allocation8 + $0x1d4] sm:$0xf]
        %v3884 = vld [vmem:[#allocation8 + $0x1d8] sm:$0xf]
        %v3885 = vld [vmem:[#allocation8 + $0x1dc] sm:$0xf]
        %v3886 = vld [vmem:[#allocation8 + $0x1e0] sm:$0xf]
        %v3887 = vld [vmem:[#allocation8 + $0x1e4] sm:$0xf]
        %v3888 = vld [vmem:[#allocation8 + $0x1e8] sm:$0xf]
        %v3889 = vld [vmem:[#allocation8 + $0x1ec] sm:$0xf]
        %v3890 = vld [vmem:[#allocation8 + $0x1f0] sm:$0xf]
        %v3891 = vld [vmem:[#allocation8 + $0x1f4] sm:$0xf]
        %v3892 = vld [vmem:[#allocation8 + $0x1f8] sm:$0xf]
        %v3893 = vld [vmem:[#allocation8 + $0x1fc] sm:$0xf]
        %v3894 = vld [vmem:[#allocation8 + $0x200] sm:$0xf]
        %v3895 = vld [vmem:[#allocation8 + $0x204] sm:$0xf]
        %v3896 = vld [vmem:[#allocation8 + $0x208] sm:$0xf]
        %v3897 = vld [vmem:[#allocation8 + $0x20c] sm:$0xf]
        %v3898 = vld [vmem:[#allocation8 + $0x210] sm:$0xf]
        %v3899 = vld [vmem:[#allocation8 + $0x214] sm:$0xf]
        %v3900 = vld [vmem:[#allocation8 + $0x218] sm:$0xf]
        %v3901 = vld [vmem:[#allocation8 + $0x21c] sm:$0xf]
        %v3902 = vld [vmem:[#allocation8 + $0x220] sm:$0xf]
        %v3903 = vld [vmem:[#allocation8 + $0x224] sm:$0xf]
        %v3904 = vld [vmem:[#allocation8 + $0x228] sm:$0xf]
        %v3905 = vld [vmem:[#allocation8 + $0x22c] sm:$0xf]
        %v3906 = vld [vmem:[#allocation8 + $0x230] sm:$0xf]
        %v3907 = vld [vmem:[#allocation8 + $0x234] sm:$0xf]
        %v3908 = vld [vmem:[#allocation8 + $0x238] sm:$0xf]
        %v3909 = vld [vmem:[#allocation8 + $0x23c] sm:$0xf]
        %v3910 = vld [vmem:[%s4] sm:$0x1]
        %v3912 = vlaneseq
        %v3913 = vshrl.u32 %v3912, 7
        %v3914 = vsub.s32 0, %v3913
        %v3915 = vrot.slane %v3910, %v3914
        %v4061 = vunpack.c.l.b16 %v3766
        %v4062 = vunpack.c.l.b16 %v3767
        %v4063 = vunpack.c.l.b16 %v3768
        %v4064 = vunpack.c.l.b16 %v3769
        %v4065 = vunpack.c.l.b16 %v3770
        %v4066 = vunpack.c.l.b16 %v3771
        %v4067 = vunpack.c.l.b16 %v3772
        %v4068 = vunpack.c.l.b16 %v3773
        %v4069 = vunpack.c.l.b16 %v3774
        %v4070 = vunpack.c.l.b16 %v3775
        %v4071 = vunpack.c.l.b16 %v3776
        %v4072 = vunpack.c.l.b16 %v3777
        %v4073 = vunpack.c.l.b16 %v3778
        %v4074 = vunpack.c.l.b16 %v3779
        %v4075 = vunpack.c.l.b16 %v3780
        %v4076 = vunpack.c.l.b16 %v3781
        %v4077 = vunpack.c.l.b16 %v3782
        %v4078 = vunpack.c.l.b16 %v3783
        %v4079 = vunpack.c.l.b16 %v3784
        %v4080 = vunpack.c.l.b16 %v3785
        %v4081 = vunpack.c.l.b16 %v3786
        %v4082 = vunpack.c.l.b16 %v3787
        %v4083 = vunpack.c.l.b16 %v3788
        %v4084 = vunpack.c.l.b16 %v3789
        %v4085 = vunpack.c.l.b16 %v3790
        %v4086 = vunpack.c.l.b16 %v3791
        %v4087 = vunpack.c.l.b16 %v3792
        %v4088 = vunpack.c.l.b16 %v3793
        %v4089 = vunpack.c.l.b16 %v3794
        %v4090 = vunpack.c.l.b16 %v3795
        %v4091 = vunpack.c.l.b16 %v3796
        %v4092 = vunpack.c.l.b16 %v3797
        %v4093 = vunpack.c.l.b16 %v3798
        %v4094 = vunpack.c.l.b16 %v3799
        %v4095 = vunpack.c.l.b16 %v3800
        %v4096 = vunpack.c.l.b16 %v3801
        %v4097 = vunpack.c.l.b16 %v3802
        %v4098 = vunpack.c.l.b16 %v3803
        %v4099 = vunpack.c.l.b16 %v3804
        %v4100 = vunpack.c.l.b16 %v3805
        %v4101 = vunpack.c.l.b16 %v3806
        %v4102 = vunpack.c.l.b16 %v3807
        %v4103 = vunpack.c.l.b16 %v3808
        %v4104 = vunpack.c.l.b16 %v3809
        %v4105 = vunpack.c.l.b16 %v3810
        %v4106 = vunpack.c.l.b16 %v3811
        %v4107 = vunpack.c.l.b16 %v3812
        %v4108 = vunpack.c.l.b16 %v3813
        %v4109 = vunpack.c.l.b16 %v3814
        %v4110 = vunpack.c.l.b16 %v3815
        %v4111 = vunpack.c.l.b16 %v3816
        %v4112 = vunpack.c.l.b16 %v3817
        %v4113 = vunpack.c.l.b16 %v3818
        %v4114 = vunpack.c.l.b16 %v3819
        %v4115 = vunpack.c.l.b16 %v3820
        %v4116 = vunpack.c.l.b16 %v3821
        %v4117 = vunpack.c.l.b16 %v3822
        %v4118 = vunpack.c.l.b16 %v3823
        %v4119 = vunpack.c.l.b16 %v3824
        %v4120 = vunpack.c.l.b16 %v3825
        %v4121 = vunpack.c.l.b16 %v3826
        %v4122 = vunpack.c.l.b16 %v3827
        %v4123 = vunpack.c.l.b16 %v3828
        %v4124 = vunpack.c.l.b16 %v3829
        %v4125 = vunpack.c.l.b16 %v3830
        %v4126 = vunpack.c.l.b16 %v3831
        %v4127 = vunpack.c.l.b16 %v3832
        %v4128 = vunpack.c.l.b16 %v3833
        %v4129 = vunpack.c.l.b16 %v3834
        %v4130 = vunpack.c.l.b16 %v3835
        %v4131 = vunpack.c.l.b16 %v3836
        %v4132 = vunpack.c.l.b16 %v3837
        %v4133 = vunpack.c.l.b16 %v3838
        %v4134 = vunpack.c.l.b16 %v3839
        %v4135 = vunpack.c.l.b16 %v3840
        %v4136 = vunpack.c.l.b16 %v3841
        %v4137 = vunpack.c.l.b16 %v3842
        %v4138 = vunpack.c.l.b16 %v3843
        %v4139 = vunpack.c.l.b16 %v3844
        %v4140 = vunpack.c.l.b16 %v3845
        %v4141 = vunpack.c.l.b16 %v3846
        %v4142 = vunpack.c.l.b16 %v3847
        %v4143 = vunpack.c.l.b16 %v3848
        %v4144 = vunpack.c.l.b16 %v3849
        %v4145 = vunpack.c.l.b16 %v3850
        %v4146 = vunpack.c.l.b16 %v3851
        %v4147 = vunpack.c.l.b16 %v3852
        %v4148 = vunpack.c.l.b16 %v3853
        %v4149 = vunpack.c.l.b16 %v3854
        %v4150 = vunpack.c.l.b16 %v3855
        %v4151 = vunpack.c.l.b16 %v3856
        %v4152 = vunpack.c.l.b16 %v3857
        %v4153 = vunpack.c.l.b16 %v3858
        %v4154 = vunpack.c.l.b16 %v3859
        %v4155 = vunpack.c.l.b16 %v3860
        %v4156 = vunpack.c.l.b16 %v3861
        %v4157 = vunpack.c.l.b16 %v3862
        %v4158 = vunpack.c.l.b16 %v3863
        %v4159 = vunpack.c.l.b16 %v3864
        %v4160 = vunpack.c.l.b16 %v3865
        %v4161 = vunpack.c.l.b16 %v3866
        %v4162 = vunpack.c.l.b16 %v3867
        %v4163 = vunpack.c.l.b16 %v3868
        %v4164 = vunpack.c.l.b16 %v3869
        %v4165 = vunpack.c.l.b16 %v3870
        %v4166 = vunpack.c.l.b16 %v3871
        %v4167 = vunpack.c.l.b16 %v3872
        %v4168 = vunpack.c.l.b16 %v3873
        %v4169 = vunpack.c.l.b16 %v3874
        %v4170 = vunpack.c.l.b16 %v3875
        %v4171 = vunpack.c.l.b16 %v3876
        %v4172 = vunpack.c.l.b16 %v3877
        %v4173 = vunpack.c.l.b16 %v3878
        %v4174 = vunpack.c.l.b16 %v3879
        %v4175 = vunpack.c.l.b16 %v3880
        %v4176 = vunpack.c.l.b16 %v3881
        %v4177 = vunpack.c.l.b16 %v3882
        %v4178 = vunpack.c.l.b16 %v3883
        %v4179 = vunpack.c.l.b16 %v3884
        %v4180 = vunpack.c.l.b16 %v3885
        %v4181 = vunpack.c.l.b16 %v3886
        %v4182 = vunpack.c.l.b16 %v3887
        %v4183 = vunpack.c.l.b16 %v3888
        %v4184 = vunpack.c.l.b16 %v3889
        %v4185 = vunpack.c.l.b16 %v3890
        %v4186 = vunpack.c.l.b16 %v3891
        %v4187 = vunpack.c.l.b16 %v3892
        %v4188 = vunpack.c.l.b16 %v3893
        %v4189 = vunpack.c.l.b16 %v3894
        %v4190 = vunpack.c.l.b16 %v3895
        %v4191 = vunpack.c.l.b16 %v3896
        %v4192 = vunpack.c.l.b16 %v3897
        %v4193 = vunpack.c.l.b16 %v3898
        %v4194 = vunpack.c.l.b16 %v3899
        %v4195 = vunpack.c.l.b16 %v3900
        %v4196 = vunpack.c.l.b16 %v3901
        %v4197 = vunpack.c.l.b16 %v3902
        %v4198 = vunpack.c.l.b16 %v3903
        %v4199 = vunpack.c.l.b16 %v3904
        %v4200 = vunpack.c.l.b16 %v3905
        %v4201 = vunpack.c.l.b16 %v3906
        %v4202 = vunpack.c.l.b16 %v3907
        %v4203 = vunpack.c.l.b16 %v3908
        %v4204 = vunpack.c.l.b16 %v3909
        %v4205 = vpack.c.b16 %v4062, %v4061
        %v4206 = vpack.c.b16 %v4064, %v4063
        %v4207 = vpack.c.b16 %v4066, %v4065
        %v4208 = vpack.c.b16 %v4068, %v4067
        %v4209 = vpack.c.b16 %v4070, %v4069
        %v4210 = vpack.c.b16 %v4072, %v4071
        %v4211 = vpack.c.b16 %v4074, %v4073
        %v4212 = vpack.c.b16 %v4076, %v4075
        %v4213 = vpack.c.b16 %v4078, %v4077
        %v4214 = vpack.c.b16 %v4080, %v4079
        %v4215 = vpack.c.b16 %v4082, %v4081
        %v4216 = vpack.c.b16 %v4084, %v4083
        %v4217 = vpack.c.b16 %v4086, %v4085
        %v4218 = vpack.c.b16 %v4088, %v4087
        %v4219 = vpack.c.b16 %v4090, %v4089
        %v4220 = vpack.c.b16 %v4092, %v4091
        %v4221 = vpack.c.b16 %v4094, %v4093
        %v4222 = vpack.c.b16 %v4096, %v4095
        %v4223 = vpack.c.b16 %v4098, %v4097
        %v4224 = vpack.c.b16 %v4100, %v4099
        %v4225 = vpack.c.b16 %v4102, %v4101
        %v4226 = vpack.c.b16 %v4104, %v4103
        %v4227 = vpack.c.b16 %v4106, %v4105
        %v4228 = vpack.c.b16 %v4108, %v4107
        %v4229 = vpack.c.b16 %v4110, %v4109
        %v4230 = vpack.c.b16 %v4112, %v4111
        %v4231 = vpack.c.b16 %v4114, %v4113
        %v4232 = vpack.c.b16 %v4116, %v4115
        %v4233 = vpack.c.b16 %v4118, %v4117
        %v4234 = vpack.c.b16 %v4120, %v4119
        %v4235 = vpack.c.b16 %v4122, %v4121
        %v4236 = vpack.c.b16 %v4124, %v4123
        %v4237 = vpack.c.b16 %v4126, %v4125
        %v4238 = vpack.c.b16 %v4128, %v4127
        %v4239 = vpack.c.b16 %v4130, %v4129
        %v4240 = vpack.c.b16 %v4132, %v4131
        %v4241 = vpack.c.b16 %v4134, %v4133
        %v4242 = vpack.c.b16 %v4136, %v4135
        %v4243 = vpack.c.b16 %v4138, %v4137
        %v4244 = vpack.c.b16 %v4140, %v4139
        %v4245 = vpack.c.b16 %v4142, %v4141
        %v4246 = vpack.c.b16 %v4144, %v4143
        %v4247 = vpack.c.b16 %v4146, %v4145
        %v4248 = vpack.c.b16 %v4148, %v4147
        %v4249 = vpack.c.b16 %v4150, %v4149
        %v4250 = vpack.c.b16 %v4152, %v4151
        %v4251 = vpack.c.b16 %v4154, %v4153
        %v4252 = vpack.c.b16 %v4156, %v4155
        %v4253 = vpack.c.b16 %v4158, %v4157
        %v4254 = vpack.c.b16 %v4160, %v4159
        %v4255 = vpack.c.b16 %v4162, %v4161
        %v4256 = vpack.c.b16 %v4164, %v4163
        %v4257 = vpack.c.b16 %v4166, %v4165
        %v4258 = vpack.c.b16 %v4168, %v4167
        %v4259 = vpack.c.b16 %v4170, %v4169
        %v4260 = vpack.c.b16 %v4172, %v4171
        %v4261 = vpack.c.b16 %v4174, %v4173
        %v4262 = vpack.c.b16 %v4176, %v4175
        %v4263 = vpack.c.b16 %v4178, %v4177
        %v4264 = vpack.c.b16 %v4180, %v4179
        %v4265 = vpack.c.b16 %v4182, %v4181
        %v4266 = vpack.c.b16 %v4184, %v4183
        %v4267 = vpack.c.b16 %v4186, %v4185
        %v4268 = vpack.c.b16 %v4188, %v4187
        %v4269 = vpack.c.b16 %v4190, %v4189
        %v4270 = vpack.c.b16 %v4192, %v4191
        %v4271 = vpack.c.b16 %v4194, %v4193
        %v4272 = vpack.c.b16 %v4196, %v4195
        %v4273 = vpack.c.b16 %v4198, %v4197
        %v4274 = vpack.c.b16 %v4200, %v4199
        %v4275 = vpack.c.b16 %v4202, %v4201
        %v4276 = vpack.c.b16 %v4204, %v4203
        %4349 = vmatprep.subr.bf16.mxu0 0
        %4350 = vmatpush1.bf16.msra.mxu0 %v4205
        %4351 = vmatprep.subr.bf16.mxu0 0
        %4352 = vmatpush1.bf16.msra.mxu0 %v4206
        %4353 = vmatprep.subr.bf16.mxu0 0
        %4354 = vmatpush1.bf16.msra.mxu0 %v4207
        %4355 = vmatprep.subr.bf16.mxu0 0
        %4356 = vmatpush1.bf16.msra.mxu0 %v4208
        %4357 = vmatprep.subr.bf16.mxu0 0
        %4358 = vmatpush1.bf16.msra.mxu0 %v4209
        %4359 = vmatprep.subr.bf16.mxu0 0
        %4360 = vmatpush1.bf16.msra.mxu0 %v4210
        %4361 = vmatprep.subr.bf16.mxu0 0
        %4362 = vmatpush1.bf16.msra.mxu0 %v4211
        %4363 = vmatprep.subr.bf16.mxu0 0
        %4364 = vmatpush1.bf16.msra.mxu0 %v4212
        %4365 = vmatprep.subr.bf16.mxu0 0
        %4366 = vmatpush1.bf16.msra.mxu0 %v4213
        %4367 = vmatprep.subr.bf16.mxu0 0
        %4368 = vmatpush1.bf16.msra.mxu0 %v4214
        %4369 = vmatprep.subr.bf16.mxu0 0
        %4370 = vmatpush1.bf16.msra.mxu0 %v4215
        %4371 = vmatprep.subr.bf16.mxu0 0
        %4372 = vmatpush1.bf16.msra.mxu0 %v4216
        %4373 = vmatprep.subr.bf16.mxu0 0
        %4374 = vmatpush1.bf16.msra.mxu0 %v4217
        %4375 = vmatprep.subr.bf16.mxu0 0
        %4376 = vmatpush1.bf16.msra.mxu0 %v4218
        %4377 = vmatprep.subr.bf16.mxu0 0
        %4378 = vmatpush1.bf16.msra.mxu0 %v4219
        %4379 = vmatprep.subr.bf16.mxu0 0
        %4380 = vmatpush1.bf16.msra.mxu0 %v4220
        %4381 = vmatprep.mubr.bf16.mxu0 %v3623
        %4382 = vmatmul.mubr.bf16.gmra.mrb[0].mxu0 %v3622
        %v4383 = vpop.f32.mrb[0].mxu0
        %v4384 = vadd.f32 %v3915, %v4383
        %v4385 = vpop.f32.mrb[0].mxu0
        %v4386 = vpop.f32.mrb[0].mxu0
        %v4387 = vadd.f32 %v3915, %v4386
        %v4388 = vpop.f32.mrb[0].mxu0
        %4389 = vmatprep.mubr.bf16.mxu0 %v3632
        %4390 = vmatmul.mubr.bf16.gmra.mrb[0].mxu0 %v3631
        %v4391 = vpop.f32.mrb[0].mxu0
        %v4392 = vadd.f32 %v3915, %v4391
        %v4393 = vpop.f32.mrb[0].mxu0
        %v4394 = vpop.f32.mrb[0].mxu0
        %v4395 = vadd.f32 %v3915, %v4394
        %v4396 = vpop.f32.mrb[0].mxu0
        %4397 = vmatprep.mubr.bf16.mxu0 %v3641
        %4398 = vmatmul.mubr.bf16.gmra.mrb[0].mxu0 %v3640
        %v4399 = vpop.f32.mrb[0].mxu0
        %v4400 = vadd.f32 %v3915, %v4399
        %v4401 = vpop.f32.mrb[0].mxu0
        %v4402 = vpop.f32.mrb[0].mxu0
        %v4403 = vadd.f32 %v3915, %v4402
        %v4404 = vpop.f32.mrb[0].mxu0
        %4405 = vmatprep.mubr.bf16.mxu0 %v3650
        %4406 = vmatmul.mubr.bf16.gmra.mrb[0].mxu0 %v3649
        %v4407 = vpop.f32.mrb[0].mxu0
        %v4408 = vadd.f32 %v3915, %v4407
        %v4409 = vpop.f32.mrb[0].mxu0
        %v4410 = vpop.f32.mrb[0].mxu0
        %v4411 = vadd.f32 %v3915, %v4410
        %v4412 = vpop.f32.mrb[0].mxu0
        %4413 = vmatprep.mubr.bf16.mxu0 %v3659
        %4414 = vmatmul.mubr.bf16.gmra.mrb[0].mxu0 %v3658
        %v4415 = vpop.f32.mrb[0].mxu0
        %v4416 = vadd.f32 %v3915, %v4415
        %v4417 = vpop.f32.mrb[0].mxu0
        %v4418 = vpop.f32.mrb[0].mxu0
        %v4419 = vadd.f32 %v3915, %v4418
        %v4420 = vpop.f32.mrb[0].mxu0
        %4421 = vmatprep.mubr.bf16.mxu0 %v3668
        %4422 = vmatmul.mubr.bf16.gmra.mrb[0].mxu0 %v3667
        %v4423 = vpop.f32.mrb[0].mxu0
        %v4424 = vadd.f32 %v3915, %v4423
        %v4425 = vpop.f32.mrb[0].mxu0
        %v4426 = vpop.f32.mrb[0].mxu0
        %v4427 = vadd.f32 %v3915, %v4426
        %v4428 = vpop.f32.mrb[0].mxu0
        %4429 = vmatprep.mubr.bf16.mxu0 %v3677
        %4430 = vmatmul.mubr.bf16.gmra.mrb[0].mxu0 %v3676
        %v4431 = vpop.f32.mrb[0].mxu0
        %v4432 = vadd.f32 %v3915, %v4431
        %v4433 = vpop.f32.mrb[0].mxu0
        %v4434 = vpop.f32.mrb[0].mxu0
        %v4435 = vadd.f32 %v3915, %v4434
        %v4436 = vpop.f32.mrb[0].mxu0
        %4437 = vmatprep.mubr.bf16.mxu0 %v3686
        %4438 = vmatmul.mubr.bf16.gmra.mrb[0].mxu0 %v3685
        %v4439 = vpop.f32.mrb[0].mxu0
        %v4440 = vadd.f32 %v3915, %v4439
        %v4441 = vpop.f32.mrb[0].mxu0
        %v4442 = vpop.f32.mrb[0].mxu0
        %v4443 = vadd.f32 %v3915, %v4442
        %v4444 = vpop.f32.mrb[0].mxu0
        %4445 = vmatprep.mubr.bf16.mxu0 %v3695
        %4446 = vmatmul.mubr.bf16.gmra.mrb[0].mxu0 %v3694
        %v4447 = vpop.f32.mrb[0].mxu0
        %v4448 = vadd.f32 %v3915, %v4447
        %v4449 = vpop.f32.mrb[0].mxu0
        %v4450 = vpop.f32.mrb[0].mxu0
        %v4451 = vadd.f32 %v3915, %v4450
        %v4452 = vpop.f32.mrb[0].mxu0
        %4453 = vmatprep.mubr.bf16.mxu0 %v3704
        %4454 = vmatmul.mubr.bf16.gmra.mrb[0].mxu0 %v3703
        %v4455 = vpop.f32.mrb[0].mxu0
        %v4456 = vadd.f32 %v3915, %v4455
        %v4457 = vpop.f32.mrb[0].mxu0
        %v4458 = vpop.f32.mrb[0].mxu0
        %v4459 = vadd.f32 %v3915, %v4458
        %v4460 = vpop.f32.mrb[0].mxu0
        %4461 = vmatprep.mubr.bf16.mxu0 %v3713
        %4462 = vmatmul.mubr.bf16.gmra.mrb[0].mxu0 %v3712
        %v4463 = vpop.f32.mrb[0].mxu0
        %v4464 = vadd.f32 %v3915, %v4463
        %v4465 = vpop.f32.mrb[0].mxu0
        %v4466 = vpop.f32.mrb[0].mxu0
        %v4467 = vadd.f32 %v3915, %v4466
        %v4468 = vpop.f32.mrb[0].mxu0
        %4469 = vmatprep.mubr.bf16.mxu0 %v3722
        %4470 = vmatmul.mubr.bf16.gmra.mrb[0].mxu0 %v3721
        %v4471 = vpop.f32.mrb[0].mxu0
        %v4472 = vadd.f32 %v3915, %v4471
        %v4473 = vpop.f32.mrb[0].mxu0
        %v4474 = vpop.f32.mrb[0].mxu0
        %v4475 = vadd.f32 %v3915, %v4474
        %v4476 = vpop.f32.mrb[0].mxu0
        %4477 = vmatprep.mubr.bf16.mxu0 %v3731
        %4478 = vmatmul.mubr.bf16.gmra.mrb[0].mxu0 %v3730
        %v4479 = vpop.f32.mrb[0].mxu0
        %v4480 = vadd.f32 %v3915, %v4479
        %v4481 = vpop.f32.mrb[0].mxu0
        %v4482 = vpop.f32.mrb[0].mxu0
        %v4483 = vadd.f32 %v3915, %v4482
        %v4484 = vpop.f32.mrb[0].mxu0
        %4485 = vmatprep.mubr.bf16.mxu0 %v3740
        %4486 = vmatmul.mubr.bf16.gmra.mrb[0].mxu0 %v3739
        %v4487 = vpop.f32.mrb[0].mxu0
        %v4488 = vadd.f32 %v3915, %v4487
        %v4489 = vpop.f32.mrb[0].mxu0
        %v4490 = vpop.f32.mrb[0].mxu0
        %v4491 = vadd.f32 %v3915, %v4490
        %v4492 = vpop.f32.mrb[0].mxu0
        %4493 = vmatprep.mubr.bf16.mxu0 %v3749
        %4494 = vmatmul.mubr.bf16.gmra.mrb[0].mxu0 %v3748
        %v4495 = vpop.f32.mrb[0].mxu0
        %v4496 = vadd.f32 %v3915, %v4495
        %v4497 = vpop.f32.mrb[0].mxu0
        %v4498 = vpop.f32.mrb[0].mxu0
        %v4499 = vadd.f32 %v3915, %v4498
        %v4500 = vpop.f32.mrb[0].mxu0
        %4501 = vmatprep.mubr.bf16.mxu0 %v3758
        %4502 = vmatmul.mubr.bf16.gmra.mrb[0].mxu0 %v3757
        %v4503 = vpop.f32.mrb[0].mxu0
        %v4504 = vadd.f32 %v3915, %v4503
        %v4505 = vpop.f32.mrb[0].mxu0
        %v4506 = vpop.f32.mrb[0].mxu0
        %v4507 = vadd.f32 %v3915, %v4506
        %v4508 = vpop.f32.mrb[0].mxu0
        %4509 = vdwg.mxu0
        %4510 = vmatprep.subr.bf16.mxu0 0
        %4511 = vmatpush1.bf16.msra.mxu0 %v4221
        %4512 = vmatprep.subr.bf16.mxu0 0
        %4513 = vmatpush1.bf16.msra.mxu0 %v4222
        %4514 = vmatprep.subr.bf16.mxu0 0
        %4515 = vmatpush1.bf16.msra.mxu0 %v4223
        %4516 = vmatprep.subr.bf16.mxu0 0
        %4517 = vmatpush1.bf16.msra.mxu0 %v4224
        %4518 = vmatprep.subr.bf16.mxu0 0
        %4519 = vmatpush1.bf16.msra.mxu0 %v4225
        %4520 = vmatprep.subr.bf16.mxu0 0
        %4521 = vmatpush1.bf16.msra.mxu0 %v4226
        %4522 = vmatprep.subr.bf16.mxu0 0
        %4523 = vmatpush1.bf16.msra.mxu0 %v4227
        %4524 = vmatprep.subr.bf16.mxu0 0
        %4525 = vmatpush1.bf16.msra.mxu0 %v4228
        %4526 = vmatprep.subr.bf16.mxu0 0
        %4527 = vmatpush1.bf16.msra.mxu0 %v4229
        %4528 = vmatprep.subr.bf16.mxu0 0
        %4529 = vmatpush1.bf16.msra.mxu0 %v4230
        %4530 = vmatprep.subr.bf16.mxu0 0
        %4531 = vmatpush1.bf16.msra.mxu0 %v4231
        %4532 = vmatprep.subr.bf16.mxu0 0
        %4533 = vmatpush1.bf16.msra.mxu0 %v4232
        %4534 = vmatprep.subr.bf16.mxu0 0
        %4535 = vmatpush1.bf16.msra.mxu0 %v4233
        %4536 = vmatprep.subr.bf16.mxu0 0
        %4537 = vmatpush1.bf16.msra.mxu0 %v4234
        %4538 = vmatprep.subr.bf16.mxu0 0
        %4539 = vmatpush1.bf16.msra.mxu0 %v4235
        %4540 = vmatprep.subr.bf16.mxu0 0
        %4541 = vmatpush1.bf16.msra.mxu0 %v4236
        %4542 = vmatprep.mubr.bf16.mxu0 %v3625
        %4543 = vmatmul.mubr.bf16.gmra.mrb[0].mxu0 %v3624
        %v4544 = vpop.f32.mrb[0].mxu0
        %v4545 = vadd.f32 %v4384, %v4544
        %v4546 = vpop.f32.mrb[0].mxu0
        %v4547 = vpop.f32.mrb[0].mxu0
        %v4548 = vadd.f32 %v4387, %v4547
        %v4549 = vpop.f32.mrb[0].mxu0
        %4550 = vmatprep.mubr.bf16.mxu0 %v3634
        %4551 = vmatmul.mubr.bf16.gmra.mrb[0].mxu0 %v3633
        %v4552 = vpop.f32.mrb[0].mxu0
        %v4553 = vadd.f32 %v4392, %v4552
        %v4554 = vpop.f32.mrb[0].mxu0
        %v4555 = vpop.f32.mrb[0].mxu0
        %v4556 = vadd.f32 %v4395, %v4555
        %v4557 = vpop.f32.mrb[0].mxu0
        %4558 = vmatprep.mubr.bf16.mxu0 %v3643
        %4559 = vmatmul.mubr.bf16.gmra.mrb[0].mxu0 %v3642
        %v4560 = vpop.f32.mrb[0].mxu0
        %v4561 = vadd.f32 %v4400, %v4560
        %v4562 = vpop.f32.mrb[0].mxu0
        %v4563 = vpop.f32.mrb[0].mxu0
        %v4564 = vadd.f32 %v4403, %v4563
        %v4565 = vpop.f32.mrb[0].mxu0
        %4566 = vmatprep.mubr.bf16.mxu0 %v3652
        %4567 = vmatmul.mubr.bf16.gmra.mrb[0].mxu0 %v3651
        %v4568 = vpop.f32.mrb[0].mxu0
        %v4569 = vadd.f32 %v4408, %v4568
        %v4570 = vpop.f32.mrb[0].mxu0
        %v4571 = vpop.f32.mrb[0].mxu0
        %v4572 = vadd.f32 %v4411, %v4571
        %v4573 = vpop.f32.mrb[0].mxu0
        %4574 = vmatprep.mubr.bf16.mxu0 %v3661
        %4575 = vmatmul.mubr.bf16.gmra.mrb[0].mxu0 %v3660
        %v4576 = vpop.f32.mrb[0].mxu0
        %v4577 = vadd.f32 %v4416, %v4576
        %v4578 = vpop.f32.mrb[0].mxu0
        %v4579 = vpop.f32.mrb[0].mxu0
        %v4580 = vadd.f32 %v4419, %v4579
        %v4581 = vpop.f32.mrb[0].mxu0
        %4582 = vmatprep.mubr.bf16.mxu0 %v3670
        %4583 = vmatmul.mubr.bf16.gmra.mrb[0].mxu0 %v3669
        %v4584 = vpop.f32.mrb[0].mxu0
        %v4585 = vadd.f32 %v4424, %v4584
        %v4586 = vpop.f32.mrb[0].mxu0
        %v4587 = vpop.f32.mrb[0].mxu0
        %v4588 = vadd.f32 %v4427, %v4587
        %v4589 = vpop.f32.mrb[0].mxu0
        %4590 = vmatprep.mubr.bf16.mxu0 %v3679
        %4591 = vmatmul.mubr.bf16.gmra.mrb[0].mxu0 %v3678
        %v4592 = vpop.f32.mrb[0].mxu0
        %v4593 = vadd.f32 %v4432, %v4592
        %v4594 = vpop.f32.mrb[0].mxu0
        %v4595 = vpop.f32.mrb[0].mxu0
        %v4596 = vadd.f32 %v4435, %v4595
        %v4597 = vpop.f32.mrb[0].mxu0
        %4598 = vmatprep.mubr.bf16.mxu0 %v3688
        %4599 = vmatmul.mubr.bf16.gmra.mrb[0].mxu0 %v3687
        %v4600 = vpop.f32.mrb[0].mxu0
        %v4601 = vadd.f32 %v4440, %v4600
        %v4602 = vpop.f32.mrb[0].mxu0
        %v4603 = vpop.f32.mrb[0].mxu0
        %v4604 = vadd.f32 %v4443, %v4603
        %v4605 = vpop.f32.mrb[0].mxu0
        %4606 = vmatprep.mubr.bf16.mxu0 %v3697
        %4607 = vmatmul.mubr.bf16.gmra.mrb[0].mxu0 %v3696
        %v4608 = vpop.f32.mrb[0].mxu0
        %v4609 = vadd.f32 %v4448, %v4608
        %v4610 = vpop.f32.mrb[0].mxu0
        %v4611 = vpop.f32.mrb[0].mxu0
        %v4612 = vadd.f32 %v4451, %v4611
        %v4613 = vpop.f32.mrb[0].mxu0
        %4614 = vmatprep.mubr.bf16.mxu0 %v3706
        %4615 = vmatmul.mubr.bf16.gmra.mrb[0].mxu0 %v3705
        %v4616 = vpop.f32.mrb[0].mxu0
        %v4617 = vadd.f32 %v4456, %v4616
        %v4618 = vpop.f32.mrb[0].mxu0
        %v4619 = vpop.f32.mrb[0].mxu0
        %v4620 = vadd.f32 %v4459, %v4619
        %v4621 = vpop.f32.mrb[0].mxu0
        %4622 = vmatprep.mubr.bf16.mxu0 %v3715
        %4623 = vmatmul.mubr.bf16.gmra.mrb[0].mxu0 %v3714
        %v4624 = vpop.f32.mrb[0].mxu0
        %v4625 = vadd.f32 %v4464, %v4624
        %v4626 = vpop.f32.mrb[0].mxu0
        %v4627 = vpop.f32.mrb[0].mxu0
        %v4628 = vadd.f32 %v4467, %v4627
        %v4629 = vpop.f32.mrb[0].mxu0
        %4630 = vmatprep.mubr.bf16.mxu0 %v3724
        %4631 = vmatmul.mubr.bf16.gmra.mrb[0].mxu0 %v3723
        %v4632 = vpop.f32.mrb[0].mxu0
        %v4633 = vadd.f32 %v4472, %v4632
        %v4634 = vpop.f32.mrb[0].mxu0
        %v4635 = vpop.f32.mrb[0].mxu0
        %v4636 = vadd.f32 %v4475, %v4635
        %v4637 = vpop.f32.mrb[0].mxu0
        %4638 = vmatprep.mubr.bf16.mxu0 %v3733
        %4639 = vmatmul.mubr.bf16.gmra.mrb[0].mxu0 %v3732
        %v4640 = vpop.f32.mrb[0].mxu0
        %v4641 = vadd.f32 %v4480, %v4640
        %v4642 = vpop.f32.mrb[0].mxu0
        %v4643 = vpop.f32.mrb[0].mxu0
        %v4644 = vadd.f32 %v4483, %v4643
        %v4645 = vpop.f32.mrb[0].mxu0
        %4646 = vmatprep.mubr.bf16.mxu0 %v3742
        %4647 = vmatmul.mubr.bf16.gmra.mrb[0].mxu0 %v3741
        %v4648 = vpop.f32.mrb[0].mxu0
        %v4649 = vadd.f32 %v4488, %v4648
        %v4650 = vpop.f32.mrb[0].mxu0
        %v4651 = vpop.f32.mrb[0].mxu0
        %v4652 = vadd.f32 %v4491, %v4651
        %v4653 = vpop.f32.mrb[0].mxu0
        %4654 = vmatprep.mubr.bf16.mxu0 %v3751
        %4655 = vmatmul.mubr.bf16.gmra.mrb[0].mxu0 %v3750
        %v4656 = vpop.f32.mrb[0].mxu0
        %v4657 = vadd.f32 %v4496, %v4656
        %v4658 = vpop.f32.mrb[0].mxu0
        %v4659 = vpop.f32.mrb[0].mxu0
        %v4660 = vadd.f32 %v4499, %v4659
        %v4661 = vpop.f32.mrb[0].mxu0
        %4662 = vmatprep.mubr.bf16.mxu0 %v3760
        %4663 = vmatmul.mubr.bf16.gmra.mrb[0].mxu0 %v3759
        %v4664 = vpop.f32.mrb[0].mxu0
        %v4665 = vadd.f32 %v4504, %v4664
        %v4666 = vpop.f32.mrb[0].mxu0
        %v4667 = vpop.f32.mrb[0].mxu0
        %v4668 = vadd.f32 %v4507, %v4667
        %v4669 = vpop.f32.mrb[0].mxu0
        %4670 = vdwg.mxu0
        %4671 = vmatprep.subr.bf16.mxu0 0
        %4672 = vmatpush1.bf16.msra.mxu0 %v4237
        %4673 = vmatprep.subr.bf16.mxu0 0
        %4674 = vmatpush1.bf16.msra.mxu0 %v4238
        %4675 = vmatprep.subr.bf16.mxu0 0
        %4676 = vmatpush1.bf16.msra.mxu0 %v4239
        %4677 = vmatprep.subr.bf16.mxu0 0
        %4678 = vmatpush1.bf16.msra.mxu0 %v4240
        %4679 = vmatprep.subr.bf16.mxu0 0
        %4680 = vmatpush1.bf16.msra.mxu0 %v4241
        %4681 = vmatprep.subr.bf16.mxu0 0
        %4682 = vmatpush1.bf16.msra.mxu0 %v4242
        %4683 = vmatprep.subr.bf16.mxu0 0
        %4684 = vmatpush1.bf16.msra.mxu0 %v4243
        %4685 = vmatprep.subr.bf16.mxu0 0
        %4686 = vmatpush1.bf16.msra.mxu0 %v4244
        %4687 = vmatprep.subr.bf16.mxu0 0
        %4688 = vmatpush1.bf16.msra.mxu0 %v4245
        %4689 = vmatprep.subr.bf16.mxu0 0
        %4690 = vmatpush1.bf16.msra.mxu0 %v4246
        %4691 = vmatprep.subr.bf16.mxu0 0
        %4692 = vmatpush1.bf16.msra.mxu0 %v4247
        %4693 = vmatprep.subr.bf16.mxu0 0
        %4694 = vmatpush1.bf16.msra.mxu0 %v4248
        %4695 = vmatprep.subr.bf16.mxu0 0
        %4696 = vmatpush1.bf16.msra.mxu0 %v4249
        %4697 = vmatprep.subr.bf16.mxu0 0
        %4698 = vmatpush1.bf16.msra.mxu0 %v4250
        %4699 = vmatprep.subr.bf16.mxu0 0
        %4700 = vmatpush1.bf16.msra.mxu0 %v4251
        %4701 = vmatprep.subr.bf16.mxu0 0
        %4702 = vmatpush1.bf16.msra.mxu0 %v4252
        %4703 = vmatprep.mubr.bf16.mxu0 %v3627
        %4704 = vmatmul.mubr.bf16.gmra.mrb[0].mxu0 %v3626
        %v4705 = vpop.f32.mrb[0].mxu0
        %v4706 = vadd.f32 %v4545, %v4705
        %v4707 = vpop.f32.mrb[0].mxu0
        %v4708 = vpop.f32.mrb[0].mxu0
        %v4709 = vadd.f32 %v4548, %v4708
        %v4710 = vpop.f32.mrb[0].mxu0
        %4711 = vmatprep.mubr.bf16.mxu0 %v3636
        %4712 = vmatmul.mubr.bf16.gmra.mrb[0].mxu0 %v3635
        %v4713 = vpop.f32.mrb[0].mxu0
        %v4714 = vadd.f32 %v4553, %v4713
        %v4715 = vpop.f32.mrb[0].mxu0
        %v4716 = vpop.f32.mrb[0].mxu0
        %v4717 = vadd.f32 %v4556, %v4716
        %v4718 = vpop.f32.mrb[0].mxu0
        %4719 = vmatprep.mubr.bf16.mxu0 %v3645
        %4720 = vmatmul.mubr.bf16.gmra.mrb[0].mxu0 %v3644
        %v4721 = vpop.f32.mrb[0].mxu0
        %v4722 = vadd.f32 %v4561, %v4721
        %v4723 = vpop.f32.mrb[0].mxu0
        %v4724 = vpop.f32.mrb[0].mxu0
        %v4725 = vadd.f32 %v4564, %v4724
        %v4726 = vpop.f32.mrb[0].mxu0
        %4727 = vmatprep.mubr.bf16.mxu0 %v3654
        %4728 = vmatmul.mubr.bf16.gmra.mrb[0].mxu0 %v3653
        %v4729 = vpop.f32.mrb[0].mxu0
        %v4730 = vadd.f32 %v4569, %v4729
        %v4731 = vpop.f32.mrb[0].mxu0
        %v4732 = vpop.f32.mrb[0].mxu0
        %v4733 = vadd.f32 %v4572, %v4732
        %v4734 = vpop.f32.mrb[0].mxu0
        %4735 = vmatprep.mubr.bf16.mxu0 %v3663
        %4736 = vmatmul.mubr.bf16.gmra.mrb[0].mxu0 %v3662
        %v4737 = vpop.f32.mrb[0].mxu0
        %v4738 = vadd.f32 %v4577, %v4737
        %v4739 = vpop.f32.mrb[0].mxu0
        %v4740 = vpop.f32.mrb[0].mxu0
        %v4741 = vadd.f32 %v4580, %v4740
        %v4742 = vpop.f32.mrb[0].mxu0
        %4743 = vmatprep.mubr.bf16.mxu0 %v3672
        %4744 = vmatmul.mubr.bf16.gmra.mrb[0].mxu0 %v3671
        %v4745 = vpop.f32.mrb[0].mxu0
        %v4746 = vadd.f32 %v4585, %v4745
        %v4747 = vpop.f32.mrb[0].mxu0
        %v4748 = vpop.f32.mrb[0].mxu0
        %v4749 = vadd.f32 %v4588, %v4748
        %v4750 = vpop.f32.mrb[0].mxu0
        %4751 = vmatprep.mubr.bf16.mxu0 %v3681
        %4752 = vmatmul.mubr.bf16.gmra.mrb[0].mxu0 %v3680
        %v4753 = vpop.f32.mrb[0].mxu0
        %v4754 = vadd.f32 %v4593, %v4753
        %v4755 = vpop.f32.mrb[0].mxu0
        %v4756 = vpop.f32.mrb[0].mxu0
        %v4757 = vadd.f32 %v4596, %v4756
        %v4758 = vpop.f32.mrb[0].mxu0
        %4759 = vmatprep.mubr.bf16.mxu0 %v3690
        %4760 = vmatmul.mubr.bf16.gmra.mrb[0].mxu0 %v3689
        %v4761 = vpop.f32.mrb[0].mxu0
        %v4762 = vadd.f32 %v4601, %v4761
        %v4763 = vpop.f32.mrb[0].mxu0
        %v4764 = vpop.f32.mrb[0].mxu0
        %v4765 = vadd.f32 %v4604, %v4764
        %v4766 = vpop.f32.mrb[0].mxu0
        %4767 = vmatprep.mubr.bf16.mxu0 %v3699
        %4768 = vmatmul.mubr.bf16.gmra.mrb[0].mxu0 %v3698
        %v4769 = vpop.f32.mrb[0].mxu0
        %v4770 = vadd.f32 %v4609, %v4769
        %v4771 = vpop.f32.mrb[0].mxu0
        %v4772 = vpop.f32.mrb[0].mxu0
        %v4773 = vadd.f32 %v4612, %v4772
        %v4774 = vpop.f32.mrb[0].mxu0
        %4775 = vmatprep.mubr.bf16.mxu0 %v3708
        %4776 = vmatmul.mubr.bf16.gmra.mrb[0].mxu0 %v3707
        %v4777 = vpop.f32.mrb[0].mxu0
        %v4778 = vadd.f32 %v4617, %v4777
        %v4779 = vpop.f32.mrb[0].mxu0
        %v4780 = vpop.f32.mrb[0].mxu0
        %v4781 = vadd.f32 %v4620, %v4780
        %v4782 = vpop.f32.mrb[0].mxu0
        %4783 = vmatprep.mubr.bf16.mxu0 %v3717
        %4784 = vmatmul.mubr.bf16.gmra.mrb[0].mxu0 %v3716
        %v4785 = vpop.f32.mrb[0].mxu0
        %v4786 = vadd.f32 %v4625, %v4785
        %v4787 = vpop.f32.mrb[0].mxu0
        %v4788 = vpop.f32.mrb[0].mxu0
        %v4789 = vadd.f32 %v4628, %v4788
        %v4790 = vpop.f32.mrb[0].mxu0
        %4791 = vmatprep.mubr.bf16.mxu0 %v3726
        %4792 = vmatmul.mubr.bf16.gmra.mrb[0].mxu0 %v3725
        %v4793 = vpop.f32.mrb[0].mxu0
        %v4794 = vadd.f32 %v4633, %v4793
        %v4795 = vpop.f32.mrb[0].mxu0
        %v4796 = vpop.f32.mrb[0].mxu0
        %v4797 = vadd.f32 %v4636, %v4796
        %v4798 = vpop.f32.mrb[0].mxu0
        %4799 = vmatprep.mubr.bf16.mxu0 %v3735
        %4800 = vmatmul.mubr.bf16.gmra.mrb[0].mxu0 %v3734
        %v4801 = vpop.f32.mrb[0].mxu0
        %v4802 = vadd.f32 %v4641, %v4801
        %v4803 = vpop.f32.mrb[0].mxu0
        %v4804 = vpop.f32.mrb[0].mxu0
        %v4805 = vadd.f32 %v4644, %v4804
        %v4806 = vpop.f32.mrb[0].mxu0
        %4807 = vmatprep.mubr.bf16.mxu0 %v3744
        %4808 = vmatmul.mubr.bf16.gmra.mrb[0].mxu0 %v3743
        %v4809 = vpop.f32.mrb[0].mxu0
        %v4810 = vadd.f32 %v4649, %v4809
        %v4811 = vpop.f32.mrb[0].mxu0
        %v4812 = vpop.f32.mrb[0].mxu0
        %v4813 = vadd.f32 %v4652, %v4812
        %v4814 = vpop.f32.mrb[0].mxu0
        %4815 = vmatprep.mubr.bf16.mxu0 %v3753
        %4816 = vmatmul.mubr.bf16.gmra.mrb[0].mxu0 %v3752
        %v4817 = vpop.f32.mrb[0].mxu0
        %v4818 = vadd.f32 %v4657, %v4817
        %v4819 = vpop.f32.mrb[0].mxu0
        %v4820 = vpop.f32.mrb[0].mxu0
        %v4821 = vadd.f32 %v4660, %v4820
        %v4822 = vpop.f32.mrb[0].mxu0
        %4823 = vmatprep.mubr.bf16.mxu0 %v3762
        %4824 = vmatmul.mubr.bf16.gmra.mrb[0].mxu0 %v3761
        %v4825 = vpop.f32.mrb[0].mxu0
        %v4826 = vadd.f32 %v4665, %v4825
        %v4827 = vpop.f32.mrb[0].mxu0
        %v4828 = vpop.f32.mrb[0].mxu0
        %v4829 = vadd.f32 %v4668, %v4828
        %v4830 = vpop.f32.mrb[0].mxu0
        %4831 = vdwg.mxu0
        %4832 = vmatprep.subr.bf16.mxu0 0
        %4833 = vmatpush1.bf16.msra.mxu0 %v4253
        %4834 = vmatprep.subr.bf16.mxu0 0
        %4835 = vmatpush1.bf16.msra.mxu0 %v4254
        %4836 = vmatprep.subr.bf16.mxu0 0
        %4837 = vmatpush1.bf16.msra.mxu0 %v4255
        %4838 = vmatprep.subr.bf16.mxu0 0
        %4839 = vmatpush1.bf16.msra.mxu0 %v4256
        %4840 = vmatprep.subr.bf16.mxu0 0
        %4841 = vmatpush1.bf16.msra.mxu0 %v4257
        %4842 = vmatprep.subr.bf16.mxu0 0
        %4843 = vmatpush1.bf16.msra.mxu0 %v4258
        %4844 = vmatprep.subr.bf16.mxu0 0
        %4845 = vmatpush1.bf16.msra.mxu0 %v4259
        %4846 = vmatprep.subr.bf16.mxu0 0
        %4847 = vmatpush1.bf16.msra.mxu0 %v4260
        %4848 = vmatprep.subr.bf16.mxu0 0
        %4849 = vmatpush1.bf16.msra.mxu0 %v4261
        %4850 = vmatprep.subr.bf16.mxu0 0
        %4851 = vmatpush1.bf16.msra.mxu0 %v4262
        %4852 = vmatprep.subr.bf16.mxu0 0
        %4853 = vmatpush1.bf16.msra.mxu0 %v4263
        %4854 = vmatprep.subr.bf16.mxu0 0
        %4855 = vmatpush1.bf16.msra.mxu0 %v4264
        %4856 = vmatprep.subr.bf16.mxu0 0
        %4857 = vmatpush1.bf16.msra.mxu0 %v4265
        %4858 = vmatprep.subr.bf16.mxu0 0
        %4859 = vmatpush1.bf16.msra.mxu0 %v4266
        %4860 = vmatprep.subr.bf16.mxu0 0
        %4861 = vmatpush1.bf16.msra.mxu0 %v4267
        %4862 = vmatprep.subr.bf16.mxu0 0
        %4863 = vmatpush1.bf16.msra.mxu0 %v4268
        %4864 = vmatprep.mubr.bf16.mxu0 %v3629
        %4865 = vmatmul.mubr.bf16.gmra.mrb[0].mxu0 %v3628
        %v4866 = vpop.f32.mrb[0].mxu0
        %v4867 = vadd.f32 %v4706, %v4866
        %v4868 = vpop.f32.mrb[0].mxu0
        %v4869 = vpop.f32.mrb[0].mxu0
        %v4870 = vadd.f32 %v4709, %v4869
        %v4871 = vpop.f32.mrb[0].mxu0
        %4872 = vmatprep.mubr.bf16.mxu0 %v3638
        %4873 = vmatmul.mubr.bf16.gmra.mrb[0].mxu0 %v3637
        %v4874 = vpop.f32.mrb[0].mxu0
        %v4875 = vadd.f32 %v4714, %v4874
        %v4876 = vpop.f32.mrb[0].mxu0
        %v4877 = vpop.f32.mrb[0].mxu0
        %v4878 = vadd.f32 %v4717, %v4877
        %v4879 = vpop.f32.mrb[0].mxu0
        %4880 = vmatprep.mubr.bf16.mxu0 %v3647
        %4881 = vmatmul.mubr.bf16.gmra.mrb[0].mxu0 %v3646
        %v4882 = vpop.f32.mrb[0].mxu0
        %v4883 = vadd.f32 %v4722, %v4882
        %v4884 = vpop.f32.mrb[0].mxu0
        %v4885 = vpop.f32.mrb[0].mxu0
        %v4886 = vadd.f32 %v4725, %v4885
        %v4887 = vpop.f32.mrb[0].mxu0
        %4888 = vmatprep.mubr.bf16.mxu0 %v3656
        %4889 = vmatmul.mubr.bf16.gmra.mrb[0].mxu0 %v3655
        %v4890 = vpop.f32.mrb[0].mxu0
        %v4891 = vadd.f32 %v4730, %v4890
        %v4892 = vpop.f32.mrb[0].mxu0
        %v4893 = vpop.f32.mrb[0].mxu0
        %v4894 = vadd.f32 %v4733, %v4893
        %v4895 = vpop.f32.mrb[0].mxu0
        %4896 = vmatprep.mubr.bf16.mxu0 %v3665
        %4897 = vmatmul.mubr.bf16.gmra.mrb[0].mxu0 %v3664
        %v4898 = vpop.f32.mrb[0].mxu0
        %v4899 = vadd.f32 %v4738, %v4898
        %v4900 = vpop.f32.mrb[0].mxu0
        %v4901 = vpop.f32.mrb[0].mxu0
        %v4902 = vadd.f32 %v4741, %v4901
        %v4903 = vpop.f32.mrb[0].mxu0
        %4904 = vmatprep.mubr.bf16.mxu0 %v3674
        %4905 = vmatmul.mubr.bf16.gmra.mrb[0].mxu0 %v3673
        %v4906 = vpop.f32.mrb[0].mxu0
        %v4907 = vadd.f32 %v4746, %v4906
        %v4908 = vpop.f32.mrb[0].mxu0
        %v4909 = vpop.f32.mrb[0].mxu0
        %v4910 = vadd.f32 %v4749, %v4909
        %v4911 = vpop.f32.mrb[0].mxu0
        %4912 = vmatprep.mubr.bf16.mxu0 %v3683
        %4913 = vmatmul.mubr.bf16.gmra.mrb[0].mxu0 %v3682
        %v4914 = vpop.f32.mrb[0].mxu0
        %v4915 = vadd.f32 %v4754, %v4914
        %v4916 = vpop.f32.mrb[0].mxu0
        %v4917 = vpop.f32.mrb[0].mxu0
        %v4918 = vadd.f32 %v4757, %v4917
        %v4919 = vpop.f32.mrb[0].mxu0
        %4920 = vmatprep.mubr.bf16.mxu0 %v3692
        %4921 = vmatmul.mubr.bf16.gmra.mrb[0].mxu0 %v3691
        %v4922 = vpop.f32.mrb[0].mxu0
        %v4923 = vadd.f32 %v4762, %v4922
        %v4924 = vpop.f32.mrb[0].mxu0
        %v4925 = vpop.f32.mrb[0].mxu0
        %v4926 = vadd.f32 %v4765, %v4925
        %v4927 = vpop.f32.mrb[0].mxu0
        %4928 = vmatprep.mubr.bf16.mxu0 %v3701
        %4929 = vmatmul.mubr.bf16.gmra.mrb[0].mxu0 %v3700
        %v4930 = vpop.f32.mrb[0].mxu0
        %v4931 = vadd.f32 %v4770, %v4930
        %v4932 = vpop.f32.mrb[0].mxu0
        %v4933 = vpop.f32.mrb[0].mxu0
        %v4934 = vadd.f32 %v4773, %v4933
        %v4935 = vpop.f32.mrb[0].mxu0
        %4936 = vmatprep.mubr.bf16.mxu0 %v3710
        %4937 = vmatmul.mubr.bf16.gmra.mrb[0].mxu0 %v3709
        %v4938 = vpop.f32.mrb[0].mxu0
        %v4939 = vadd.f32 %v4778, %v4938
        %v4940 = vpop.f32.mrb[0].mxu0
        %v4941 = vpop.f32.mrb[0].mxu0
        %v4942 = vadd.f32 %v4781, %v4941
        %v4943 = vpop.f32.mrb[0].mxu0
        %4944 = vmatprep.mubr.bf16.mxu0 %v3719
        %4945 = vmatmul.mubr.bf16.gmra.mrb[0].mxu0 %v3718
        %v4946 = vpop.f32.mrb[0].mxu0
        %v4947 = vadd.f32 %v4786, %v4946
        %v4948 = vpop.f32.mrb[0].mxu0
        %v4949 = vpop.f32.mrb[0].mxu0
        %v4950 = vadd.f32 %v4789, %v4949
        %v4951 = vpop.f32.mrb[0].mxu0
        %4952 = vmatprep.mubr.bf16.mxu0 %v3728
        %4953 = vmatmul.mubr.bf16.gmra.mrb[0].mxu0 %v3727
        %v4954 = vpop.f32.mrb[0].mxu0
        %v4955 = vadd.f32 %v4794, %v4954
        %v4956 = vpop.f32.mrb[0].mxu0
        %v4957 = vpop.f32.mrb[0].mxu0
        %v4958 = vadd.f32 %v4797, %v4957
        %v4959 = vpop.f32.mrb[0].mxu0
        %4960 = vmatprep.mubr.bf16.mxu0 %v3737
        %4961 = vmatmul.mubr.bf16.gmra.mrb[0].mxu0 %v3736
        %v4962 = vpop.f32.mrb[0].mxu0
        %v4963 = vadd.f32 %v4802, %v4962
        %v4964 = vpop.f32.mrb[0].mxu0
        %v4965 = vpop.f32.mrb[0].mxu0
        %v4966 = vadd.f32 %v4805, %v4965
        %v4967 = vpop.f32.mrb[0].mxu0
        %4968 = vmatprep.mubr.bf16.mxu0 %v3746
        %4969 = vmatmul.mubr.bf16.gmra.mrb[0].mxu0 %v3745
        %v4970 = vpop.f32.mrb[0].mxu0
        %v4971 = vadd.f32 %v4810, %v4970
        %v4972 = vpop.f32.mrb[0].mxu0
        %v4973 = vpop.f32.mrb[0].mxu0
        %v4974 = vadd.f32 %v4813, %v4973
        %v4975 = vpop.f32.mrb[0].mxu0
        %4976 = vmatprep.mubr.bf16.mxu0 %v3755
        %4977 = vmatmul.mubr.bf16.gmra.mrb[0].mxu0 %v3754
        %v4978 = vpop.f32.mrb[0].mxu0
        %v4979 = vadd.f32 %v4818, %v4978
        %v4980 = vpop.f32.mrb[0].mxu0
        %v4981 = vpop.f32.mrb[0].mxu0
        %v4982 = vadd.f32 %v4821, %v4981
        %v4983 = vpop.f32.mrb[0].mxu0
        %4984 = vmatprep.mubr.bf16.mxu0 %v3764
        %4985 = vmatmul.mubr.bf16.gmra.mrb[0].mxu0 %v3763
        %v4986 = vpop.f32.mrb[0].mxu0
        %v4987 = vadd.f32 %v4826, %v4986
        %v4988 = vpop.f32.mrb[0].mxu0
        %v4989 = vpop.f32.mrb[0].mxu0
        %v4990 = vadd.f32 %v4829, %v4989
        %v4991 = vpop.f32.mrb[0].mxu0
        %4992 = vdwg.mxu0
        %4993 = vmatprep.subr.bf16.mxu0 0
        %4994 = vmatpush1.bf16.msra.mxu0 %v4269
        %4995 = vmatprep.subr.bf16.mxu0 0
        %4996 = vmatpush1.bf16.msra.mxu0 %v4270
        %4997 = vmatprep.subr.bf16.mxu0 0
        %4998 = vmatpush1.bf16.msra.mxu0 %v4271
        %4999 = vmatprep.subr.bf16.mxu0 0
        %5000 = vmatpush1.bf16.msra.mxu0 %v4272
        %5001 = vmatprep.subr.bf16.mxu0 0
        %5002 = vmatpush1.bf16.msra.mxu0 %v4273
        %5003 = vmatprep.subr.bf16.mxu0 0
        %5004 = vmatpush1.bf16.msra.mxu0 %v4274
        %5005 = vmatprep.subr.bf16.mxu0 0
        %5006 = vmatpush1.bf16.msra.mxu0 %v4275
        %5007 = vmatprep.subr.bf16.mxu0 0
        %5008 = vmatpush1.bf16.msra.mxu0 %v4276
        %5009 = vmatprep.subr.bf16.mxu0 0
        %5010 = vmatpush1.bf16.msra.mxu0 0
        %5011 = vmatprep.subr.bf16.mxu0 0
        %5012 = vmatpush1.bf16.msra.mxu0 0
        %5013 = vmatprep.subr.bf16.mxu0 0
        %5014 = vmatpush1.bf16.msra.mxu0 0
        %5015 = vmatprep.subr.bf16.mxu0 0
        %5016 = vmatpush1.bf16.msra.mxu0 0
        %5017 = vmatprep.subr.bf16.mxu0 0
        %5018 = vmatpush1.bf16.msra.mxu0 0
        %5019 = vmatprep.subr.bf16.mxu0 0
        %5020 = vmatpush1.bf16.msra.mxu0 0
        %5021 = vmatprep.subr.bf16.mxu0 0
        %5022 = vmatpush1.bf16.msra.mxu0 0
        %5023 = vmatprep.subr.bf16.mxu0 0
        %5024 = vmatpush1.bf16.msra.mxu0 0
        %5025 = vmatprep.mubr.bf16.mxu0 0
        %5026 = vmatmul.mubr.bf16.gmra.mrb[0].mxu0 %v3630
        %v5027 = vpop.f32.mrb[0].mxu0
        %v5028 = vadd.f32 %v4867, %v5027
        %v5029 = vpop.f32.mrb[0].mxu0
        %v5030 = vpop.f32.mrb[0].mxu0
        %v5031 = vadd.f32 %v4870, %v5030
        %v5032 = vpop.f32.mrb[0].mxu0
        %5033 = vmatprep.mubr.bf16.mxu0 0
        %5034 = vmatmul.mubr.bf16.gmra.mrb[0].mxu0 %v3639
        %v5035 = vpop.f32.mrb[0].mxu0
        %v5036 = vadd.f32 %v4875, %v5035
        %v5037 = vpop.f32.mrb[0].mxu0
        %v5038 = vpop.f32.mrb[0].mxu0
        %v5039 = vadd.f32 %v4878, %v5038
        %v5040 = vpop.f32.mrb[0].mxu0
        %5041 = vmatprep.mubr.bf16.mxu0 0
        %5042 = vmatmul.mubr.bf16.gmra.mrb[0].mxu0 %v3648
        %v5043 = vpop.f32.mrb[0].mxu0
        %v5044 = vadd.f32 %v4883, %v5043
        %v5045 = vpop.f32.mrb[0].mxu0
        %v5046 = vpop.f32.mrb[0].mxu0
        %v5047 = vadd.f32 %v4886, %v5046
        %v5048 = vpop.f32.mrb[0].mxu0
        %5049 = vmatprep.mubr.bf16.mxu0 0
        %5050 = vmatmul.mubr.bf16.gmra.mrb[0].mxu0 %v3657
        %v5051 = vpop.f32.mrb[0].mxu0
        %v5052 = vadd.f32 %v4891, %v5051
        %v5053 = vpop.f32.mrb[0].mxu0
        %v5054 = vpop.f32.mrb[0].mxu0
        %v5055 = vadd.f32 %v4894, %v5054
        %v5056 = vpop.f32.mrb[0].mxu0
        %5057 = vmatprep.mubr.bf16.mxu0 0
        %5058 = vmatmul.mubr.bf16.gmra.mrb[0].mxu0 %v3666
        %v5059 = vpop.f32.mrb[0].mxu0
        %v5060 = vadd.f32 %v4899, %v5059
        %v5061 = vpop.f32.mrb[0].mxu0
        %v5062 = vpop.f32.mrb[0].mxu0
        %v5063 = vadd.f32 %v4902, %v5062
        %v5064 = vpop.f32.mrb[0].mxu0
        %5065 = vmatprep.mubr.bf16.mxu0 0
        %5066 = vmatmul.mubr.bf16.gmra.mrb[0].mxu0 %v3675
        %v5067 = vpop.f32.mrb[0].mxu0
        %v5068 = vadd.f32 %v4907, %v5067
        %v5069 = vpop.f32.mrb[0].mxu0
        %v5070 = vpop.f32.mrb[0].mxu0
        %v5071 = vadd.f32 %v4910, %v5070
        %v5072 = vpop.f32.mrb[0].mxu0
        %5073 = vmatprep.mubr.bf16.mxu0 0
        %5074 = vmatmul.mubr.bf16.gmra.mrb[0].mxu0 %v3684
        %v5075 = vpop.f32.mrb[0].mxu0
        %v5076 = vadd.f32 %v4915, %v5075
        %v5077 = vpop.f32.mrb[0].mxu0
        %v5078 = vpop.f32.mrb[0].mxu0
        %v5079 = vadd.f32 %v4918, %v5078
        %v5080 = vpop.f32.mrb[0].mxu0
        %5081 = vmatprep.mubr.bf16.mxu0 0
        %5082 = vmatmul.mubr.bf16.gmra.mrb[0].mxu0 %v3693
        %v5083 = vpop.f32.mrb[0].mxu0
        %v5084 = vadd.f32 %v4923, %v5083
        %v5085 = vpop.f32.mrb[0].mxu0
        %v5086 = vpop.f32.mrb[0].mxu0
        %v5087 = vadd.f32 %v4926, %v5086
        %v5088 = vpop.f32.mrb[0].mxu0
        %5089 = vmatprep.mubr.bf16.mxu0 0
        %5090 = vmatmul.mubr.bf16.gmra.mrb[0].mxu0 %v3702
        %v5091 = vpop.f32.mrb[0].mxu0
        %v5092 = vadd.f32 %v4931, %v5091
        %v5093 = vpop.f32.mrb[0].mxu0
        %v5094 = vpop.f32.mrb[0].mxu0
        %v5095 = vadd.f32 %v4934, %v5094
        %v5096 = vpop.f32.mrb[0].mxu0
        %5097 = vmatprep.mubr.bf16.mxu0 0
        %5098 = vmatmul.mubr.bf16.gmra.mrb[0].mxu0 %v3711
        %v5099 = vpop.f32.mrb[0].mxu0
        %v5100 = vadd.f32 %v4939, %v5099
        %v5101 = vpop.f32.mrb[0].mxu0
        %v5102 = vpop.f32.mrb[0].mxu0
        %v5103 = vadd.f32 %v4942, %v5102
        %v5104 = vpop.f32.mrb[0].mxu0
        %5105 = vmatprep.mubr.bf16.mxu0 0
        %5106 = vmatmul.mubr.bf16.gmra.mrb[0].mxu0 %v3720
        %v5107 = vpop.f32.mrb[0].mxu0
        %v5108 = vadd.f32 %v4947, %v5107
        %v5109 = vpop.f32.mrb[0].mxu0
        %v5110 = vpop.f32.mrb[0].mxu0
        %v5111 = vadd.f32 %v4950, %v5110
        %v5112 = vpop.f32.mrb[0].mxu0
        %5113 = vmatprep.mubr.bf16.mxu0 0
        %5114 = vmatmul.mubr.bf16.gmra.mrb[0].mxu0 %v3729
        %v5115 = vpop.f32.mrb[0].mxu0
        %v5116 = vadd.f32 %v4955, %v5115
        %v5117 = vpop.f32.mrb[0].mxu0
        %v5118 = vpop.f32.mrb[0].mxu0
        %v5119 = vadd.f32 %v4958, %v5118
        %v5120 = vpop.f32.mrb[0].mxu0
        %5121 = vmatprep.mubr.bf16.mxu0 0
        %5122 = vmatmul.mubr.bf16.gmra.mrb[0].mxu0 %v3738
        %v5123 = vpop.f32.mrb[0].mxu0
        %v5124 = vadd.f32 %v4963, %v5123
        %v5125 = vpop.f32.mrb[0].mxu0
        %v5126 = vpop.f32.mrb[0].mxu0
        %v5127 = vadd.f32 %v4966, %v5126
        %v5128 = vpop.f32.mrb[0].mxu0
        %5129 = vmatprep.mubr.bf16.mxu0 0
        %5130 = vmatmul.mubr.bf16.gmra.mrb[0].mxu0 %v3747
        %v5131 = vpop.f32.mrb[0].mxu0
        %v5132 = vadd.f32 %v4971, %v5131
        %v5133 = vpop.f32.mrb[0].mxu0
        %v5134 = vpop.f32.mrb[0].mxu0
        %v5135 = vadd.f32 %v4974, %v5134
        %v5136 = vpop.f32.mrb[0].mxu0
        %5137 = vmatprep.mubr.bf16.mxu0 0
        %5138 = vmatmul.mubr.bf16.gmra.mrb[0].mxu0 %v3756
        %v5139 = vpop.f32.mrb[0].mxu0
        %v5140 = vadd.f32 %v4979, %v5139
        %v5141 = vpop.f32.mrb[0].mxu0
        %v5142 = vpop.f32.mrb[0].mxu0
        %v5143 = vadd.f32 %v4982, %v5142
        %v5144 = vpop.f32.mrb[0].mxu0
        %5145 = vmatprep.mubr.bf16.mxu0 0
        %5146 = vmatmul.mubr.bf16.gmra.mrb[0].mxu0 %v3765
        %v5147 = vpop.f32.mrb[0].mxu0
        %v5148 = vadd.f32 %v4987, %v5147
        %v5149 = vpop.f32.mrb[0].mxu0
        %v5150 = vpop.f32.mrb[0].mxu0
        %v5151 = vadd.f32 %v4990, %v5150
        %v5152 = vpop.f32.mrb[0].mxu0
        %5153 = vdwg.mxu0
        %v5154 = vmax.f32 %v5028, 0.0
        %v5155 = vmax.f32 %v5031, 0.0
        %v5156 = vmax.f32 %v5036, 0.0
        %v5157 = vmax.f32 %v5039, 0.0
        %v5158 = vmax.f32 %v5044, 0.0
        %v5159 = vmax.f32 %v5047, 0.0
        %v5160 = vmax.f32 %v5052, 0.0
        %v5161 = vmax.f32 %v5055, 0.0
        %v5162 = vmax.f32 %v5060, 0.0
        %v5163 = vmax.f32 %v5063, 0.0
        %v5164 = vmax.f32 %v5068, 0.0
        %v5165 = vmax.f32 %v5071, 0.0
        %v5166 = vmax.f32 %v5076, 0.0
        %v5167 = vmax.f32 %v5079, 0.0
        %v5168 = vmax.f32 %v5084, 0.0
        %v5169 = vmax.f32 %v5087, 0.0
        %v5170 = vmax.f32 %v5092, 0.0
        %v5171 = vmax.f32 %v5095, 0.0
        %v5172 = vmax.f32 %v5100, 0.0
        %v5173 = vmax.f32 %v5103, 0.0
        %v5174 = vmax.f32 %v5108, 0.0
        %v5175 = vmax.f32 %v5111, 0.0
        %v5176 = vmax.f32 %v5116, 0.0
        %v5177 = vmax.f32 %v5119, 0.0
        %v5178 = vmax.f32 %v5124, 0.0
        %v5179 = vmax.f32 %v5127, 0.0
        %v5180 = vmax.f32 %v5132, 0.0
        %v5181 = vmax.f32 %v5135, 0.0
        %v5182 = vmax.f32 %v5140, 0.0
        %v5183 = vmax.f32 %v5143, 0.0
        %v5184 = vmax.f32 %v5148, 0.0
        %v5185 = vmax.f32 %v5151, 0.0
        %v5186 = vadd.f32 %v5154, %v5155
        %v5187 = vadd.f32 %v5186, %v5156
        %v5188 = vadd.f32 %v5187, %v5157
        %v5189 = vadd.f32 %v5188, %v5158
        %v5190 = vadd.f32 %v5189, %v5159
        %v5191 = vadd.f32 %v5190, %v5160
        %v5192 = vadd.f32 %v5191, %v5161
        %v5193 = vrot.slane %v5192, 4
        %v5194 = vadd.f32 %v5192, %v5193
        %v5195 = vrot.slane %v5194, 2
        %v5196 = vadd.f32 %v5194, %v5195
        %v5197 = vrot.slane %v5196, 1
        %v5198 = vadd.f32 %v5196, %v5197
        %v5199 = vadd.f32 %v5162, %v5163
        %v5200 = vadd.f32 %v5199, %v5164
        %v5201 = vadd.f32 %v5200, %v5165
        %v5202 = vadd.f32 %v5201, %v5166
        %v5203 = vadd.f32 %v5202, %v5167
        %v5204 = vadd.f32 %v5203, %v5168
        %v5205 = vadd.f32 %v5204, %v5169
        %v5206 = vrot.slane %v5205, 4
        %v5207 = vadd.f32 %v5205, %v5206
        %v5208 = vrot.slane %v5207, 2
        %v5209 = vadd.f32 %v5207, %v5208
        %v5210 = vrot.slane %v5209, 1
        %v5211 = vadd.f32 %v5209, %v5210
        %v5212 = vadd.f32 %v5170, %v5171
        %v5213 = vadd.f32 %v5212, %v5172
        %v5214 = vadd.f32 %v5213, %v5173
        %v5215 = vadd.f32 %v5214, %v5174
        %v5216 = vadd.f32 %v5215, %v5175
        %v5217 = vadd.f32 %v5216, %v5176
        %v5218 = vadd.f32 %v5217, %v5177
        %v5219 = vrot.slane %v5218, 4
        %v5220 = vadd.f32 %v5218, %v5219
        %v5221 = vrot.slane %v5220, 2
        %v5222 = vadd.f32 %v5220, %v5221
        %v5223 = vrot.slane %v5222, 1
        %v5224 = vadd.f32 %v5222, %v5223
        %v5225 = vadd.f32 %v5178, %v5179
        %v5226 = vadd.f32 %v5225, %v5180
        %v5227 = vadd.f32 %v5226, %v5181
        %v5228 = vadd.f32 %v5227, %v5182
        %v5229 = vadd.f32 %v5228, %v5183
        %v5230 = vadd.f32 %v5229, %v5184
        %v5231 = vadd.f32 %v5230, %v5185
        %v5232 = vrot.slane %v5231, 4
        %v5233 = vadd.f32 %v5231, %v5232
        %v5234 = vrot.slane %v5233, 2
        %v5235 = vadd.f32 %v5233, %v5234
        %v5236 = vrot.slane %v5235, 1
        %v5237 = vadd.f32 %v5235, %v5236
        %v5238 = vrcp.pop 64.0
        %v5239 = vmul.f32 %v5198, %v5238
        %v5240 = vmul.f32 %v5211, %v5238
        %v5241 = vmul.f32 %v5224, %v5238
        %v5242 = vmul.f32 %v5237, %v5238
        %v5243 = vpack.c.bf16 %v5239, %v5239
        %v5244 = vpack.c.bf16 %v5240, %v5240
        %v5245 = vpack.c.bf16 %v5241, %v5241
        %v5246 = vpack.c.bf16 %v5242, %v5242
        %v5247 = vld [vmem:[%s5] sm:$0xf]
        %v5248 = vld [vmem:[%s5 + $0x4] sm:$0xf]
        %v5249 = vld [vmem:[%s5 + $0x8] sm:$0xf]
        %v5250 = vld [vmem:[%s5 + $0xc] sm:$0xf]
        %v5251 = vld [vmem:[%s5 + $0x10] sm:$0xf]
        %v5252 = vld [vmem:[%s5 + $0x14] sm:$0xf]
        %v5253 = vld [vmem:[%s5 + $0x18] sm:$0xf]
        %v5254 = vld [vmem:[%s5 + $0x1c] sm:$0xf]
        %v5255 = vld [vmem:[%s5 + $0x20] sm:$0xf]
        %v5256 = vld [vmem:[%s5 + $0x24] sm:$0xf]
        %v5257 = vld [vmem:[%s5 + $0x28] sm:$0xf]
        %v5258 = vld [vmem:[%s5 + $0x2c] sm:$0xf]
        %v5259 = vld [vmem:[%s5 + $0x30] sm:$0xf]
        %v5260 = vld [vmem:[%s5 + $0x34] sm:$0xf]
        %v5261 = vld [vmem:[%s5 + $0x38] sm:$0xf]
        %v5262 = vld [vmem:[%s5 + $0x3c] sm:$0xf]
        %v5263 = vld [vmem:[%s6] sm:$0x1]
        %v5265 = vlaneseq
        %v5266 = vshrl.u32 %v5265, 7
        %v5267 = vsub.s32 0, %v5266
        %v5268 = vrot.slane %v5263, %v5267
        %v5274 = vunpack.c.l.b16 %v5243
        %v5275 = vunpack.c.l.b16 %v5244
        %v5276 = vunpack.c.l.b16 %v5245
        %v5277 = vunpack.c.l.b16 %v5246
        %vm5278 = vcmask 1041409
        %v5279 = vsel %vm5278, %v5275, %v5274
        %vm5280 = vcmask 1042434
        %v5281 = vsel %vm5280, %v5276, %v5279
        %vm5282 = vcmask 1043459
        %v5283 = vsel %vm5282, %v5277, %v5281
        %v5284 = vpack.c.b16 %v5283, %v5283
        %v5302 = vunpack.c.l.b16 %v5247
        %v5303 = vunpack.c.l.b16 %v5248
        %v5304 = vunpack.c.l.b16 %v5249
        %v5305 = vunpack.c.l.b16 %v5250
        %v5306 = vunpack.c.l.b16 %v5251
        %v5307 = vunpack.c.l.b16 %v5252
        %v5308 = vunpack.c.l.b16 %v5253
        %v5309 = vunpack.c.l.b16 %v5254
        %v5310 = vunpack.c.l.b16 %v5255
        %v5311 = vunpack.c.l.b16 %v5256
        %v5312 = vunpack.c.l.b16 %v5257
        %v5313 = vunpack.c.l.b16 %v5258
        %v5314 = vunpack.c.l.b16 %v5259
        %v5315 = vunpack.c.l.b16 %v5260
        %v5316 = vunpack.c.l.b16 %v5261
        %v5317 = vunpack.c.l.b16 %v5262
        %v5318 = vpack.c.b16 %v5303, %v5302
        %v5319 = vpack.c.b16 %v5305, %v5304
        %v5320 = vpack.c.b16 %v5307, %v5306
        %v5321 = vpack.c.b16 %v5309, %v5308
        %v5322 = vpack.c.b16 %v5311, %v5310
        %v5323 = vpack.c.b16 %v5313, %v5312
        %v5324 = vpack.c.b16 %v5315, %v5314
        %v5325 = vpack.c.b16 %v5317, %v5316
        %5334 = vmatprep.subr.bf16.mxu0 0
        %5335 = vmatpush1.bf16.msra.mxu0 %v5318
        %5336 = vmatprep.subr.bf16.mxu0 0
        %5337 = vmatpush1.bf16.msra.mxu0 %v5319
        %5338 = vmatprep.subr.bf16.mxu0 0
        %5339 = vmatpush1.bf16.msra.mxu0 %v5320
        %5340 = vmatprep.subr.bf16.mxu0 0
        %5341 = vmatpush1.bf16.msra.mxu0 %v5321
        %5342 = vmatprep.subr.bf16.mxu0 0
        %5343 = vmatpush1.bf16.msra.mxu0 %v5322
        %5344 = vmatprep.subr.bf16.mxu0 0
        %5345 = vmatpush1.bf16.msra.mxu0 %v5323
        %5346 = vmatprep.subr.bf16.mxu0 0
        %5347 = vmatpush1.bf16.msra.mxu0 %v5324
        %5348 = vmatprep.subr.bf16.mxu0 0
        %5349 = vmatpush1.bf16.msra.mxu0 %v5325
        %5350 = vmatprep.subr.bf16.mxu0 0
        %5351 = vmatpush1.bf16.msra.mxu0 0
        %5352 = vmatprep.subr.bf16.mxu0 0
        %5353 = vmatpush1.bf16.msra.mxu0 0
        %5354 = vmatprep.subr.bf16.mxu0 0
        %5355 = vmatpush1.bf16.msra.mxu0 0
        %5356 = vmatprep.subr.bf16.mxu0 0
        %5357 = vmatpush1.bf16.msra.mxu0 0
        %5358 = vmatprep.subr.bf16.mxu0 0
        %5359 = vmatpush1.bf16.msra.mxu0 0
        %5360 = vmatprep.subr.bf16.mxu0 0
        %5361 = vmatpush1.bf16.msra.mxu0 0
        %5362 = vmatprep.subr.bf16.mxu0 0
        %5363 = vmatpush1.bf16.msra.mxu0 0
        %5364 = vmatprep.subr.bf16.mxu0 0
        %5365 = vmatpush1.bf16.msra.mxu0 0
        %5366 = vmatprep.mubr.bf16.mxu0 0
        %5367 = vmatmul.mubr.bf16.gmra.mrb[0].mxu0 %v5284
        %v5368 = vpop.f32.mrb[0].mxu0
        %v5369 = vadd.f32 %v5268, %v5368
        %v5370 = vpop.f32.mrb[0].mxu0
        %v5371 = vpop.f32.mrb[0].mxu0
        %v5372 = vpop.f32.mrb[0].mxu0
        %5373 = vdwg.mxu0
        %v5374 = vmax.f32 %v5369, 0.0
        %v5375 = vpack.c.bf16 %v5374, %v5374
        %v5376 = vld [vmem:[%s7] sm:$0xf]
        %v5377 = vld [vmem:[%s8] sm:$0x1]
        %v5379 = vlaneseq
        %v5380 = vshrl.u32 %v5379, 7
        %v5381 = vsub.s32 0, %v5380
        %v5382 = vrot.slane %v5377, %v5381
        %vm5384 = vcmask 64512
        %v5386 = vsel %vm5384, %v5375, 0
        %vm5388 = vcmask 1043456
        %v5390 = vsel %vm5388, %v5376, 0
        %5392 = vmatprep.subr.bf16.mxu0 0
        %5393 = vmatpush1.bf16.msra.mxu0 %v5390
        %5394 = vmatprep.subr.bf16.mxu0 0
        %5395 = vmatpush1.bf16.msra.mxu0 0
        %5396 = vmatprep.subr.bf16.mxu0 0
        %5397 = vmatpush1.bf16.msra.mxu0 0
        %5398 = vmatprep.subr.bf16.mxu0 0
        %5399 = vmatpush1.bf16.msra.mxu0 0
        %5400 = vmatprep.subr.bf16.mxu0 0
        %5401 = vmatpush1.bf16.msra.mxu0 0
        %5402 = vmatprep.subr.bf16.mxu0 0
        %5403 = vmatpush1.bf16.msra.mxu0 0
        %5404 = vmatprep.subr.bf16.mxu0 0
        %5405 = vmatpush1.bf16.msra.mxu0 0
        %5406 = vmatprep.subr.bf16.mxu0 0
        %5407 = vmatpush1.bf16.msra.mxu0 0
        %5408 = vmatprep.subr.bf16.mxu0 0
        %5409 = vmatpush1.bf16.msra.mxu0 0
        %5410 = vmatprep.subr.bf16.mxu0 0
        %5411 = vmatpush1.bf16.msra.mxu0 0
        %5412 = vmatprep.subr.bf16.mxu0 0
        %5413 = vmatpush1.bf16.msra.mxu0 0
        %5414 = vmatprep.subr.bf16.mxu0 0
        %5415 = vmatpush1.bf16.msra.mxu0 0
        %5416 = vmatprep.subr.bf16.mxu0 0
        %5417 = vmatpush1.bf16.msra.mxu0 0
        %5418 = vmatprep.subr.bf16.mxu0 0
        %5419 = vmatpush1.bf16.msra.mxu0 0
        %5420 = vmatprep.subr.bf16.mxu0 0
        %5421 = vmatpush1.bf16.msra.mxu0 0
        %5422 = vmatprep.subr.bf16.mxu0 0
        %5423 = vmatpush1.bf16.msra.mxu0 0
        %5424 = vmatprep.mubr.bf16.mxu0 0
        %5425 = vmatmul.mubr.bf16.gmra.mrb[0].mxu0 %v5386
        %v5426 = vpop.f32.mrb[0].mxu0
        %v5427 = vadd.f32 %v5382, %v5426
        %v5428 = vpop.f32.mrb[0].mxu0
        %v5429 = vpop.f32.mrb[0].mxu0
        %v5430 = vpop.f32.mrb[0].mxu0
        %5431 = vdwg.mxu0
        %v5432 = vsub.f32 0.0, %v5427
        %v5433 = vmul.f32 %v5432, 1.442695
        %v5434 = vpow.pop %v5433
        %v5435 = vadd.f32 %v5434, 1.0
        %v5436 = vrcp.pop %v5435
        %v5437 = vmul.f32 1.0, %v5436
        %v5440 = vunpack.c.l.s4 1966171168
        %v5441 = vunpack.c.0.s8 %v5440
        %v5442 = vlaneseq
        %v5443 = vshrl.u32 %v5442, 7
        %v5444 = vsub.s32 %v5441, %v5443
        %v5445 = vrot.slane %v5437, %v5444
        %v5446 = vcombine.high %v5445, %v5445
        %v5448 = vunpack.c.l.s4 1966171168
        %v5449 = vunpack.c.0.s8 %v5448
        %v5450 = vlaneseq
        %v5451 = vshrl.u32 %v5450, 7
        %v5452 = vsub.s32 %v5449, %v5451
        %v5453 = vrot.slane %v5445, %v5452
        %v5455 = vunpack.c.l.s4 1966171168
        %v5456 = vunpack.c.0.s8 %v5455
        %v5457 = vlaneseq
        %v5458 = vshrl.u32 %v5457, 7
        %v5459 = vsub.s32 %v5456, %v5458
        %v5460 = vrot.slane %v5446, %v5459
        %v5461 = vcombine.high %v5453, %v5453
        %v5462 = vcombine.high %v5460, %v5460
        %v5463 = vlaneseq
        %v5464 = vshrl.u32 %v5463, 7
        %v5465 = vsub.s32 0, %v5464
        %v5466 = vrot.slane %v5453, %v5465
        %v5467 = vlaneseq
        %v5468 = vshrl.u32 %v5467, 7
        %v5469 = vsub.s32 0, %v5468
        %v5470 = vrot.slane %v5460, %v5469
        %v5471 = vlaneseq
        %v5472 = vshrl.u32 %v5471, 7
        %v5473 = vsub.s32 0, %v5472
        %v5474 = vrot.slane %v5461, %v5473
        %v5475 = vlaneseq
        %v5476 = vshrl.u32 %v5475, 7
        %v5477 = vsub.s32 0, %v5476
        %v5478 = vrot.slane %v5462, %v5477
        %v5483 = vmul.f32 %v5154, %v5466
        %v5484 = vmul.f32 %v5155, %v5466
        %v5485 = vmul.f32 %v5156, %v5466
        %v5486 = vmul.f32 %v5157, %v5466
        %v5487 = vmul.f32 %v5158, %v5466
        %v5488 = vmul.f32 %v5159, %v5466
        %v5489 = vmul.f32 %v5160, %v5466
        %v5490 = vmul.f32 %v5161, %v5466
        %v5491 = vmul.f32 %v5162, %v5470
        %v5492 = vmul.f32 %v5163, %v5470
        %v5493 = vmul.f32 %v5164, %v5470
        %v5494 = vmul.f32 %v5165, %v5470
        %v5495 = vmul.f32 %v5166, %v5470
        %v5496 = vmul.f32 %v5167, %v5470
        %v5497 = vmul.f32 %v5168, %v5470
        %v5498 = vmul.f32 %v5169, %v5470
        %v5499 = vmul.f32 %v5170, %v5474
        %v5500 = vmul.f32 %v5171, %v5474
        %v5501 = vmul.f32 %v5172, %v5474
        %v5502 = vmul.f32 %v5173, %v5474
        %v5503 = vmul.f32 %v5174, %v5474
        %v5504 = vmul.f32 %v5175, %v5474
        %v5505 = vmul.f32 %v5176, %v5474
        %v5506 = vmul.f32 %v5177, %v5474
        %v5507 = vmul.f32 %v5178, %v5478
        %v5508 = vmul.f32 %v5179, %v5478
        %v5509 = vmul.f32 %v5180, %v5478
        %v5510 = vmul.f32 %v5181, %v5478
        %v5511 = vmul.f32 %v5182, %v5478
        %v5512 = vmul.f32 %v5183, %v5478
        %v5513 = vmul.f32 %v5184, %v5478
        %v5514 = vmul.f32 %v5185, %v5478
        %v5515 = vadd.f32 %v5483, %v5154
        %v5516 = vadd.f32 %v5484, %v5155
        %v5517 = vadd.f32 %v5485, %v5156
        %v5518 = vadd.f32 %v5486, %v5157
        %v5519 = vadd.f32 %v5487, %v5158
        %v5520 = vadd.f32 %v5488, %v5159
        %v5521 = vadd.f32 %v5489, %v5160
        %v5522 = vadd.f32 %v5490, %v5161
        %v5523 = vadd.f32 %v5491, %v5162
        %v5524 = vadd.f32 %v5492, %v5163
        %v5525 = vadd.f32 %v5493, %v5164
        %v5526 = vadd.f32 %v5494, %v5165
        %v5527 = vadd.f32 %v5495, %v5166
        %v5528 = vadd.f32 %v5496, %v5167
        %v5529 = vadd.f32 %v5497, %v5168
        %v5530 = vadd.f32 %v5498, %v5169
        %v5531 = vadd.f32 %v5499, %v5170
        %v5532 = vadd.f32 %v5500, %v5171
        %v5533 = vadd.f32 %v5501, %v5172
        %v5534 = vadd.f32 %v5502, %v5173
        %v5535 = vadd.f32 %v5503, %v5174
        %v5536 = vadd.f32 %v5504, %v5175
        %v5537 = vadd.f32 %v5505, %v5176
        %v5538 = vadd.f32 %v5506, %v5177
        %v5539 = vadd.f32 %v5507, %v5178
        %v5540 = vadd.f32 %v5508, %v5179
        %v5541 = vadd.f32 %v5509, %v5180
        %v5542 = vadd.f32 %v5510, %v5181
        %v5543 = vadd.f32 %v5511, %v5182
        %v5544 = vadd.f32 %v5512, %v5183
        %v5545 = vadd.f32 %v5513, %v5184
        %v5546 = vadd.f32 %v5514, %v5185
        %v5547 = vmax.f32 %v5515, 0.0
        %v5548 = vmax.f32 %v5516, 0.0
        %v5549 = vmax.f32 %v5517, 0.0
        %v5550 = vmax.f32 %v5518, 0.0
        %v5551 = vmax.f32 %v5519, 0.0
        %v5552 = vmax.f32 %v5520, 0.0
        %v5553 = vmax.f32 %v5521, 0.0
        %v5554 = vmax.f32 %v5522, 0.0
        %v5555 = vmax.f32 %v5523, 0.0
        %v5556 = vmax.f32 %v5524, 0.0
        %v5557 = vmax.f32 %v5525, 0.0
        %v5558 = vmax.f32 %v5526, 0.0
        %v5559 = vmax.f32 %v5527, 0.0
        %v5560 = vmax.f32 %v5528, 0.0
        %v5561 = vmax.f32 %v5529, 0.0
        %v5562 = vmax.f32 %v5530, 0.0
        %v5563 = vmax.f32 %v5531, 0.0
        %v5564 = vmax.f32 %v5532, 0.0
        %v5565 = vmax.f32 %v5533, 0.0
        %v5566 = vmax.f32 %v5534, 0.0
        %v5567 = vmax.f32 %v5535, 0.0
        %v5568 = vmax.f32 %v5536, 0.0
        %v5569 = vmax.f32 %v5537, 0.0
        %v5570 = vmax.f32 %v5538, 0.0
        %v5571 = vmax.f32 %v5539, 0.0
        %v5572 = vmax.f32 %v5540, 0.0
        %v5573 = vmax.f32 %v5541, 0.0
        %v5574 = vmax.f32 %v5542, 0.0
        %v5575 = vmax.f32 %v5543, 0.0
        %v5576 = vmax.f32 %v5544, 0.0
        %v5577 = vmax.f32 %v5545, 0.0
        %v5578 = vmax.f32 %v5546, 0.0
        %5579 = vst [vmem:[%s380] sm:$0xff] %v5547
        %5580 = vst [vmem:[%s380 + $0x8] sm:$0xff] %v5548
        %5581 = vst [vmem:[%s380 + $0x10] sm:$0xff] %v5549
        %5582 = vst [vmem:[%s380 + $0x18] sm:$0xff] %v5550
        %5583 = vst [vmem:[%s380 + $0x20] sm:$0xff] %v5551
        %5584 = vst [vmem:[%s380 + $0x28] sm:$0xff] %v5552
        %5585 = vst [vmem:[%s380 + $0x30] sm:$0xff] %v5553
        %5586 = vst [vmem:[%s380 + $0x38] sm:$0xff] %v5554
        %5587 = vst [vmem:[%s380 + $0x40] sm:$0xff] %v5555
        %5588 = vst [vmem:[%s380 + $0x48] sm:$0xff] %v5556
        %5589 = vst [vmem:[%s380 + $0x50] sm:$0xff] %v5557
        %5590 = vst [vmem:[%s380 + $0x58] sm:$0xff] %v5558
        %5591 = vst [vmem:[%s380 + $0x60] sm:$0xff] %v5559
        %5592 = vst [vmem:[%s380 + $0x68] sm:$0xff] %v5560
        %5593 = vst [vmem:[%s380 + $0x70] sm:$0xff] %v5561
        %5594 = vst [vmem:[%s380 + $0x78] sm:$0xff] %v5562
        %5595 = vst [vmem:[%s380 + $0x80] sm:$0xff] %v5563
        %5596 = vst [vmem:[%s380 + $0x88] sm:$0xff] %v5564
        %5597 = vst [vmem:[%s380 + $0x90] sm:$0xff] %v5565
        %5598 = vst [vmem:[%s380 + $0x98] sm:$0xff] %v5566
        %5599 = vst [vmem:[%s380 + $0xa0] sm:$0xff] %v5567
        %5600 = vst [vmem:[%s380 + $0xa8] sm:$0xff] %v5568
        %5601 = vst [vmem:[%s380 + $0xb0] sm:$0xff] %v5569
        %5602 = vst [vmem:[%s380 + $0xb8] sm:$0xff] %v5570
        %5603 = vst [vmem:[%s380 + $0xc0] sm:$0xff] %v5571
        %5604 = vst [vmem:[%s380 + $0xc8] sm:$0xff] %v5572
        %5605 = vst [vmem:[%s380 + $0xd0] sm:$0xff] %v5573
        %5606 = vst [vmem:[%s380 + $0xd8] sm:$0xff] %v5574
        %5607 = vst [vmem:[%s380 + $0xe0] sm:$0xff] %v5575
        %5608 = vst [vmem:[%s380 + $0xe8] sm:$0xff] %v5576
        %5609 = vst [vmem:[%s380 + $0xf0] sm:$0xff] %v5577
        %5610 = vst [vmem:[%s380 + $0xf8] sm:$0xff] %v5578
        %s5611 = sand.u32 %s229, 1
        %s5612 = scalar_lea.sflag [#allocation5], %s5611
        %s5613 = sand.u32 %s229, 1
        %s5614 = smul.addr %s5613, 256
        %s5615 = scalar_lea.vmem [#allocation9], %s5614
        // Predicated region
        $region69: #{se_res_block.1} parent=55 // pred_check
          %p5616 = pneg %p239
        $region70: #{se_res_block.1} parent=55 // pred_check_branch
          %5618 = sbr.rel (%p5616) target = $region72
        $region71: #{se_res_block.1} parent=55 // pred_region
          %s5619 = smul.u32 4, %s27
          %s5621 = ssub.s32 4096, 4096
          %5622 = vsyncadd %s5612, %s5621
          %s5623 = smul.addr %s5619, 8
          %s5624 = smul.addr %s5623, 128
          %s5625 = scalar_lea.hbm %s9, %s5624
          %s5626 = sshll.u32 %s5615, 4
          %s5627 = int_to_ptr.vmem [resolvable:$true] %s5626
          %5632 = dma.vmem_to_hbm [thread:$0]  %s5627, 4096, %s5625, %s5612, 128, 128, 8
        $region72: #{se_res_block.1} parent=55 // pred_fallthru
          _
      $region56: #{se_res_block.1} parent=5 // pred_fallthru
        _
      %p5633 = scmp.le.s32.totalorder 2, %s22
      // Predicated region
      $region73: #{se_res_block.1} parent=5 // pred_check
        %p5634 = pneg %p5633
      $region74: #{se_res_block.1} parent=5 // pred_check_branch
        %5636 = sbr.rel (%p5634) target = $region76
      $region75: #{se_res_block.1} parent=5 // pred_region
        %s5637 = ssub.s32 %s22, 2
        // Predicated region
        $region77: #{se_res_block.1} parent=75 // pred_check
          %p5638 = pneg %p245
        $region78: #{se_res_block.1} parent=75 // pred_check_branch
          %5640 = sbr.rel (%p5638) target = $region80
        $region79: #{se_res_block.1} parent=75 // pred_region
          %s5641 = sand.u32 %s230, 1
          %s5642 = scalar_lea.sflag [#allocation5], %s5641
          %s5643 = sand.u32 %s230, 1
          %s5644 = smul.addr %s5643, 256
          %s5645 = scalar_lea.vmem [#allocation9], %s5644
          %5646 = dma.done %s5642, 4096
        $region80: #{se_res_block.1} parent=75 // pred_fallthru
          _
      $region76: #{se_res_block.1} parent=5 // pred_fallthru
        _
    $region6: #{se_res_block.1} parent=1 // loop_footer
      %s26 = sadd.s32 1, %s22
    $region7: #{se_res_block.1} parent=1 // loop_footer_branch
      %21 = sbr.rel target = $region3
    $region8: #{se_res_block.1} parent=1 // loop_exit
      _
    %5647 = vsyncpa [#allocation4], 1
    %s5648 = scalar_lea.sflag [#allocation4], 1
    %5649 = vsyncpa %s5648, 1
    %5650 = vsyncpa [#allocation7], 1
    %5651 = vsyncpa [#allocation5], 1
    %s5652 = scalar_lea.sflag [#allocation5], 1
    %5653 = vsyncpa %s5652, 1

</llo_original>
